<compile_context>
chip_gen: v6e
topology: v6e:2x2x1
jax: 0.10.0
libtpu: 0.0.40
codegen_flags: <defaults>
</compile_context>

<pallas_src>
import numpy as np
import jax
import jax.numpy as jnp
from jax import lax
from jax.experimental import pallas as pl
from jax.experimental.pallas import tpu as pltpu


# ----------------------------------------------------------------------------
# Shared in-kernel GGNN block (fused gates, bf16 MXU inputs, f32 math).
# ----------------------------------------------------------------------------
def _ggnn_block(adj3, x2, blk, L, wp_ref, w0_ref, w1_ref, bg_ref, wh1_ref):
    """adj3: (blk, L, L) f32, x2: (blk*L, Din) f32 -> (blk*L, D) f32."""
    D = wh1_ref.shape[0]
    xp = jnp.dot(x2.astype(jnp.bfloat16), wp_ref[...],
                 preferred_element_type=jnp.float32)                    # (blk*L, D)
    xp3 = xp.reshape(blk, L, D)
    a3 = jnp.einsum('bij,bjd->bid', adj3.astype(jnp.bfloat16),
                    xp3.astype(jnp.bfloat16),
                    preferred_element_type=jnp.float32)                 # (blk, L, D)
    a2 = a3.reshape(blk * L, D)
    pre = (jnp.dot(a2.astype(jnp.bfloat16), w0_ref[...],
                   preferred_element_type=jnp.float32)
           + jnp.dot(xp.astype(jnp.bfloat16), w1_ref[...],
                     preferred_element_type=jnp.float32)
           + bg_ref[...])                                               # (blk*L, 3D)
    z = jax.nn.sigmoid(pre[:, :D])
    r = jax.nn.sigmoid(pre[:, D:2 * D])
    h = jnp.tanh(pre[:, 2 * D:]
                 + jnp.dot((r * xp).astype(jnp.bfloat16), wh1_ref[...],
                           preferred_element_type=jnp.float32))
    return h * z + xp * (1.0 - z)                                       # (blk*L, D)


# ----------------------------------------------------------------------------
# Kernel A: claim GGNN + masked mean pooling + attention left-projections.
# ----------------------------------------------------------------------------
def _claim_kernel(adj_ref, x_ref, mask_ref,
                  wp_ref, w0_ref, w1_ref, bg_ref, wh1_ref,
                  w1lw_ref, w1le_ref,
                  q_ref, qw_ref, qe_ref):
    L = adj_ref.shape[1]
    feat = _ggnn_block(adj_ref[...], x_ref[0], 1, L,
                       wp_ref, w0_ref, w1_ref, bg_ref, wh1_ref)         # (L, hid)
    m = mask_ref[0]                                                     # (L, 1)
    pooled = (jnp.sum(feat * m, axis=0, keepdims=True)
              / jnp.sum(m, axis=0, keepdims=True))                      # (1, hid)
    q_ref[0] = pooled
    qw_ref[0] = jnp.dot(pooled.astype(jnp.bfloat16), w1lw_ref[...],
                        preferred_element_type=jnp.float32)             # (1, Aw)
    qe_ref[0] = jnp.dot(pooled.astype(jnp.bfloat16), w1le_ref[...],
                        preferred_element_type=jnp.float32)             # (1, Ae)


def claim_forward(adj, x, mask3, g, w1l_word, w1l_evd):
    B, Lq, Din = x.shape
    hid = g["wh1"].shape[0]
    Aw = w1l_word.shape[1]
    Ae = w1l_evd.shape[1]
    return pl.pallas_call(
        _claim_kernel,
        out_shape=(jax.ShapeDtypeStruct((B, 1, hid), jnp.float32),
                   jax.ShapeDtypeStruct((B, 1, Aw), jnp.float32),
                   jax.ShapeDtypeStruct((B, 1, Ae), jnp.float32)),
        grid=(B,),
        in_specs=[pl.BlockSpec((1, Lq, Lq), lambda b: (b, 0, 0)),
                  pl.BlockSpec((1, Lq, Din), lambda b: (b, 0, 0)),
                  pl.BlockSpec((1, Lq, 1), lambda b: (b, 0, 0)),
                  pl.BlockSpec(g["wp"].shape, lambda b: (0, 0)),
                  pl.BlockSpec(g["w0"].shape, lambda b: (0, 0)),
                  pl.BlockSpec(g["w1"].shape, lambda b: (0, 0)),
                  pl.BlockSpec(g["bg"].shape, lambda b: (0, 0)),
                  pl.BlockSpec(g["wh1"].shape, lambda b: (0, 0)),
                  pl.BlockSpec(w1l_word.shape, lambda b: (0, 0)),
                  pl.BlockSpec(w1l_evd.shape, lambda b: (0, 0))],
        out_specs=(pl.BlockSpec((1, 1, hid), lambda b: (b, 0, 0)),
                   pl.BlockSpec((1, 1, Aw), lambda b: (b, 0, 0)),
                   pl.BlockSpec((1, 1, Ae), lambda b: (b, 0, 0))),
        compiler_params=pltpu.CompilerParams(dimension_semantics=("parallel",)),
    )(adj, x, mask3, g["wp"], g["w0"], g["w1"], g["bg"], g["wh1"],
      w1l_word, w1l_evd)


# ----------------------------------------------------------------------------
# Kernel B: feat_prop1 GGNN + word-scorer GGNN (scalar / VPU path).
# ----------------------------------------------------------------------------
def _doc1_kernel(adj_ref, x_ref,
                 wp_ref, w0_ref, w1_ref, bg_ref, wh1_ref,
                 wps_ref, sc_ref,
                 feat_ref, score_ref):
    blk, L, _ = adj_ref.shape
    Din = x_ref.shape[-1]
    D = wh1_ref.shape[0]
    adj3 = adj_ref[...]
    x2 = x_ref[...].reshape(blk * L, Din)
    feat2 = _ggnn_block(adj3, x2, blk, L, wp_ref, w0_ref, w1_ref, bg_ref, wh1_ref)
    feat3 = feat2.reshape(blk, L, D)
    feat_ref[...] = feat3

    # word scorer: GGNN(hid -> 1) done entirely as VPU mult + lane reductions.
    xs = jnp.sum(feat3 * wps_ref[...][None], axis=-1)                   # (blk, L)
    a_s = jnp.sum(adj3 * xs[:, None, :], axis=-1)                       # (blk, L)
    z_s = jax.nn.sigmoid(a_s * sc_ref[0] + sc_ref[1] + xs * sc_ref[2] + sc_ref[3])
    r_s = jax.nn.sigmoid(a_s * sc_ref[4] + sc_ref[5] + xs * sc_ref[6] + sc_ref[7])
    h_s = jnp.tanh(a_s * sc_ref[8] + sc_ref[9] + (r_s * xs) * sc_ref[10] + sc_ref[11])
    score = h_s * z_s + xs * (1.0 - z_s)                                # (blk, L)
    for i in range(blk):
        score_ref[i] = score[i:i + 1, :]


def doc_stage1_forward(adj, x, g, wps, sc, blk):
    Epad, Ld, Din = x.shape
    hid = g["wh1"].shape[0]
    grid_e = Epad // blk
    return pl.pallas_call(
        _doc1_kernel,
        out_shape=(jax.ShapeDtypeStruct((Epad, Ld, hid), jnp.float32),
                   jax.ShapeDtypeStruct((Epad, 1, Ld), jnp.float32)),
        grid=(grid_e,),
        in_specs=[pl.BlockSpec((blk, Ld, Ld), lambda e: (e, 0, 0)),
                  pl.BlockSpec((blk, Ld, Din), lambda e: (e, 0, 0)),
                  pl.BlockSpec(g["wp"].shape, lambda e: (0, 0)),
                  pl.BlockSpec(g["w0"].shape, lambda e: (0, 0)),
                  pl.BlockSpec(g["w1"].shape, lambda e: (0, 0)),
                  pl.BlockSpec(g["bg"].shape, lambda e: (0, 0)),
                  pl.BlockSpec(g["wh1"].shape, lambda e: (0, 0)),
                  pl.BlockSpec(wps.shape, lambda e: (0, 0)),
                  pl.BlockSpec(memory_space=pltpu.MemorySpace.SMEM)],
        out_specs=(pl.BlockSpec((blk, Ld, hid), lambda e: (e, 0, 0)),
                   pl.BlockSpec((blk, 1, Ld), lambda e: (e, 0, 0))),
        compiler_params=pltpu.CompilerParams(dimension_semantics=("parallel",)),
    )(adj, x, g["wp"], g["w0"], g["w1"], g["bg"], g["wh1"], wps, sc)


# ----------------------------------------------------------------------------
# Kernel C: feat_prop2 GGNN + word-level ConcatNotEqualSelfAtt (fused).
# ----------------------------------------------------------------------------
def _doc2_kernel(adj_ref, feat_ref, mask_ref, ql_ref,
                 wp_ref, w0_ref, w1_ref, bg_ref, wh1_ref,
                 w1r_ref, w2_ref,
                 att_ref):
    blk, L, _ = adj_ref.shape
    D = wh1_ref.shape[0]
    adj3 = adj_ref[...]
    x2 = feat_ref[...].reshape(blk * L, D)
    df2 = _ggnn_block(adj3, x2, blk, L, wp_ref, w0_ref, w1_ref, bg_ref, wh1_ref)
    df3 = df2.reshape(blk, L, D)

    A = w1r_ref.shape[1]
    H = w2_ref.shape[1]
    rr = jnp.dot(df2.astype(jnp.bfloat16), w1r_ref[...],
                 preferred_element_type=jnp.float32)                    # (blk*L, A)
    tmp = jnp.tanh(rr.reshape(blk, L, A) + ql_ref[...])                 # (+ (blk,1,A))
    lin = jnp.dot(tmp.reshape(blk * L, A).astype(jnp.bfloat16), w2_ref[...],
                  preferred_element_type=jnp.float32).reshape(blk, L, H)
    masked = jnp.where(mask_ref[...] == 0.0, -1e30, lin)                # safe -inf
    mx = jnp.max(masked, axis=1, keepdims=True)
    p = jnp.exp(masked - mx)
    attn = p / jnp.sum(p, axis=1, keepdims=True)                        # (blk, L, H)
    for i in range(blk):
        att_ref[i] = lax.dot_general(
            attn[i].astype(jnp.bfloat16), df3[i].astype(jnp.bfloat16),
            (((0,), (0,)), ((), ())),
            preferred_element_type=jnp.float32)                         # (H, D)


def doc_stage2_forward(adj, feat, mask3, ql, g, w1r, w2, blk):
    Epad, Ld, hid = feat.shape
    Aw = w1r.shape[1]
    Hw = w2.shape[1]
    grid_e = Epad // blk
    return pl.pallas_call(
        _doc2_kernel,
        out_shape=jax.ShapeDtypeStruct((Epad, Hw, hid), jnp.float32),
        grid=(grid_e,),
        in_specs=[pl.BlockSpec((blk, Ld, Ld), lambda e: (e, 0, 0)),
                  pl.BlockSpec((blk, Ld, hid), lambda e: (e, 0, 0)),
                  pl.BlockSpec((blk, Ld, 1), lambda e: (e, 0, 0)),
                  pl.BlockSpec((blk, 1, Aw), lambda e: (e, 0, 0)),
                  pl.BlockSpec(g["wp"].shape, lambda e: (0, 0)),
                  pl.BlockSpec(g["w0"].shape, lambda e: (0, 0)),
                  pl.BlockSpec(g["w1"].shape, lambda e: (0, 0)),
                  pl.BlockSpec(g["bg"].shape, lambda e: (0, 0)),
                  pl.BlockSpec(g["wh1"].shape, lambda e: (0, 0)),
                  pl.BlockSpec(w1r.shape, lambda e: (0, 0)),
                  pl.BlockSpec(w2.shape, lambda e: (0, 0))],
        out_specs=pl.BlockSpec((blk, Hw, hid), lambda e: (e, 0, 0)),
        compiler_params=pltpu.CompilerParams(dimension_semantics=("parallel",)),
    )(adj, feat, mask3, ql, g["wp"], g["w0"], g["w1"], g["bg"], g["wh1"], w1r, w2)


# ----------------------------------------------------------------------------
# Kernel D: evidence-level ConcatNotEqualSelfAtt.
# ----------------------------------------------------------------------------
def _evd_att_kernel(qe_ref, right_ref, mask_ref, w1r_ref, w2_ref, att_ref):
    right = right_ref[0]                                                # (Me, D2)
    m = mask_ref[0]                                                     # (Me, 1)
    tmp = jnp.tanh(jnp.dot(right.astype(jnp.bfloat16), w1r_ref[...],
                           preferred_element_type=jnp.float32) + qe_ref[0])
    lin = jnp.dot(tmp.astype(jnp.bfloat16), w2_ref[...],
                  preferred_element_type=jnp.float32)                   # (Me, He)
    masked = jnp.where(m == 0.0, -1e30, lin)
    mx = jnp.max(masked, axis=0, keepdims=True)
    p = jnp.exp(masked - mx)
    attn = p / jnp.sum(p, axis=0, keepdims=True)
    att_ref[0] = lax.dot_general(
        attn.astype(jnp.bfloat16), right.astype(jnp.bfloat16),
        (((0,), (0,)), ((), ())),
        preferred_element_type=jnp.float32)                             # (He, D2)


def evd_att_forward(qe, padded_doc, mask3, w1r, w2):
    B, Me, D2 = padded_doc.shape
    Ae = w1r.shape[1]
    He = w2.shape[1]
    return pl.pallas_call(
        _evd_att_kernel,
        out_shape=jax.ShapeDtypeStruct((B, He, D2), jnp.float32),
        grid=(B,),
        in_specs=[pl.BlockSpec((1, 1, Ae), lambda b: (b, 0, 0)),
                  pl.BlockSpec((1, Me, D2), lambda b: (b, 0, 0)),
                  pl.BlockSpec((1, Me, 1), lambda b: (b, 0, 0)),
                  pl.BlockSpec(w1r.shape, lambda b: (0, 0)),
                  pl.BlockSpec(w2.shape, lambda b: (0, 0))],
        out_specs=pl.BlockSpec((1, He, D2), lambda b: (b, 0, 0)),
        compiler_params=pltpu.CompilerParams(dimension_semantics=("parallel",)),
    )(qe, padded_doc, mask3, w1r, w2)


# ----------------------------------------------------------------------------
# Kernel E: embedder linear -> ReLU -> classifier linear.
# ----------------------------------------------------------------------------
def _head_kernel(x_ref, we_ref, be_ref, wm_ref, bm_ref, emb_ref, logit_ref):
    emb = jnp.dot(x_ref[...].astype(jnp.bfloat16), we_ref[...],
                  preferred_element_type=jnp.float32) + be_ref[...]
    emb_ref[...] = emb
    # TODO(synk): logit last dim = n_classes (2) -> masked partial store; negligible here.
    logit_ref[...] = (jnp.dot(jnp.maximum(emb, 0.0).astype(jnp.bfloat16), wm_ref[...],
                              preferred_element_type=jnp.float32) + bm_ref[...])


def head_forward(x, we, be, wm, bm):
    B = x.shape[0]
    Dh = we.shape[1]
    C = wm.shape[1]
    return pl.pallas_call(
        _head_kernel,
        out_shape=(jax.ShapeDtypeStruct((B, Dh), jnp.float32),
                   jax.ShapeDtypeStruct((B, C), jnp.float32)),
        grid=(1,),
        in_specs=[pl.BlockSpec(x.shape, lambda i: (0, 0)),
                  pl.BlockSpec(we.shape, lambda i: (0, 0)),
                  pl.BlockSpec(be.shape, lambda i: (0, 0)),
                  pl.BlockSpec(wm.shape, lambda i: (0, 0)),
                  pl.BlockSpec(bm.shape, lambda i: (0, 0))],
        out_specs=(pl.BlockSpec((B, Dh), lambda i: (0, 0)),
                   pl.BlockSpec((B, C), lambda i: (0, 0))),
    )(x, we, be, wm, bm)


# ----------------------------------------------------------------------------
# Parameter initialization (deterministic, synthetic) — all preprocessing hoisted here.
# ----------------------------------------------------------------------------
def init_linear(key, din, dout, bias=True):
    kw, kb = jax.random.split(key)
    bound = 1.0 / np.sqrt(din)
    w = jax.random.uniform(kw, (din, dout), jnp.float32, -bound, bound)
    b = jax.random.uniform(kb, (1, dout), jnp.float32, -bound, bound) if bias else None
    return w, b


def init_raw_ggnn(key, din, dout):
    keys = jax.random.split(key, 7)
    p = {}
    p["wp"], _ = init_linear(keys[0], din, dout, bias=False)
    for name, k in zip(["z0", "z1", "r0", "r1", "h0", "h1"], keys[1:]):
        w, b = init_linear(k, dout, dout)
        p["w" + name] = w
        p["b" + name] = b
    return p


def prep_ggnn(raw):
    """Fuse the 6 gate linears into two weights + one bias (done once at init)."""
    bf16 = jnp.bfloat16
    w0 = jnp.concatenate([raw["wz0"], raw["wr0"], raw["wh0"]], axis=1)
    w1 = jnp.concatenate([raw["wz1"], raw["wr1"], jnp.zeros_like(raw["wh1"])], axis=1)
    bg = jnp.concatenate([raw["bz0"] + raw["bz1"],
                          raw["br0"] + raw["br1"],
                          raw["bh0"] + raw["bh1"]], axis=1)
    return {"wp": raw["wp"].astype(bf16), "w0": w0.astype(bf16), "w1": w1.astype(bf16),
            "bg": bg.astype(jnp.float32), "wh1": raw["wh1"].astype(bf16)}


def init_get_model_params(key, cfg):
    ks = iter(jax.random.split(key, 16))
    hid = cfg["hidden_dim"]
    bf16 = jnp.bfloat16
    p = {}
    p["embedding"] = jax.random.normal(
        next(ks), (cfg["vocab_size"], cfg["input_dim"]), jnp.float32)
    p["ggnn4claim"] = prep_ggnn(init_raw_ggnn(next(ks), cfg["input_dim"], hid))
    p["feat_prop1"] = prep_ggnn(init_raw_ggnn(next(ks), cfg["input_dim"], hid))
    sc_raw = init_raw_ggnn(next(ks), hid, 1)          # word scorer (hid -> 1)
    p["scorer_wps"] = sc_raw["wp"].reshape(1, hid).astype(jnp.float32)
    p["scorer_sc"] = jnp.concatenate(
        [sc_raw[k].reshape(-1) for k in
         ["wz0", "bz0", "wz1", "bz1", "wr0", "br0", "wr1", "br1",
          "wh0", "bh0", "wh1", "bh1"]]).astype(jnp.float32)
    p["feat_prop2"] = prep_ggnn(init_raw_ggnn(next(ks), hid, hid))

    w1w, _ = init_linear(next(ks), 2 * hid, cfg["word_att_hidden_dim"], bias=False)
    w2w, _ = init_linear(next(ks), cfg["word_att_hidden_dim"],
                         cfg["word_att_num_heads"], bias=False)
    p["att_word_w1l"] = w1w[:hid].astype(bf16)
    p["att_word_w1r"] = w1w[hid:].astype(bf16)
    p["att_word_w2"] = w2w.astype(bf16)

    evd_inp = cfg["word_att_num_heads"] * hid + hid
    w1e, _ = init_linear(next(ks), evd_inp, cfg["evd_att_hidden_dim"], bias=False)
    w2e, _ = init_linear(next(ks), cfg["evd_att_hidden_dim"],
                         cfg["evd_att_num_heads"], bias=False)
    p["att_evd_w1l"] = w1e[:hid].astype(bf16)
    p["att_evd_w1r"] = w1e[hid:].astype(bf16)
    p["att_evd_w2"] = w2e.astype(bf16)

    evd_input_size = cfg["word_att_num_heads"] * cfg["evd_att_num_heads"] * hid + hid
    we, be = init_linear(next(ks), evd_input_size, hid)
    wm, bm = init_linear(next(ks), hid, cfg["n_classes"])
    p["embedder_w"] = we.astype(bf16)
    p["embedder_b"] = be
    p["mlp_w"] = wm.astype(bf16)
    p["mlp_b"] = bm
    return p


# ----------------------------------------------------------------------------
# GET_Model forward
# ----------------------------------------------------------------------------
def get_model_forward(params, cfg, query, query_adj, query_mask,
                      doc, doc_adj, doc_mask, evd_count_per_query):
    """evd_count_per_query is a host numpy int array (ragged grouping is static)."""
    hid = cfg["hidden_dim"]
    Me = cfg["max_num_evd"]
    B, Lq = query.shape
    E, Ld = doc.shape
    evd_count = np.asarray(evd_count_per_query)

    # ---- _query_embedding (kernel A: GGNN + pooling + attention left-projections) ----
    embed_query = params["embedding"][query]                               # (B, Lq, in)
    qmask3 = query_mask.astype(jnp.float32).reshape(B, Lq, 1)
    q3, qw3, qe3 = claim_forward(query_adj.astype(jnp.float32), embed_query, qmask3,
                                 params["ggnn4claim"],
                                 params["att_word_w1l"], params["att_evd_w1l"])
    query_repr = q3[:, 0, :]                                               # (B, hid)

    # ---- block the evidence batch (>=2 parallel grid steps, padded with zeros) ----
    blk = (E + 1) // 2 if E > 1 else 1
    blk = min(blk, 8)
    grid_e = -(-E // blk)
    Epad = blk * grid_e
    pad_e = Epad - E
    doc_p = jnp.pad(doc, ((0, pad_e), (0, 0)))
    adj_p = jnp.pad(doc_adj.astype(jnp.float32), ((0, pad_e), (0, 0), (0, 0)))
    mask_p = jnp.pad(doc_mask.astype(jnp.float32),
                     ((0, pad_e), (0, 0))).reshape(Epad, Ld, 1)

    # ---- feat_prop1 + word scorer (kernel B) ----
    embed_doc = params["embedding"][doc_p]                                 # (Epad, Ld, in)
    feat, score3 = doc_stage1_forward(adj_p, embed_doc, params["feat_prop1"],
                                      params["scorer_wps"], params["scorer_sc"], blk)
    score = score3[:, 0, :]                                                # (Epad, Ld)

    # ---- GSL: top-k node selection + edge masking (plain JAX) ----
    k = int(cfg["rate"] * Ld)
    idx = lax.top_k(score, k)[1]                                           # (Epad, k)
    sel = jnp.zeros((Epad, Ld), jnp.float32).at[
        jnp.arange(Epad)[:, None], idx].set(1.0)
    gsl_mask = jnp.maximum(sel[:, :, None], sel[:, None, :])
    adj_refined = adj_p * gsl_mask

    # ---- expand projected query per evidence (host-static ragged repeat) ----
    rep_idx = np.repeat(np.arange(B), evd_count)
    qw_exp = jnp.pad(qw3[rep_idx], ((0, pad_e), (0, 0), (0, 0)))           # (Epad, 1, Aw)

    # ---- feat_prop2 + word-level attention (kernel C, GGNN output stays in VMEM) ----
    att_w = doc_stage2_forward(adj_refined, feat, mask_p, qw_exp,
                               params["feat_prop2"],
                               params["att_word_w1r"], params["att_word_w2"], blk)
    # kernel writes (Hw, hid) lane-dense; restore PyTorch (hid, Hw) flatten order here.
    attn_doc = jnp.transpose(att_w[:E], (0, 2, 1)).reshape(E, -1)          # (E, Hw*hid)

    # ---- _pad_doc_embedding (host-static ragged padding) ----
    padded, last = [], 0
    for n in evd_count:
        n = int(n)
        h = attn_doc[last:last + n]
        padded.append(jnp.pad(h, ((0, Me - n), (0, 0))))
        last += n
    padded_doc = jnp.stack(padded, axis=0)                                 # (B, Me, Hw*hid)
    evd_mask3 = jnp.asarray((np.arange(Me)[None, :] <
                             evd_count[:, None]).astype(np.float32)).reshape(B, Me, 1)

    # ---- evidence-level attention (kernel D) ----
    att_e = evd_att_forward(qe3, padded_doc, evd_mask3,
                            params["att_evd_w1r"], params["att_evd_w2"])   # (B, He, D2)
    doc_repr = jnp.transpose(att_e, (0, 2, 1)).reshape(B, -1)              # (B, D2*He)

    # ---- head (kernel E) ----
    query_doc_repr = jnp.concatenate([query_repr, doc_repr], axis=-1)
    embedding, logit = head_forward(query_doc_repr,
                                    params["embedder_w"], params["embedder_b"],
                                    params["mlp_w"], params["mlp_b"])
    return embedding, logit


# ----------------------------------------------------------------------------
if __name__ == "__main__":
    cfg = dict(
        input_dim=16,
        hidden_dim=32,
        vocab_size=64,
        n_classes=2,
        word_att_hidden_dim=16,
        word_att_num_heads=2,
        evd_att_hidden_dim=16,
        evd_att_num_heads=2,
        max_claim_len=8,
        max_doc_len=16,
        max_num_evd=4,
        rate=0.5,
    )
    B = 2
    evd_count_per_query = np.array([3, 2], dtype=np.int32)   # host-static ragged counts
    sum_evd = int(evd_count_per_query.sum())
    Lq, Ld = cfg["max_claim_len"], cfg["max_doc_len"]

    key = jax.random.PRNGKey(0)
    k_param, k_in = jax.random.split(key)
    params = init_get_model_params(k_param, cfg)

    ks = jax.random.split(k_in, 6)
    query = jax.random.randint(ks[0], (B, Lq), 0, cfg["vocab_size"], dtype=jnp.int32)
    query_adj = (jax.random.uniform(ks[1], (B, Lq, Lq)) < 0.4).astype(jnp.float32)
    query_adj = jnp.maximum(query_adj, jnp.eye(Lq)[None])            # self loops
    q_lens = np.array([6, 8])
    query_mask = jnp.asarray((np.arange(Lq)[None, :] < q_lens[:, None]).astype(np.float32))

    doc = jax.random.randint(ks[2], (sum_evd, Ld), 0, cfg["vocab_size"], dtype=jnp.int32)
    doc_adj = (jax.random.uniform(ks[3], (sum_evd, Ld, Ld)) < 0.3).astype(jnp.float32)
    doc_adj = jnp.maximum(doc_adj, jnp.eye(Ld)[None])
    d_lens = np.array([16, 12, 10, 14, 8])
    doc_mask = jnp.asarray((np.arange(Ld)[None, :] < d_lens[:, None]).astype(np.float32))

    # jit the full forward (evd counts / cfg are static via closure) to cut dispatch overhead.
    fwd = jax.jit(lambda p, q, qa, qm, d, da, dm: get_model_forward(
        p, cfg, q, qa, qm, d, da, dm, evd_count_per_query))

    embedding, logit = fwd(params, query, query_adj, query_mask, doc, doc_adj, doc_mask)
    embedding = jax.block_until_ready(embedding)
    logit = jax.block_until_ready(logit)

    assert embedding.shape == (B, cfg["hidden_dim"])
    assert logit.shape == (B, cfg["n_classes"])
    assert np.all(np.isfinite(np.asarray(embedding)))
    assert np.all(np.isfinite(np.asarray(logit)))
    # TODO(synk): training-mode dropout is intentionally omitted (inference semantics).
    print("KERNEL_OK")
</pallas_src>

<mosaic_0001>
module attributes {stable_mosaic.version = 11 : i64} {
  func.func @_claim_kernel(%arg0: i32, %arg1: memref<1x8x8xf32, #tpu.memory_space<vmem>>, %arg2: memref<1x8x16xf32, #tpu.memory_space<vmem>>, %arg3: memref<1x8x1xf32, #tpu.memory_space<vmem>>, %arg4: memref<16x32xbf16, #tpu.memory_space<vmem>>, %arg5: memref<32x96xbf16, #tpu.memory_space<vmem>>, %arg6: memref<32x96xbf16, #tpu.memory_space<vmem>>, %arg7: memref<1x96xf32, #tpu.memory_space<vmem>>, %arg8: memref<32x32xbf16, #tpu.memory_space<vmem>>, %arg9: memref<32x16xbf16, #tpu.memory_space<vmem>>, %arg10: memref<32x16xbf16, #tpu.memory_space<vmem>>, %arg11: memref<1x1x32xf32, #tpu.memory_space<vmem>>, %arg12: memref<1x1x16xf32, #tpu.memory_space<vmem>>, %arg13: memref<1x1x16xf32, #tpu.memory_space<vmem>>) attributes {dimension_semantics = [#tpu.dimension_semantics<parallel>], iteration_bounds = array<i64: 2>, scalar_prefetch = 0 : i64, scratch_operands = 0 : i64, tpu.core_type = #tpu.core_type<tc>, window_params = [{transform_indices = @transform_0, window_bounds = array<i64: 1, 8, 8>}, {transform_indices = @transform_1, window_bounds = array<i64: 1, 8, 16>}, {transform_indices = @transform_2, window_bounds = array<i64: 1, 8, 1>}, {pipeline_mode = #tpu.pipeline_mode<synchronous>, transform_indices = @transform_3, window_bounds = array<i64: 16, 32>}, {pipeline_mode = #tpu.pipeline_mode<synchronous>, transform_indices = @transform_4, window_bounds = array<i64: 32, 96>}, {pipeline_mode = #tpu.pipeline_mode<synchronous>, transform_indices = @transform_5, window_bounds = array<i64: 32, 96>}, {pipeline_mode = #tpu.pipeline_mode<synchronous>, transform_indices = @transform_6, window_bounds = array<i64: 1, 96>}, {pipeline_mode = #tpu.pipeline_mode<synchronous>, transform_indices = @transform_7, window_bounds = array<i64: 32, 32>}, {pipeline_mode = #tpu.pipeline_mode<synchronous>, transform_indices = @transform_8, window_bounds = array<i64: 32, 16>}, {pipeline_mode = #tpu.pipeline_mode<synchronous>, transform_indices = @transform_9, window_bounds = array<i64: 32, 16>}, {transform_indices = @transform_10, window_bounds = array<i64: 1, 1, 32>}, {transform_indices = @transform_11, window_bounds = array<i64: 1, 1, 16>}, {transform_indices = @transform_12, window_bounds = array<i64: 1, 1, 16>}]} {
    %c0 = arith.constant 0 : index
    %c0_0 = arith.constant 0 : index
    %c0_1 = arith.constant 0 : index
    %0 = vector.load %arg1[%c0, %c0_0, %c0_1] : memref<1x8x8xf32, #tpu.memory_space<vmem>>, vector<1x8x8xf32>
    %c0_2 = arith.constant 0 : index
    %c0_3 = arith.constant 0 : index
    %c0_4 = arith.constant 0 : index
    %1 = vector.load %arg2[%c0_2, %c0_3, %c0_4] : memref<1x8x16xf32, #tpu.memory_space<vmem>>, vector<1x8x16xf32>
    %2 = vector.shape_cast %1 : vector<1x8x16xf32> to vector<8x16xf32>
    %3 = arith.truncf %2 : vector<8x16xf32> to vector<8x16xbf16>
    %c0_5 = arith.constant 0 : index
    %c0_6 = arith.constant 0 : index
    %4 = vector.load %arg4[%c0_5, %c0_6] : memref<16x32xbf16, #tpu.memory_space<vmem>>, vector<16x32xbf16>
    %cst = arith.constant dense<0.000000e+00> : vector<8x32xf32>
    %5 = tpu.matmul %3, %4, %cst {dimension_numbers = #tpu.dot_dimension_numbers<[1], [0], [0], [1], [0, 0, 1, 1], [], []>} : vector<8x16xbf16>, vector<16x32xbf16>, vector<8x32xf32> -> vector<8x32xf32>
    %6 = vector.shape_cast %5 : vector<8x32xf32> to vector<1x8x32xf32>
    %7 = arith.truncf %0 : vector<1x8x8xf32> to vector<1x8x8xbf16>
    %8 = arith.truncf %6 : vector<1x8x32xf32> to vector<1x8x32xbf16>
    "tpu.trace_start"() <{level = 10 : i32, message = "bij,bjd->bid"}> : () -> ()
    %cst_7 = arith.constant dense<0.000000e+00> : vector<1x8x32xf32>
    %9 = tpu.matmul %7, %8, %cst_7 {dimension_numbers = #tpu.dot_dimension_numbers<[2], [1], [1], [2], [0, 0, 0, 1, 1, 2], [0], [0]>} : vector<1x8x8xbf16>, vector<1x8x32xbf16>, vector<1x8x32xf32> -> vector<1x8x32xf32>
    "tpu.trace_stop"() : () -> ()
    %10 = vector.shape_cast %9 : vector<1x8x32xf32> to vector<8x32xf32>
    %11 = arith.truncf %10 : vector<8x32xf32> to vector<8x32xbf16>
    %c0_8 = arith.constant 0 : index
    %c0_9 = arith.constant 0 : index
    %12 = vector.load %arg5[%c0_8, %c0_9] : memref<32x96xbf16, #tpu.memory_space<vmem>>, vector<32x96xbf16>
    %cst_10 = arith.constant dense<0.000000e+00> : vector<8x96xf32>
    %13 = tpu.matmul %11, %12, %cst_10 {dimension_numbers = #tpu.dot_dimension_numbers<[1], [0], [0], [1], [0, 0, 1, 1], [], []>} : vector<8x32xbf16>, vector<32x96xbf16>, vector<8x96xf32> -> vector<8x96xf32>
    %14 = arith.truncf %5 : vector<8x32xf32> to vector<8x32xbf16>
    %c0_11 = arith.constant 0 : index
    %c0_12 = arith.constant 0 : index
    %15 = vector.load %arg6[%c0_11, %c0_12] : memref<32x96xbf16, #tpu.memory_space<vmem>>, vector<32x96xbf16>
    %cst_13 = arith.constant dense<0.000000e+00> : vector<8x96xf32>
    %16 = tpu.matmul %14, %15, %cst_13 {dimension_numbers = #tpu.dot_dimension_numbers<[1], [0], [0], [1], [0, 0, 1, 1], [], []>} : vector<8x32xbf16>, vector<32x96xbf16>, vector<8x96xf32> -> vector<8x96xf32>
    %17 = arith.addf %13, %16 : vector<8x96xf32>
    %c0_14 = arith.constant 0 : index
    %c0_15 = arith.constant 0 : index
    %18 = vector.load %arg7[%c0_14, %c0_15] : memref<1x96xf32, #tpu.memory_space<vmem>>, vector<1x96xf32>
    %19 = vector.broadcast %18 : vector<1x96xf32> to vector<8x96xf32>
    %20 = arith.addf %17, %19 : vector<8x96xf32>
    %21 = vector.extract_strided_slice %20 {offsets = [0, 0], sizes = [8, 32], strides = [1, 1]} : vector<8x96xf32> to vector<8x32xf32>
    %22 = arith.negf %21 : vector<8x32xf32>
    %23 = math.exp %22 : vector<8x32xf32>
    %cst_16 = arith.constant 1.000000e+00 : f32
    %24 = vector.broadcast %cst_16 : f32 to vector<8x32xf32>
    %25 = arith.addf %24, %23 : vector<8x32xf32>
    %26 = arith.divf %24, %25 : vector<8x32xf32>
    %27 = vector.extract_strided_slice %20 {offsets = [0, 32], sizes = [8, 32], strides = [1, 1]} : vector<8x96xf32> to vector<8x32xf32>
    %28 = arith.negf %27 : vector<8x32xf32>
    %29 = math.exp %28 : vector<8x32xf32>
    %cst_17 = arith.constant 1.000000e+00 : f32
    %30 = vector.broadcast %cst_17 : f32 to vector<8x32xf32>
    %31 = arith.addf %30, %29 : vector<8x32xf32>
    %32 = arith.divf %30, %31 : vector<8x32xf32>
    %33 = vector.extract_strided_slice %20 {offsets = [0, 64], sizes = [8, 32], strides = [1, 1]} : vector<8x96xf32> to vector<8x32xf32>
    %34 = arith.mulf %32, %5 : vector<8x32xf32>
    %35 = arith.truncf %34 : vector<8x32xf32> to vector<8x32xbf16>
    %c0_18 = arith.constant 0 : index
    %c0_19 = arith.constant 0 : index
    %36 = vector.load %arg8[%c0_18, %c0_19] : memref<32x32xbf16, #tpu.memory_space<vmem>>, vector<32x32xbf16>
    %cst_20 = arith.constant dense<0.000000e+00> : vector<8x32xf32>
    %37 = tpu.matmul %35, %36, %cst_20 {dimension_numbers = #tpu.dot_dimension_numbers<[1], [0], [0], [1], [0, 0, 1, 1], [], []>} : vector<8x32xbf16>, vector<32x32xbf16>, vector<8x32xf32> -> vector<8x32xf32>
    %38 = arith.addf %33, %37 : vector<8x32xf32>
    %39 = math.tanh %38 : vector<8x32xf32>
    %40 = arith.mulf %39, %26 : vector<8x32xf32>
    %cst_21 = arith.constant 1.000000e+00 : f32
    %41 = vector.broadcast %cst_21 : f32 to vector<8x32xf32>
    %42 = arith.subf %41, %26 : vector<8x32xf32>
    %43 = arith.mulf %5, %42 : vector<8x32xf32>
    %44 = arith.addf %40, %43 : vector<8x32xf32>
    %c0_22 = arith.constant 0 : index
    %c0_23 = arith.constant 0 : index
    %c0_24 = arith.constant 0 : index
    %45 = vector.load %arg3[%c0_22, %c0_23, %c0_24] : memref<1x8x1xf32, #tpu.memory_space<vmem>>, vector<1x8x1xf32>
    %46 = vector.shape_cast %45 : vector<1x8x1xf32> to vector<8x1xf32>
    %47 = vector.broadcast %46 : vector<8x1xf32> to vector<8x32xf32>
    %48 = arith.mulf %44, %47 : vector<8x32xf32>
    %cst_25 = arith.constant dense<0.000000e+00> : vector<32xf32>
    %49 = vector.multi_reduction <add>, %48, %cst_25 [0] : vector<8x32xf32> to vector<32xf32>
    %50 = vector.shape_cast %49 : vector<32xf32> to vector<1x32xf32>
    %cst_26 = arith.constant dense<0.000000e+00> : vector<1xf32>
    %51 = vector.multi_reduction <add>, %46, %cst_26 [0] : vector<8x1xf32> to vector<1xf32>
    %52 = vector.shape_cast %51 : vector<1xf32> to vector<1x1xf32>
    %53 = vector.broadcast %52 : vector<1x1xf32> to vector<1x32xf32>
    %54 = arith.divf %50, %53 : vector<1x32xf32>
    %c0_27 = arith.constant 0 : index
    %c0_28 = arith.constant 0 : index
    %c0_29 = arith.constant 0 : index
    %55 = vector.load %arg11[%c0_27, %c0_28, %c0_29] : memref<1x1x32xf32, #tpu.memory_space<vmem>>, vector<1x1x32xf32>
    %56 = vector.shape_cast %55 : vector<1x1x32xf32> to vector<1x32xf32>
    %57 = vector.shape_cast %54 : vector<1x32xf32> to vector<1x1x32xf32>
    tpu.vector_store %arg11[%c0_27, %c0_28, %c0_29], %57 {strides = array<i32>} : memref<1x1x32xf32, #tpu.memory_space<vmem>>, vector<1x1x32xf32>,
    %58 = arith.truncf %54 : vector<1x32xf32> to vector<1x32xbf16>
    %c0_30 = arith.constant 0 : index
    %c0_31 = arith.constant 0 : index
    %59 = vector.load %arg9[%c0_30, %c0_31] : memref<32x16xbf16, #tpu.memory_space<vmem>>, vector<32x16xbf16>
    %cst_32 = arith.constant dense<0.000000e+00> : vector<1x16xf32>
    %60 = tpu.matmul %58, %59, %cst_32 {dimension_numbers = #tpu.dot_dimension_numbers<[1], [0], [0], [1], [0, 0, 1, 1], [], []>} : vector<1x32xbf16>, vector<32x16xbf16>, vector<1x16xf32> -> vector<1x16xf32>
    %c0_33 = arith.constant 0 : index
    %c0_34 = arith.constant 0 : index
    %c0_35 = arith.constant 0 : index
    %61 = vector.load %arg12[%c0_33, %c0_34, %c0_35] : memref<1x1x16xf32, #tpu.memory_space<vmem>>, vector<1x1x16xf32>
    %62 = vector.shape_cast %61 : vector<1x1x16xf32> to vector<1x16xf32>
    %63 = vector.shape_cast %60 : vector<1x16xf32> to vector<1x1x16xf32>
    tpu.vector_store %arg12[%c0_33, %c0_34, %c0_35], %63 {strides = array<i32>} : memref<1x1x16xf32, #tpu.memory_space<vmem>>, vector<1x1x16xf32>,
    %64 = arith.truncf %54 : vector<1x32xf32> to vector<1x32xbf16>
    %c0_36 = arith.constant 0 : index
    %c0_37 = arith.constant 0 : index
    %65 = vector.load %arg10[%c0_36, %c0_37] : memref<32x16xbf16, #tpu.memory_space<vmem>>, vector<32x16xbf16>
    %cst_38 = arith.constant dense<0.000000e+00> : vector<1x16xf32>
    %66 = tpu.matmul %64, %65, %cst_38 {dimension_numbers = #tpu.dot_dimension_numbers<[1], [0], [0], [1], [0, 0, 1, 1], [], []>} : vector<1x32xbf16>, vector<32x16xbf16>, vector<1x16xf32> -> vector<1x16xf32>
    %c0_39 = arith.constant 0 : index
    %c0_40 = arith.constant 0 : index
    %c0_41 = arith.constant 0 : index
    %67 = vector.load %arg13[%c0_39, %c0_40, %c0_41] : memref<1x1x16xf32, #tpu.memory_space<vmem>>, vector<1x1x16xf32>
    %68 = vector.shape_cast %67 : vector<1x1x16xf32> to vector<1x16xf32>
    %69 = vector.shape_cast %66 : vector<1x16xf32> to vector<1x1x16xf32>
    tpu.vector_store %arg13[%c0_39, %c0_40, %c0_41], %69 {strides = array<i32>} : memref<1x1x16xf32, #tpu.memory_space<vmem>>, vector<1x1x16xf32>,
    return
  }
  func.func @transform_0(%arg0: i32) -> (i32, i32, i32) {
    %c0_i32 = arith.constant 0 : i32
    %c0_i32_0 = arith.constant 0 : i32
    %c0_i32_1 = arith.constant 0 : i32
    return %arg0, %c0_i32, %c0_i32_0 : i32, i32, i32
  }
  func.func @transform_1(%arg0: i32) -> (i32, i32, i32) {
    %c0_i32 = arith.constant 0 : i32
    %c0_i32_0 = arith.constant 0 : i32
    %c0_i32_1 = arith.constant 0 : i32
    return %arg0, %c0_i32, %c0_i32_0 : i32, i32, i32
  }
  func.func @transform_2(%arg0: i32) -> (i32, i32, i32) {
    %c0_i32 = arith.constant 0 : i32
    %c0_i32_0 = arith.constant 0 : i32
    %c0_i32_1 = arith.constant 0 : i32
    return %arg0, %c0_i32, %c0_i32_0 : i32, i32, i32
  }
  func.func @transform_3(%arg0: i32) -> (i32, i32) {
    %c0_i32 = arith.constant 0 : i32
    %c0_i32_0 = arith.constant 0 : i32
    %c0_i32_1 = arith.constant 0 : i32
    return %c0_i32, %c0_i32_0 : i32, i32
  }
  func.func @transform_4(%arg0: i32) -> (i32, i32) {
    %c0_i32 = arith.constant 0 : i32
    %c0_i32_0 = arith.constant 0 : i32
    %c0_i32_1 = arith.constant 0 : i32
    return %c0_i32, %c0_i32_0 : i32, i32
  }
  func.func @transform_5(%arg0: i32) -> (i32, i32) {
    %c0_i32 = arith.constant 0 : i32
    %c0_i32_0 = arith.constant 0 : i32
    %c0_i32_1 = arith.constant 0 : i32
    return %c0_i32, %c0_i32_0 : i32, i32
  }
  func.func @transform_6(%arg0: i32) -> (i32, i32) {
    %c0_i32 = arith.constant 0 : i32
    %c0_i32_0 = arith.constant 0 : i32
    %c0_i32_1 = arith.constant 0 : i32
    return %c0_i32, %c0_i32_0 : i32, i32
  }
  func.func @transform_7(%arg0: i32) -> (i32, i32) {
    %c0_i32 = arith.constant 0 : i32
    %c0_i32_0 = arith.constant 0 : i32
    %c0_i32_1 = arith.constant 0 : i32
    return %c0_i32, %c0_i32_0 : i32, i32
  }
  func.func @transform_8(%arg0: i32) -> (i32, i32) {
    %c0_i32 = arith.constant 0 : i32
    %c0_i32_0 = arith.constant 0 : i32
    %c0_i32_1 = arith.constant 0 : i32
    return %c0_i32, %c0_i32_0 : i32, i32
  }
  func.func @transform_9(%arg0: i32) -> (i32, i32) {
    %c0_i32 = arith.constant 0 : i32
    %c0_i32_0 = arith.constant 0 : i32
    %c0_i32_1 = arith.constant 0 : i32
    return %c0_i32, %c0_i32_0 : i32, i32
  }
  func.func @transform_10(%arg0: i32) -> (i32, i32, i32) {
    %c0_i32 = arith.constant 0 : i32
    %c0_i32_0 = arith.constant 0 : i32
    %c0_i32_1 = arith.constant 0 : i32
    return %arg0, %c0_i32, %c0_i32_0 : i32, i32, i32
  }
  func.func @transform_11(%arg0: i32) -> (i32, i32, i32) {
    %c0_i32 = arith.constant 0 : i32
    %c0_i32_0 = arith.constant 0 : i32
    %c0_i32_1 = arith.constant 0 : i32
    return %arg0, %c0_i32, %c0_i32_0 : i32, i32, i32
  }
  func.func @transform_12(%arg0: i32) -> (i32, i32, i32) {
    %c0_i32 = arith.constant 0 : i32
    %c0_i32_0 = arith.constant 0 : i32
    %c0_i32_1 = arith.constant 0 : i32
    return %arg0, %c0_i32, %c0_i32_0 : i32, i32, i32
  }
}

module attributes {stable_mosaic.version = 11 : i64} {
  func.func @_doc1_kernel(%arg0: i32, %arg1: memref<3x16x16xf32, #tpu.memory_space<vmem>>, %arg2: memref<3x16x16xf32, #tpu.memory_space<vmem>>, %arg3: memref<16x32xbf16, #tpu.memory_space<vmem>>, %arg4: memref<32x96xbf16, #tpu.memory_space<vmem>>, %arg5: memref<32x96xbf16, #tpu.memory_space<vmem>>, %arg6: memref<1x96xf32, #tpu.memory_space<vmem>>, %arg7: memref<32x32xbf16, #tpu.memory_space<vmem>>, %arg8: memref<1x32xf32, #tpu.memory_space<vmem>>, %arg9: memref<12xf32, #tpu.memory_space<smem>>, %arg10: memref<3x16x32xf32, #tpu.memory_space<vmem>>, %arg11: memref<3x1x16xf32, #tpu.memory_space<vmem>>) attributes {dimension_semantics = [#tpu.dimension_semantics<parallel>], iteration_bounds = array<i64: 2>, scalar_prefetch = 0 : i64, scratch_operands = 0 : i64, tpu.core_type = #tpu.core_type<tc>, window_params = [{transform_indices = @transform_0, window_bounds = array<i64: 3, 16, 16>}, {transform_indices = @transform_1, window_bounds = array<i64: 3, 16, 16>}, {pipeline_mode = #tpu.pipeline_mode<synchronous>, transform_indices = @transform_2, window_bounds = array<i64: 16, 32>}, {pipeline_mode = #tpu.pipeline_mode<synchronous>, transform_indices = @transform_3, window_bounds = array<i64: 32, 96>}, {pipeline_mode = #tpu.pipeline_mode<synchronous>, transform_indices = @transform_4, window_bounds = array<i64: 32, 96>}, {pipeline_mode = #tpu.pipeline_mode<synchronous>, transform_indices = @transform_5, window_bounds = array<i64: 1, 96>}, {pipeline_mode = #tpu.pipeline_mode<synchronous>, transform_indices = @transform_6, window_bounds = array<i64: 32, 32>}, {pipeline_mode = #tpu.pipeline_mode<synchronous>, transform_indices = @transform_7, window_bounds = array<i64: 1, 32>}, {transform_indices = @transform_8, window_bounds = array<i64: 12>}, {transform_indices = @transform_9, window_bounds = array<i64: 3, 16, 32>}, {transform_indices = @transform_10, window_bounds = array<i64: 3, 1, 16>}]} {
    %c0 = arith.constant 0 : index
    %c0_0 = arith.constant 0 : index
    %c0_1 = arith.constant 0 : index
    %0 = vector.load %arg1[%c0, %c0_0, %c0_1] : memref<3x16x16xf32, #tpu.memory_space<vmem>>, vector<3x16x16xf32>
    %c0_2 = arith.constant 0 : index
    %c0_3 = arith.constant 0 : index
    %c0_4 = arith.constant 0 : index
    %1 = vector.load %arg2[%c0_2, %c0_3, %c0_4] : memref<3x16x16xf32, #tpu.memory_space<vmem>>, vector<3x16x16xf32>
    %2 = vector.shape_cast %1 : vector<3x16x16xf32> to vector<48x16xf32>
    %3 = arith.truncf %2 : vector<48x16xf32> to vector<48x16xbf16>
    %c0_5 = arith.constant 0 : index
    %c0_6 = arith.constant 0 : index
    %4 = vector.load %arg3[%c0_5, %c0_6] : memref<16x32xbf16, #tpu.memory_space<vmem>>, vector<16x32xbf16>
    %cst = arith.constant dense<0.000000e+00> : vector<48x32xf32>
    %5 = tpu.matmul %3, %4, %cst {dimension_numbers = #tpu.dot_dimension_numbers<[1], [0], [0], [1], [0, 0, 1, 1], [], []>} : vector<48x16xbf16>, vector<16x32xbf16>, vector<48x32xf32> -> vector<48x32xf32>
    %6 = vector.shape_cast %5 : vector<48x32xf32> to vector<3x16x32xf32>
    %7 = arith.truncf %0 : vector<3x16x16xf32> to vector<3x16x16xbf16>
    %8 = arith.truncf %6 : vector<3x16x32xf32> to vector<3x16x32xbf16>
    "tpu.trace_start"() <{level = 10 : i32, message = "bij,bjd->bid"}> : () -> ()
    %cst_7 = arith.constant dense<0.000000e+00> : vector<3x16x32xf32>
    %9 = tpu.matmul %7, %8, %cst_7 {dimension_numbers = #tpu.dot_dimension_numbers<[2], [1], [1], [2], [0, 0, 0, 1, 1, 2], [0], [0]>} : vector<3x16x16xbf16>, vector<3x16x32xbf16>, vector<3x16x32xf32> -> vector<3x16x32xf32>
    "tpu.trace_stop"() : () -> ()
    %10 = vector.shape_cast %9 : vector<3x16x32xf32> to vector<48x32xf32>
    %11 = arith.truncf %10 : vector<48x32xf32> to vector<48x32xbf16>
    %c0_8 = arith.constant 0 : index
    %c0_9 = arith.constant 0 : index
    %12 = vector.load %arg4[%c0_8, %c0_9] : memref<32x96xbf16, #tpu.memory_space<vmem>>, vector<32x96xbf16>
    %cst_10 = arith.constant dense<0.000000e+00> : vector<48x96xf32>
    %13 = tpu.matmul %11, %12, %cst_10 {dimension_numbers = #tpu.dot_dimension_numbers<[1], [0], [0], [1], [0, 0, 1, 1], [], []>} : vector<48x32xbf16>, vector<32x96xbf16>, vector<48x96xf32> -> vector<48x96xf32>
    %14 = arith.truncf %5 : vector<48x32xf32> to vector<48x32xbf16>
    %c0_11 = arith.constant 0 : index
    %c0_12 = arith.constant 0 : index
    %15 = vector.load %arg5[%c0_11, %c0_12] : memref<32x96xbf16, #tpu.memory_space<vmem>>, vector<32x96xbf16>
    %cst_13 = arith.constant dense<0.000000e+00> : vector<48x96xf32>
    %16 = tpu.matmul %14, %15, %cst_13 {dimension_numbers = #tpu.dot_dimension_numbers<[1], [0], [0], [1], [0, 0, 1, 1], [], []>} : vector<48x32xbf16>, vector<32x96xbf16>, vector<48x96xf32> -> vector<48x96xf32>
    %17 = arith.addf %13, %16 : vector<48x96xf32>
    %c0_14 = arith.constant 0 : index
    %c0_15 = arith.constant 0 : index
    %18 = vector.load %arg6[%c0_14, %c0_15] : memref<1x96xf32, #tpu.memory_space<vmem>>, vector<1x96xf32>
    %19 = vector.broadcast %18 : vector<1x96xf32> to vector<48x96xf32>
    %20 = arith.addf %17, %19 : vector<48x96xf32>
    %21 = vector.extract_strided_slice %20 {offsets = [0, 0], sizes = [48, 32], strides = [1, 1]} : vector<48x96xf32> to vector<48x32xf32>
    %22 = arith.negf %21 : vector<48x32xf32>
    %23 = math.exp %22 : vector<48x32xf32>
    %cst_16 = arith.constant 1.000000e+00 : f32
    %24 = vector.broadcast %cst_16 : f32 to vector<48x32xf32>
    %25 = arith.addf %24, %23 : vector<48x32xf32>
    %26 = arith.divf %24, %25 : vector<48x32xf32>
    %27 = vector.extract_strided_slice %20 {offsets = [0, 32], sizes = [48, 32], strides = [1, 1]} : vector<48x96xf32> to vector<48x32xf32>
    %28 = arith.negf %27 : vector<48x32xf32>
    %29 = math.exp %28 : vector<48x32xf32>
    %cst_17 = arith.constant 1.000000e+00 : f32
    %30 = vector.broadcast %cst_17 : f32 to vector<48x32xf32>
    %31 = arith.addf %30, %29 : vector<48x32xf32>
    %32 = arith.divf %30, %31 : vector<48x32xf32>
    %33 = vector.extract_strided_slice %20 {offsets = [0, 64], sizes = [48, 32], strides = [1, 1]} : vector<48x96xf32> to vector<48x32xf32>
    %34 = arith.mulf %32, %5 : vector<48x32xf32>
    %35 = arith.truncf %34 : vector<48x32xf32> to vector<48x32xbf16>
    %c0_18 = arith.constant 0 : index
    %c0_19 = arith.constant 0 : index
    %36 = vector.load %arg7[%c0_18, %c0_19] : memref<32x32xbf16, #tpu.memory_space<vmem>>, vector<32x32xbf16>
    %cst_20 = arith.constant dense<0.000000e+00> : vector<48x32xf32>
    %37 = tpu.matmul %35, %36, %cst_20 {dimension_numbers = #tpu.dot_dimension_numbers<[1], [0], [0], [1], [0, 0, 1, 1], [], []>} : vector<48x32xbf16>, vector<32x32xbf16>, vector<48x32xf32> -> vector<48x32xf32>
    %38 = arith.addf %33, %37 : vector<48x32xf32>
    %39 = math.tanh %38 : vector<48x32xf32>
    %40 = arith.mulf %39, %26 : vector<48x32xf32>
    %cst_21 = arith.constant 1.000000e+00 : f32
    %41 = vector.broadcast %cst_21 : f32 to vector<48x32xf32>
    %42 = arith.subf %41, %26 : vector<48x32xf32>
    %43 = arith.mulf %5, %42 : vector<48x32xf32>
    %44 = arith.addf %40, %43 : vector<48x32xf32>
    %45 = vector.shape_cast %44 : vector<48x32xf32> to vector<3x16x32xf32>
    %c0_22 = arith.constant 0 : index
    %c0_23 = arith.constant 0 : index
    %c0_24 = arith.constant 0 : index
    %46 = vector.load %arg10[%c0_22, %c0_23, %c0_24] : memref<3x16x32xf32, #tpu.memory_space<vmem>>, vector<3x16x32xf32>
    tpu.vector_store %arg10[%c0_22, %c0_23, %c0_24], %45 {strides = array<i32>} : memref<3x16x32xf32, #tpu.memory_space<vmem>>, vector<3x16x32xf32>,
    %c0_25 = arith.constant 0 : index
    %c0_26 = arith.constant 0 : index
    %47 = vector.load %arg8[%c0_25, %c0_26] : memref<1x32xf32, #tpu.memory_space<vmem>>, vector<1x32xf32>
    %48 = vector.shape_cast %47 : vector<1x32xf32> to vector<1x1x32xf32>
    %49 = vector.broadcast %48 : vector<1x1x32xf32> to vector<3x16x32xf32>
    %50 = arith.mulf %45, %49 : vector<3x16x32xf32>
    %cst_27 = arith.constant dense<0.000000e+00> : vector<3x16xf32>
    %51 = vector.multi_reduction <add>, %50, %cst_27 [2] : vector<3x16x32xf32> to vector<3x16xf32>
    %52 = vector.shape_cast %51 : vector<3x16xf32> to vector<3x1x16xf32>
    %53 = vector.broadcast %52 : vector<3x1x16xf32> to vector<3x16x16xf32>
    %54 = arith.mulf %0, %53 : vector<3x16x16xf32>
    %cst_28 = arith.constant dense<0.000000e+00> : vector<3x16xf32>
    %55 = vector.multi_reduction <add>, %54, %cst_28 [2] : vector<3x16x16xf32> to vector<3x16xf32>
    %c0_29 = arith.constant 0 : index
    %56 = memref.load %arg9[%c0_29] : memref<12xf32, #tpu.memory_space<smem>>
    %57 = vector.broadcast %56 : f32 to vector<3x16xf32>
    %58 = arith.mulf %55, %57 : vector<3x16xf32>
    %c1 = arith.constant 1 : index
    %59 = memref.load %arg9[%c1] : memref<12xf32, #tpu.memory_space<smem>>
    %60 = vector.broadcast %59 : f32 to vector<3x16xf32>
    %61 = arith.addf %58, %60 : vector<3x16xf32>
    %c2 = arith.constant 2 : index
    %62 = memref.load %arg9[%c2] : memref<12xf32, #tpu.memory_space<smem>>
    %63 = vector.broadcast %62 : f32 to vector<3x16xf32>
    %64 = arith.mulf %51, %63 : vector<3x16xf32>
    %65 = arith.addf %61, %64 : vector<3x16xf32>
    %c3 = arith.constant 3 : index
    %66 = memref.load %arg9[%c3] : memref<12xf32, #tpu.memory_space<smem>>
    %67 = vector.broadcast %66 : f32 to vector<3x16xf32>
    %68 = arith.addf %65, %67 : vector<3x16xf32>
    %69 = arith.negf %68 : vector<3x16xf32>
    %70 = math.exp %69 : vector<3x16xf32>
    %cst_30 = arith.constant 1.000000e+00 : f32
    %71 = vector.broadcast %cst_30 : f32 to vector<3x16xf32>
    %72 = arith.addf %71, %70 : vector<3x16xf32>
    %73 = arith.divf %71, %72 : vector<3x16xf32>
    %c4 = arith.constant 4 : index
    %74 = memref.load %arg9[%c4] : memref<12xf32, #tpu.memory_space<smem>>
    %75 = vector.broadcast %74 : f32 to vector<3x16xf32>
    %76 = arith.mulf %55, %75 : vector<3x16xf32>
    %c5 = arith.constant 5 : index
    %77 = memref.load %arg9[%c5] : memref<12xf32, #tpu.memory_space<smem>>
    %78 = vector.broadcast %77 : f32 to vector<3x16xf32>
    %79 = arith.addf %76, %78 : vector<3x16xf32>
    %c6 = arith.constant 6 : index
    %80 = memref.load %arg9[%c6] : memref<12xf32, #tpu.memory_space<smem>>
    %81 = vector.broadcast %80 : f32 to vector<3x16xf32>
    %82 = arith.mulf %51, %81 : vector<3x16xf32>
    %83 = arith.addf %79, %82 : vector<3x16xf32>
    %c7 = arith.constant 7 : index
    %84 = memref.load %arg9[%c7] : memref<12xf32, #tpu.memory_space<smem>>
    %85 = vector.broadcast %84 : f32 to vector<3x16xf32>
    %86 = arith.addf %83, %85 : vector<3x16xf32>
    %87 = arith.negf %86 : vector<3x16xf32>
    %88 = math.exp %87 : vector<3x16xf32>
    %cst_31 = arith.constant 1.000000e+00 : f32
    %89 = vector.broadcast %cst_31 : f32 to vector<3x16xf32>
    %90 = arith.addf %89, %88 : vector<3x16xf32>
    %91 = arith.divf %89, %90 : vector<3x16xf32>
    %c8 = arith.constant 8 : index
    %92 = memref.load %arg9[%c8] : memref<12xf32, #tpu.memory_space<smem>>
    %93 = vector.broadcast %92 : f32 to vector<3x16xf32>
    %94 = arith.mulf %55, %93 : vector<3x16xf32>
    %c9 = arith.constant 9 : index
    %95 = memref.load %arg9[%c9] : memref<12xf32, #tpu.memory_space<smem>>
    %96 = vector.broadcast %95 : f32 to vector<3x16xf32>
    %97 = arith.addf %94, %96 : vector<3x16xf32>
    %98 = arith.mulf %91, %51 : vector<3x16xf32>
    %c10 = arith.constant 10 : index
    %99 = memref.load %arg9[%c10] : memref<12xf32, #tpu.memory_space<smem>>
    %100 = vector.broadcast %99 : f32 to vector<3x16xf32>
    %101 = arith.mulf %98, %100 : vector<3x16xf32>
    %102 = arith.addf %97, %101 : vector<3x16xf32>
    %c11 = arith.constant 11 : index
    %103 = memref.load %arg9[%c11] : memref<12xf32, #tpu.memory_space<smem>>
    %104 = vector.broadcast %103 : f32 to vector<3x16xf32>
    %105 = arith.addf %102, %104 : vector<3x16xf32>
    %106 = math.tanh %105 : vector<3x16xf32>
    %107 = arith.mulf %106, %73 : vector<3x16xf32>
    %cst_32 = arith.constant 1.000000e+00 : f32
    %108 = vector.broadcast %cst_32 : f32 to vector<3x16xf32>
    %109 = arith.subf %108, %73 : vector<3x16xf32>
    %110 = arith.mulf %51, %109 : vector<3x16xf32>
    %111 = arith.addf %107, %110 : vector<3x16xf32>
    %112 = vector.extract_strided_slice %111 {offsets = [0, 0], sizes = [1, 16], strides = [1, 1]} : vector<3x16xf32> to vector<1x16xf32>
    %c0_33 = arith.constant 0 : index
    %c0_34 = arith.constant 0 : index
    %c0_35 = arith.constant 0 : index
    %113 = vector.load %arg11[%c0_33, %c0_34, %c0_35] : memref<3x1x16xf32, #tpu.memory_space<vmem>>, vector<1x1x16xf32>
    %114 = vector.shape_cast %113 : vector<1x1x16xf32> to vector<1x16xf32>
    %115 = vector.shape_cast %112 : vector<1x16xf32> to vector<1x1x16xf32>
    tpu.vector_store %arg11[%c0_33, %c0_34, %c0_35], %115 {strides = array<i32>} : memref<3x1x16xf32, #tpu.memory_space<vmem>>, vector<1x1x16xf32>,
    %116 = vector.extract_strided_slice %111 {offsets = [1, 0], sizes = [1, 16], strides = [1, 1]} : vector<3x16xf32> to vector<1x16xf32>
    %c1_36 = arith.constant 1 : index
    %c0_37 = arith.constant 0 : index
    %c0_38 = arith.constant 0 : index
    %117 = vector.load %arg11[%c1_36, %c0_37, %c0_38] : memref<3x1x16xf32, #tpu.memory_space<vmem>>, vector<1x1x16xf32>
    %118 = vector.shape_cast %117 : vector<1x1x16xf32> to vector<1x16xf32>
    %119 = vector.shape_cast %116 : vector<1x16xf32> to vector<1x1x16xf32>
    tpu.vector_store %arg11[%c1_36, %c0_37, %c0_38], %119 {strides = array<i32>} : memref<3x1x16xf32, #tpu.memory_space<vmem>>, vector<1x1x16xf32>,
    %120 = vector.extract_strided_slice %111 {offsets = [2, 0], sizes = [1, 16], strides = [1, 1]} : vector<3x16xf32> to vector<1x16xf32>
    %c2_39 = arith.constant 2 : index
    %c0_40 = arith.constant 0 : index
    %c0_41 = arith.constant 0 : index
    %121 = vector.load %arg11[%c2_39, %c0_40, %c0_41] : memref<3x1x16xf32, #tpu.memory_space<vmem>>, vector<1x1x16xf32>
    %122 = vector.shape_cast %121 : vector<1x1x16xf32> to vector<1x16xf32>
    %123 = vector.shape_cast %120 : vector<1x16xf32> to vector<1x1x16xf32>
    tpu.vector_store %arg11[%c2_39, %c0_40, %c0_41], %123 {strides = array<i32>} : memref<3x1x16xf32, #tpu.memory_space<vmem>>, vector<1x1x16xf32>,
    return
  }
  func.func @transform_0(%arg0: i32) -> (i32, i32, i32) {
    %c0_i32 = arith.constant 0 : i32
    %c0_i32_0 = arith.constant 0 : i32
    %c0_i32_1 = arith.constant 0 : i32
    return %arg0, %c0_i32, %c0_i32_0 : i32, i32, i32
  }
  func.func @transform_1(%arg0: i32) -> (i32, i32, i32) {
    %c0_i32 = arith.constant 0 : i32
    %c0_i32_0 = arith.constant 0 : i32
    %c0_i32_1 = arith.constant 0 : i32
    return %arg0, %c0_i32, %c0_i32_0 : i32, i32, i32
  }
  func.func @transform_2(%arg0: i32) -> (i32, i32) {
    %c0_i32 = arith.constant 0 : i32
    %c0_i32_0 = arith.constant 0 : i32
    %c0_i32_1 = arith.constant 0 : i32
    return %c0_i32, %c0_i32_0 : i32, i32
  }
  func.func @transform_3(%arg0: i32) -> (i32, i32) {
    %c0_i32 = arith.constant 0 : i32
    %c0_i32_0 = arith.constant 0 : i32
    %c0_i32_1 = arith.constant 0 : i32
    return %c0_i32, %c0_i32_0 : i32, i32
  }
  func.func @transform_4(%arg0: i32) -> (i32, i32) {
    %c0_i32 = arith.constant 0 : i32
    %c0_i32_0 = arith.constant 0 : i32
    %c0_i32_1 = arith.constant 0 : i32
    return %c0_i32, %c0_i32_0 : i32, i32
  }
  func.func @transform_5(%arg0: i32) -> (i32, i32) {
    %c0_i32 = arith.constant 0 : i32
    %c0_i32_0 = arith.constant 0 : i32
    %c0_i32_1 = arith.constant 0 : i32
    return %c0_i32, %c0_i32_0 : i32, i32
  }
  func.func @transform_6(%arg0: i32) -> (i32, i32) {
    %c0_i32 = arith.constant 0 : i32
    %c0_i32_0 = arith.constant 0 : i32
    %c0_i32_1 = arith.constant 0 : i32
    return %c0_i32, %c0_i32_0 : i32, i32
  }
  func.func @transform_7(%arg0: i32) -> (i32, i32) {
    %c0_i32 = arith.constant 0 : i32
    %c0_i32_0 = arith.constant 0 : i32
    %c0_i32_1 = arith.constant 0 : i32
    return %c0_i32, %c0_i32_0 : i32, i32
  }
  func.func @transform_8(%arg0: i32) -> i32 {
    %c0_i32 = arith.constant 0 : i32
    %c0_i32_0 = arith.constant 0 : i32
    return %c0_i32 : i32
  }
  func.func @transform_9(%arg0: i32) -> (i32, i32, i32) {
    %c0_i32 = arith.constant 0 : i32
    %c0_i32_0 = arith.constant 0 : i32
    %c0_i32_1 = arith.constant 0 : i32
    return %arg0, %c0_i32, %c0_i32_0 : i32, i32, i32
  }
  func.func @transform_10(%arg0: i32) -> (i32, i32, i32) {
    %c0_i32 = arith.constant 0 : i32
    %c0_i32_0 = arith.constant 0 : i32
    %c0_i32_1 = arith.constant 0 : i32
    return %arg0, %c0_i32, %c0_i32_0 : i32, i32, i32
  }
}

module attributes {stable_mosaic.version = 11 : i64} {
  func.func @_doc2_kernel(%arg0: i32, %arg1: memref<3x16x16xf32, #tpu.memory_space<vmem>>, %arg2: memref<3x16x32xf32, #tpu.memory_space<vmem>>, %arg3: memref<3x16x1xf32, #tpu.memory_space<vmem>>, %arg4: memref<3x1x16xf32, #tpu.memory_space<vmem>>, %arg5: memref<32x32xbf16, #tpu.memory_space<vmem>>, %arg6: memref<32x96xbf16, #tpu.memory_space<vmem>>, %arg7: memref<32x96xbf16, #tpu.memory_space<vmem>>, %arg8: memref<1x96xf32, #tpu.memory_space<vmem>>, %arg9: memref<32x32xbf16, #tpu.memory_space<vmem>>, %arg10: memref<32x16xbf16, #tpu.memory_space<vmem>>, %arg11: memref<16x2xbf16, #tpu.memory_space<vmem>>, %arg12: memref<3x2x32xf32, #tpu.memory_space<vmem>>) attributes {dimension_semantics = [#tpu.dimension_semantics<parallel>], iteration_bounds = array<i64: 2>, scalar_prefetch = 0 : i64, scratch_operands = 0 : i64, tpu.core_type = #tpu.core_type<tc>, window_params = [{transform_indices = @transform_0, window_bounds = array<i64: 3, 16, 16>}, {transform_indices = @transform_1, window_bounds = array<i64: 3, 16, 32>}, {transform_indices = @transform_2, window_bounds = array<i64: 3, 16, 1>}, {transform_indices = @transform_3, window_bounds = array<i64: 3, 1, 16>}, {pipeline_mode = #tpu.pipeline_mode<synchronous>, transform_indices = @transform_4, window_bounds = array<i64: 32, 32>}, {pipeline_mode = #tpu.pipeline_mode<synchronous>, transform_indices = @transform_5, window_bounds = array<i64: 32, 96>}, {pipeline_mode = #tpu.pipeline_mode<synchronous>, transform_indices = @transform_6, window_bounds = array<i64: 32, 96>}, {pipeline_mode = #tpu.pipeline_mode<synchronous>, transform_indices = @transform_7, window_bounds = array<i64: 1, 96>}, {pipeline_mode = #tpu.pipeline_mode<synchronous>, transform_indices = @transform_8, window_bounds = array<i64: 32, 32>}, {pipeline_mode = #tpu.pipeline_mode<synchronous>, transform_indices = @transform_9, window_bounds = array<i64: 32, 16>}, {pipeline_mode = #tpu.pipeline_mode<synchronous>, transform_indices = @transform_10, window_bounds = array<i64: 16, 2>}, {transform_indices = @transform_11, window_bounds = array<i64: 3, 2, 32>}]} {
    %c0 = arith.constant 0 : index
    %c0_0 = arith.constant 0 : index
    %c0_1 = arith.constant 0 : index
    %0 = vector.load %arg1[%c0, %c0_0, %c0_1] : memref<3x16x16xf32, #tpu.memory_space<vmem>>, vector<3x16x16xf32>
    %c0_2 = arith.constant 0 : index
    %c0_3 = arith.constant 0 : index
    %c0_4 = arith.constant 0 : index
    %1 = vector.load %arg2[%c0_2, %c0_3, %c0_4] : memref<3x16x32xf32, #tpu.memory_space<vmem>>, vector<3x16x32xf32>
    %2 = vector.shape_cast %1 : vector<3x16x32xf32> to vector<48x32xf32>
    %3 = arith.truncf %2 : vector<48x32xf32> to vector<48x32xbf16>
    %c0_5 = arith.constant 0 : index
    %c0_6 = arith.constant 0 : index
    %4 = vector.load %arg5[%c0_5, %c0_6] : memref<32x32xbf16, #tpu.memory_space<vmem>>, vector<32x32xbf16>
    %cst = arith.constant dense<0.000000e+00> : vector<48x32xf32>
    %5 = tpu.matmul %3, %4, %cst {dimension_numbers = #tpu.dot_dimension_numbers<[1], [0], [0], [1], [0, 0, 1, 1], [], []>} : vector<48x32xbf16>, vector<32x32xbf16>, vector<48x32xf32> -> vector<48x32xf32>
    %6 = vector.shape_cast %5 : vector<48x32xf32> to vector<3x16x32xf32>
    %7 = arith.truncf %0 : vector<3x16x16xf32> to vector<3x16x16xbf16>
    %8 = arith.truncf %6 : vector<3x16x32xf32> to vector<3x16x32xbf16>
    "tpu.trace_start"() <{level = 10 : i32, message = "bij,bjd->bid"}> : () -> ()
    %cst_7 = arith.constant dense<0.000000e+00> : vector<3x16x32xf32>
    %9 = tpu.matmul %7, %8, %cst_7 {dimension_numbers = #tpu.dot_dimension_numbers<[2], [1], [1], [2], [0, 0, 0, 1, 1, 2], [0], [0]>} : vector<3x16x16xbf16>, vector<3x16x32xbf16>, vector<3x16x32xf32> -> vector<3x16x32xf32>
    "tpu.trace_stop"() : () -> ()
    %10 = vector.shape_cast %9 : vector<3x16x32xf32> to vector<48x32xf32>
    %11 = arith.truncf %10 : vector<48x32xf32> to vector<48x32xbf16>
    %c0_8 = arith.constant 0 : index
    %c0_9 = arith.constant 0 : index
    %12 = vector.load %arg6[%c0_8, %c0_9] : memref<32x96xbf16, #tpu.memory_space<vmem>>, vector<32x96xbf16>
    %cst_10 = arith.constant dense<0.000000e+00> : vector<48x96xf32>
    %13 = tpu.matmul %11, %12, %cst_10 {dimension_numbers = #tpu.dot_dimension_numbers<[1], [0], [0], [1], [0, 0, 1, 1], [], []>} : vector<48x32xbf16>, vector<32x96xbf16>, vector<48x96xf32> -> vector<48x96xf32>
    %14 = arith.truncf %5 : vector<48x32xf32> to vector<48x32xbf16>
    %c0_11 = arith.constant 0 : index
    %c0_12 = arith.constant 0 : index
    %15 = vector.load %arg7[%c0_11, %c0_12] : memref<32x96xbf16, #tpu.memory_space<vmem>>, vector<32x96xbf16>
    %cst_13 = arith.constant dense<0.000000e+00> : vector<48x96xf32>
    %16 = tpu.matmul %14, %15, %cst_13 {dimension_numbers = #tpu.dot_dimension_numbers<[1], [0], [0], [1], [0, 0, 1, 1], [], []>} : vector<48x32xbf16>, vector<32x96xbf16>, vector<48x96xf32> -> vector<48x96xf32>
    %17 = arith.addf %13, %16 : vector<48x96xf32>
    %c0_14 = arith.constant 0 : index
    %c0_15 = arith.constant 0 : index
    %18 = vector.load %arg8[%c0_14, %c0_15] : memref<1x96xf32, #tpu.memory_space<vmem>>, vector<1x96xf32>
    %19 = vector.broadcast %18 : vector<1x96xf32> to vector<48x96xf32>
    %20 = arith.addf %17, %19 : vector<48x96xf32>
    %21 = vector.extract_strided_slice %20 {offsets = [0, 0], sizes = [48, 32], strides = [1, 1]} : vector<48x96xf32> to vector<48x32xf32>
    %22 = arith.negf %21 : vector<48x32xf32>
    %23 = math.exp %22 : vector<48x32xf32>
    %cst_16 = arith.constant 1.000000e+00 : f32
    %24 = vector.broadcast %cst_16 : f32 to vector<48x32xf32>
    %25 = arith.addf %24, %23 : vector<48x32xf32>
    %26 = arith.divf %24, %25 : vector<48x32xf32>
    %27 = vector.extract_strided_slice %20 {offsets = [0, 32], sizes = [48, 32], strides = [1, 1]} : vector<48x96xf32> to vector<48x32xf32>
    %28 = arith.negf %27 : vector<48x32xf32>
    %29 = math.exp %28 : vector<48x32xf32>
    %cst_17 = arith.constant 1.000000e+00 : f32
    %30 = vector.broadcast %cst_17 : f32 to vector<48x32xf32>
    %31 = arith.addf %30, %29 : vector<48x32xf32>
    %32 = arith.divf %30, %31 : vector<48x32xf32>
    %33 = vector.extract_strided_slice %20 {offsets = [0, 64], sizes = [48, 32], strides = [1, 1]} : vector<48x96xf32> to vector<48x32xf32>
    %34 = arith.mulf %32, %5 : vector<48x32xf32>
    %35 = arith.truncf %34 : vector<48x32xf32> to vector<48x32xbf16>
    %c0_18 = arith.constant 0 : index
    %c0_19 = arith.constant 0 : index
    %36 = vector.load %arg9[%c0_18, %c0_19] : memref<32x32xbf16, #tpu.memory_space<vmem>>, vector<32x32xbf16>
    %cst_20 = arith.constant dense<0.000000e+00> : vector<48x32xf32>
    %37 = tpu.matmul %35, %36, %cst_20 {dimension_numbers = #tpu.dot_dimension_numbers<[1], [0], [0], [1], [0, 0, 1, 1], [], []>} : vector<48x32xbf16>, vector<32x32xbf16>, vector<48x32xf32> -> vector<48x32xf32>
    %38 = arith.addf %33, %37 : vector<48x32xf32>
    %39 = math.tanh %38 : vector<48x32xf32>
    %40 = arith.mulf %39, %26 : vector<48x32xf32>
    %cst_21 = arith.constant 1.000000e+00 : f32
    %41 = vector.broadcast %cst_21 : f32 to vector<48x32xf32>
    %42 = arith.subf %41, %26 : vector<48x32xf32>
    %43 = arith.mulf %5, %42 : vector<48x32xf32>
    %44 = arith.addf %40, %43 : vector<48x32xf32>
    %45 = vector.shape_cast %44 : vector<48x32xf32> to vector<3x16x32xf32>
    %46 = arith.truncf %44 : vector<48x32xf32> to vector<48x32xbf16>
    %c0_22 = arith.constant 0 : index
    %c0_23 = arith.constant 0 : index
    %47 = vector.load %arg10[%c0_22, %c0_23] : memref<32x16xbf16, #tpu.memory_space<vmem>>, vector<32x16xbf16>
    %cst_24 = arith.constant dense<0.000000e+00> : vector<48x16xf32>
    %48 = tpu.matmul %46, %47, %cst_24 {dimension_numbers = #tpu.dot_dimension_numbers<[1], [0], [0], [1], [0, 0, 1, 1], [], []>} : vector<48x32xbf16>, vector<32x16xbf16>, vector<48x16xf32> -> vector<48x16xf32>
    %49 = vector.shape_cast %48 : vector<48x16xf32> to vector<3x16x16xf32>
    %c0_25 = arith.constant 0 : index
    %c0_26 = arith.constant 0 : index
    %c0_27 = arith.constant 0 : index
    %50 = vector.load %arg4[%c0_25, %c0_26, %c0_27] : memref<3x1x16xf32, #tpu.memory_space<vmem>>, vector<3x1x16xf32>
    %51 = vector.broadcast %50 : vector<3x1x16xf32> to vector<3x16x16xf32>
    %52 = arith.addf %49, %51 : vector<3x16x16xf32>
    %53 = math.tanh %52 : vector<3x16x16xf32>
    %54 = vector.shape_cast %53 : vector<3x16x16xf32> to vector<48x16xf32>
    %55 = arith.truncf %54 : vector<48x16xf32> to vector<48x16xbf16>
    %c0_28 = arith.constant 0 : index
    %c0_29 = arith.constant 0 : index
    %56 = vector.load %arg11[%c0_28, %c0_29] : memref<16x2xbf16, #tpu.memory_space<vmem>>, vector<16x2xbf16>
    %cst_30 = arith.constant dense<0.000000e+00> : vector<48x2xf32>
    %57 = tpu.matmul %55, %56, %cst_30 {dimension_numbers = #tpu.dot_dimension_numbers<[1], [0], [0], [1], [0, 0, 1, 1], [], []>} : vector<48x16xbf16>, vector<16x2xbf16>, vector<48x2xf32> -> vector<48x2xf32>
    %58 = vector.shape_cast %57 : vector<48x2xf32> to vector<3x16x2xf32>
    %c0_31 = arith.constant 0 : index
    %c0_32 = arith.constant 0 : index
    %c0_33 = arith.constant 0 : index
    %59 = vector.load %arg3[%c0_31, %c0_32, %c0_33] : memref<3x16x1xf32, #tpu.memory_space<vmem>>, vector<3x16x1xf32>
    %cst_34 = arith.constant 0.000000e+00 : f32
    %60 = vector.broadcast %cst_34 : f32 to vector<3x16x1xf32>
    %61 = arith.cmpf oeq, %59, %60 : vector<3x16x1xf32>
    %cst_35 = arith.constant -1.000000e+30 : f32
    %62 = vector.shape_cast %61 : vector<3x16x1xi1> to vector<3x16x1xi1>
    %63 = vector.broadcast %62 : vector<3x16x1xi1> to vector<3x16x2xi1>
    %64 = vector.broadcast %cst_35 : f32 to vector<3x16x2xf32>
    %65 = arith.select %63, %64, %58 : vector<3x16x2xi1>, vector<3x16x2xf32>
    %cst_36 = arith.constant dense<0xFF800000> : vector<3x2xf32>
    %66 = vector.multi_reduction <maximumf>, %65, %cst_36 [1] : vector<3x16x2xf32> to vector<3x2xf32>
    %67 = vector.shape_cast %66 : vector<3x2xf32> to vector<3x1x2xf32>
    %68 = vector.broadcast %67 : vector<3x1x2xf32> to vector<3x16x2xf32>
    %69 = arith.subf %65, %68 : vector<3x16x2xf32>
    %70 = math.exp %69 : vector<3x16x2xf32>
    %cst_37 = arith.constant dense<0.000000e+00> : vector<3x2xf32>
    %71 = vector.multi_reduction <add>, %70, %cst_37 [1] : vector<3x16x2xf32> to vector<3x2xf32>
    %72 = vector.shape_cast %71 : vector<3x2xf32> to vector<3x1x2xf32>
    %73 = vector.broadcast %72 : vector<3x1x2xf32> to vector<3x16x2xf32>
    %74 = arith.divf %70, %73 : vector<3x16x2xf32>
    %75 = vector.extract_strided_slice %74 {offsets = [0, 0, 0], sizes = [1, 16, 2], strides = [1, 1, 1]} : vector<3x16x2xf32> to vector<1x16x2xf32>
    %76 = vector.shape_cast %75 : vector<1x16x2xf32> to vector<16x2xf32>
    %77 = arith.truncf %76 : vector<16x2xf32> to vector<16x2xbf16>
    %78 = vector.extract_strided_slice %45 {offsets = [0, 0, 0], sizes = [1, 16, 32], strides = [1, 1, 1]} : vector<3x16x32xf32> to vector<1x16x32xf32>
    %79 = vector.shape_cast %78 : vector<1x16x32xf32> to vector<16x32xf32>
    %80 = arith.truncf %79 : vector<16x32xf32> to vector<16x32xbf16>
    %cst_38 = arith.constant dense<0.000000e+00> : vector<2x32xf32>
    %81 = tpu.matmul %77, %80, %cst_38 {dimension_numbers = #tpu.dot_dimension_numbers<[0], [0], [1], [1], [0, 1, 1, 1], [], []>} : vector<16x2xbf16>, vector<16x32xbf16>, vector<2x32xf32> -> vector<2x32xf32>
    %c0_39 = arith.constant 0 : index
    %c0_40 = arith.constant 0 : index
    %c0_41 = arith.constant 0 : index
    %82 = vector.load %arg12[%c0_39, %c0_40, %c0_41] : memref<3x2x32xf32, #tpu.memory_space<vmem>>, vector<1x2x32xf32>
    %83 = vector.shape_cast %82 : vector<1x2x32xf32> to vector<2x32xf32>
    %84 = vector.shape_cast %81 : vector<2x32xf32> to vector<1x2x32xf32>
    tpu.vector_store %arg12[%c0_39, %c0_40, %c0_41], %84 {strides = array<i32>} : memref<3x2x32xf32, #tpu.memory_space<vmem>>, vector<1x2x32xf32>,
    %85 = vector.extract_strided_slice %74 {offsets = [1, 0, 0], sizes = [1, 16, 2], strides = [1, 1, 1]} : vector<3x16x2xf32> to vector<1x16x2xf32>
    %86 = vector.shape_cast %85 : vector<1x16x2xf32> to vector<16x2xf32>
    %87 = arith.truncf %86 : vector<16x2xf32> to vector<16x2xbf16>
    %88 = vector.extract_strided_slice %45 {offsets = [1, 0, 0], sizes = [1, 16, 32], strides = [1, 1, 1]} : vector<3x16x32xf32> to vector<1x16x32xf32>
    %89 = vector.shape_cast %88 : vector<1x16x32xf32> to vector<16x32xf32>
    %90 = arith.truncf %89 : vector<16x32xf32> to vector<16x32xbf16>
    %cst_42 = arith.constant dense<0.000000e+00> : vector<2x32xf32>
    %91 = tpu.matmul %87, %90, %cst_42 {dimension_numbers = #tpu.dot_dimension_numbers<[0], [0], [1], [1], [0, 1, 1, 1], [], []>} : vector<16x2xbf16>, vector<16x32xbf16>, vector<2x32xf32> -> vector<2x32xf32>
    %c1 = arith.constant 1 : index
    %c0_43 = arith.constant 0 : index
    %c0_44 = arith.constant 0 : index
    %92 = vector.load %arg12[%c1, %c0_43, %c0_44] : memref<3x2x32xf32, #tpu.memory_space<vmem>>, vector<1x2x32xf32>
    %93 = vector.shape_cast %92 : vector<1x2x32xf32> to vector<2x32xf32>
    %94 = vector.shape_cast %91 : vector<2x32xf32> to vector<1x2x32xf32>
    tpu.vector_store %arg12[%c1, %c0_43, %c0_44], %94 {strides = array<i32>} : memref<3x2x32xf32, #tpu.memory_space<vmem>>, vector<1x2x32xf32>,
    %95 = vector.extract_strided_slice %74 {offsets = [2, 0, 0], sizes = [1, 16, 2], strides = [1, 1, 1]} : vector<3x16x2xf32> to vector<1x16x2xf32>
    %96 = vector.shape_cast %95 : vector<1x16x2xf32> to vector<16x2xf32>
    %97 = arith.truncf %96 : vector<16x2xf32> to vector<16x2xbf16>
    %98 = vector.extract_strided_slice %45 {offsets = [2, 0, 0], sizes = [1, 16, 32], strides = [1, 1, 1]} : vector<3x16x32xf32> to vector<1x16x32xf32>
    %99 = vector.shape_cast %98 : vector<1x16x32xf32> to vector<16x32xf32>
    %100 = arith.truncf %99 : vector<16x32xf32> to vector<16x32xbf16>
    %cst_45 = arith.constant dense<0.000000e+00> : vector<2x32xf32>
    %101 = tpu.matmul %97, %100, %cst_45 {dimension_numbers = #tpu.dot_dimension_numbers<[0], [0], [1], [1], [0, 1, 1, 1], [], []>} : vector<16x2xbf16>, vector<16x32xbf16>, vector<2x32xf32> -> vector<2x32xf32>
    %c2 = arith.constant 2 : index
    %c0_46 = arith.constant 0 : index
    %c0_47 = arith.constant 0 : index
    %102 = vector.load %arg12[%c2, %c0_46, %c0_47] : memref<3x2x32xf32, #tpu.memory_space<vmem>>, vector<1x2x32xf32>
    %103 = vector.shape_cast %102 : vector<1x2x32xf32> to vector<2x32xf32>
    %104 = vector.shape_cast %101 : vector<2x32xf32> to vector<1x2x32xf32>
    tpu.vector_store %arg12[%c2, %c0_46, %c0_47], %104 {strides = array<i32>} : memref<3x2x32xf32, #tpu.memory_space<vmem>>, vector<1x2x32xf32>,
    return
  }
  func.func @transform_0(%arg0: i32) -> (i32, i32, i32) {
    %c0_i32 = arith.constant 0 : i32
    %c0_i32_0 = arith.constant 0 : i32
    %c0_i32_1 = arith.constant 0 : i32
    return %arg0, %c0_i32, %c0_i32_0 : i32, i32, i32
  }
  func.func @transform_1(%arg0: i32) -> (i32, i32, i32) {
    %c0_i32 = arith.constant 0 : i32
    %c0_i32_0 = arith.constant 0 : i32
    %c0_i32_1 = arith.constant 0 : i32
    return %arg0, %c0_i32, %c0_i32_0 : i32, i32, i32
  }
  func.func @transform_2(%arg0: i32) -> (i32, i32, i32) {
    %c0_i32 = arith.constant 0 : i32
    %c0_i32_0 = arith.constant 0 : i32
    %c0_i32_1 = arith.constant 0 : i32
    return %arg0, %c0_i32, %c0_i32_0 : i32, i32, i32
  }
  func.func @transform_3(%arg0: i32) -> (i32, i32, i32) {
    %c0_i32 = arith.constant 0 : i32
    %c0_i32_0 = arith.constant 0 : i32
    %c0_i32_1 = arith.constant 0 : i32
    return %arg0, %c0_i32, %c0_i32_0 : i32, i32, i32
  }
  func.func @transform_4(%arg0: i32) -> (i32, i32) {
    %c0_i32 = arith.constant 0 : i32
    %c0_i32_0 = arith.constant 0 : i32
    %c0_i32_1 = arith.constant 0 : i32
    return %c0_i32, %c0_i32_0 : i32, i32
  }
  func.func @transform_5(%arg0: i32) -> (i32, i32) {
    %c0_i32 = arith.constant 0 : i32
    %c0_i32_0 = arith.constant 0 : i32
    %c0_i32_1 = arith.constant 0 : i32
    return %c0_i32, %c0_i32_0 : i32, i32
  }
  func.func @transform_6(%arg0: i32) -> (i32, i32) {
    %c0_i32 = arith.constant 0 : i32
    %c0_i32_0 = arith.constant 0 : i32
    %c0_i32_1 = arith.constant 0 : i32
    return %c0_i32, %c0_i32_0 : i32, i32
  }
  func.func @transform_7(%arg0: i32) -> (i32, i32) {
    %c0_i32 = arith.constant 0 : i32
    %c0_i32_0 = arith.constant 0 : i32
    %c0_i32_1 = arith.constant 0 : i32
    return %c0_i32, %c0_i32_0 : i32, i32
  }
  func.func @transform_8(%arg0: i32) -> (i32, i32) {
    %c0_i32 = arith.constant 0 : i32
    %c0_i32_0 = arith.constant 0 : i32
    %c0_i32_1 = arith.constant 0 : i32
    return %c0_i32, %c0_i32_0 : i32, i32
  }
  func.func @transform_9(%arg0: i32) -> (i32, i32) {
    %c0_i32 = arith.constant 0 : i32
    %c0_i32_0 = arith.constant 0 : i32
    %c0_i32_1 = arith.constant 0 : i32
    return %c0_i32, %c0_i32_0 : i32, i32
  }
  func.func @transform_10(%arg0: i32) -> (i32, i32) {
    %c0_i32 = arith.constant 0 : i32
    %c0_i32_0 = arith.constant 0 : i32
    %c0_i32_1 = arith.constant 0 : i32
    return %c0_i32, %c0_i32_0 : i32, i32
  }
  func.func @transform_11(%arg0: i32) -> (i32, i32, i32) {
    %c0_i32 = arith.constant 0 : i32
    %c0_i32_0 = arith.constant 0 : i32
    %c0_i32_1 = arith.constant 0 : i32
    return %arg0, %c0_i32, %c0_i32_0 : i32, i32, i32
  }
}

module attributes {stable_mosaic.version = 11 : i64} {
  func.func @_evd_att_kernel(%arg0: i32, %arg1: memref<1x1x16xf32, #tpu.memory_space<vmem>>, %arg2: memref<1x4x64xf32, #tpu.memory_space<vmem>>, %arg3: memref<1x4x1xf32, #tpu.memory_space<vmem>>, %arg4: memref<64x16xbf16, #tpu.memory_space<vmem>>, %arg5: memref<16x2xbf16, #tpu.memory_space<vmem>>, %arg6: memref<1x2x64xf32, #tpu.memory_space<vmem>>) attributes {dimension_semantics = [#tpu.dimension_semantics<parallel>], iteration_bounds = array<i64: 2>, scalar_prefetch = 0 : i64, scratch_operands = 0 : i64, tpu.core_type = #tpu.core_type<tc>, window_params = [{transform_indices = @transform_0, window_bounds = array<i64: 1, 1, 16>}, {transform_indices = @transform_1, window_bounds = array<i64: 1, 4, 64>}, {transform_indices = @transform_2, window_bounds = array<i64: 1, 4, 1>}, {pipeline_mode = #tpu.pipeline_mode<synchronous>, transform_indices = @transform_3, window_bounds = array<i64: 64, 16>}, {pipeline_mode = #tpu.pipeline_mode<synchronous>, transform_indices = @transform_4, window_bounds = array<i64: 16, 2>}, {transform_indices = @transform_5, window_bounds = array<i64: 1, 2, 64>}]} {
    %c0 = arith.constant 0 : index
    %c0_0 = arith.constant 0 : index
    %c0_1 = arith.constant 0 : index
    %0 = vector.load %arg2[%c0, %c0_0, %c0_1] : memref<1x4x64xf32, #tpu.memory_space<vmem>>, vector<1x4x64xf32>
    %1 = vector.shape_cast %0 : vector<1x4x64xf32> to vector<4x64xf32>
    %c0_2 = arith.constant 0 : index
    %c0_3 = arith.constant 0 : index
    %c0_4 = arith.constant 0 : index
    %2 = vector.load %arg3[%c0_2, %c0_3, %c0_4] : memref<1x4x1xf32, #tpu.memory_space<vmem>>, vector<1x4x1xf32>
    %3 = vector.shape_cast %2 : vector<1x4x1xf32> to vector<4x1xf32>
    %4 = arith.truncf %1 : vector<4x64xf32> to vector<4x64xbf16>
    %c0_5 = arith.constant 0 : index
    %c0_6 = arith.constant 0 : index
    %5 = vector.load %arg4[%c0_5, %c0_6] : memref<64x16xbf16, #tpu.memory_space<vmem>>, vector<64x16xbf16>
    %cst = arith.constant dense<0.000000e+00> : vector<4x16xf32>
    %6 = tpu.matmul %4, %5, %cst {dimension_numbers = #tpu.dot_dimension_numbers<[1], [0], [0], [1], [0, 0, 1, 1], [], []>} : vector<4x64xbf16>, vector<64x16xbf16>, vector<4x16xf32> -> vector<4x16xf32>
    %c0_7 = arith.constant 0 : index
    %c0_8 = arith.constant 0 : index
    %c0_9 = arith.constant 0 : index
    %7 = vector.load %arg1[%c0_7, %c0_8, %c0_9] : memref<1x1x16xf32, #tpu.memory_space<vmem>>, vector<1x1x16xf32>
    %8 = vector.shape_cast %7 : vector<1x1x16xf32> to vector<1x16xf32>
    %9 = vector.broadcast %8 : vector<1x16xf32> to vector<4x16xf32>
    %10 = arith.addf %6, %9 : vector<4x16xf32>
    %11 = math.tanh %10 : vector<4x16xf32>
    %12 = arith.truncf %11 : vector<4x16xf32> to vector<4x16xbf16>
    %c0_10 = arith.constant 0 : index
    %c0_11 = arith.constant 0 : index
    %13 = vector.load %arg5[%c0_10, %c0_11] : memref<16x2xbf16, #tpu.memory_space<vmem>>, vector<16x2xbf16>
    %cst_12 = arith.constant dense<0.000000e+00> : vector<4x2xf32>
    %14 = tpu.matmul %12, %13, %cst_12 {dimension_numbers = #tpu.dot_dimension_numbers<[1], [0], [0], [1], [0, 0, 1, 1], [], []>} : vector<4x16xbf16>, vector<16x2xbf16>, vector<4x2xf32> -> vector<4x2xf32>
    %cst_13 = arith.constant 0.000000e+00 : f32
    %15 = vector.broadcast %cst_13 : f32 to vector<4x1xf32>
    %16 = arith.cmpf oeq, %3, %15 : vector<4x1xf32>
    %cst_14 = arith.constant -1.000000e+30 : f32
    %17 = vector.shape_cast %16 : vector<4x1xi1> to vector<4x1xi1>
    %18 = vector.broadcast %17 : vector<4x1xi1> to vector<4x2xi1>
    %19 = vector.broadcast %cst_14 : f32 to vector<4x2xf32>
    %20 = arith.select %18, %19, %14 : vector<4x2xi1>, vector<4x2xf32>
    %cst_15 = arith.constant dense<0xFF800000> : vector<2xf32>
    %21 = vector.multi_reduction <maximumf>, %20, %cst_15 [0] : vector<4x2xf32> to vector<2xf32>
    %22 = vector.shape_cast %21 : vector<2xf32> to vector<1x2xf32>
    %23 = vector.broadcast %22 : vector<1x2xf32> to vector<4x2xf32>
    %24 = arith.subf %20, %23 : vector<4x2xf32>
    %25 = math.exp %24 : vector<4x2xf32>
    %cst_16 = arith.constant dense<0.000000e+00> : vector<2xf32>
    %26 = vector.multi_reduction <add>, %25, %cst_16 [0] : vector<4x2xf32> to vector<2xf32>
    %27 = vector.shape_cast %26 : vector<2xf32> to vector<1x2xf32>
    %28 = vector.broadcast %27 : vector<1x2xf32> to vector<4x2xf32>
    %29 = arith.divf %25, %28 : vector<4x2xf32>
    %30 = arith.truncf %29 : vector<4x2xf32> to vector<4x2xbf16>
    %31 = arith.truncf %1 : vector<4x64xf32> to vector<4x64xbf16>
    %cst_17 = arith.constant dense<0.000000e+00> : vector<2x64xf32>
    %32 = tpu.matmul %30, %31, %cst_17 {dimension_numbers = #tpu.dot_dimension_numbers<[0], [0], [1], [1], [0, 1, 1, 1], [], []>} : vector<4x2xbf16>, vector<4x64xbf16>, vector<2x64xf32> -> vector<2x64xf32>
    %c0_18 = arith.constant 0 : index
    %c0_19 = arith.constant 0 : index
    %c0_20 = arith.constant 0 : index
    %33 = vector.load %arg6[%c0_18, %c0_19, %c0_20] : memref<1x2x64xf32, #tpu.memory_space<vmem>>, vector<1x2x64xf32>
    %34 = vector.shape_cast %33 : vector<1x2x64xf32> to vector<2x64xf32>
    %35 = vector.shape_cast %32 : vector<2x64xf32> to vector<1x2x64xf32>
    tpu.vector_store %arg6[%c0_18, %c0_19, %c0_20], %35 {strides = array<i32>} : memref<1x2x64xf32, #tpu.memory_space<vmem>>, vector<1x2x64xf32>,
    return
  }
  func.func @transform_0(%arg0: i32) -> (i32, i32, i32) {
    %c0_i32 = arith.constant 0 : i32
    %c0_i32_0 = arith.constant 0 : i32
    %c0_i32_1 = arith.constant 0 : i32
    return %arg0, %c0_i32, %c0_i32_0 : i32, i32, i32
  }
  func.func @transform_1(%arg0: i32) -> (i32, i32, i32) {
    %c0_i32 = arith.constant 0 : i32
    %c0_i32_0 = arith.constant 0 : i32
    %c0_i32_1 = arith.constant 0 : i32
    return %arg0, %c0_i32, %c0_i32_0 : i32, i32, i32
  }
  func.func @transform_2(%arg0: i32) -> (i32, i32, i32) {
    %c0_i32 = arith.constant 0 : i32
    %c0_i32_0 = arith.constant 0 : i32
    %c0_i32_1 = arith.constant 0 : i32
    return %arg0, %c0_i32, %c0_i32_0 : i32, i32, i32
  }
  func.func @transform_3(%arg0: i32) -> (i32, i32) {
    %c0_i32 = arith.constant 0 : i32
    %c0_i32_0 = arith.constant 0 : i32
    %c0_i32_1 = arith.constant 0 : i32
    return %c0_i32, %c0_i32_0 : i32, i32
  }
  func.func @transform_4(%arg0: i32) -> (i32, i32) {
    %c0_i32 = arith.constant 0 : i32
    %c0_i32_0 = arith.constant 0 : i32
    %c0_i32_1 = arith.constant 0 : i32
    return %c0_i32, %c0_i32_0 : i32, i32
  }
  func.func @transform_5(%arg0: i32) -> (i32, i32, i32) {
    %c0_i32 = arith.constant 0 : i32
    %c0_i32_0 = arith.constant 0 : i32
    %c0_i32_1 = arith.constant 0 : i32
    return %arg0, %c0_i32, %c0_i32_0 : i32, i32, i32
  }
}

module attributes {stable_mosaic.version = 11 : i64} {
  func.func @_head_kernel(%arg0: i32, %arg1: memref<2x160xf32, #tpu.memory_space<vmem>>, %arg2: memref<160x32xbf16, #tpu.memory_space<vmem>>, %arg3: memref<1x32xf32, #tpu.memory_space<vmem>>, %arg4: memref<32x2xbf16, #tpu.memory_space<vmem>>, %arg5: memref<1x2xf32, #tpu.memory_space<vmem>>, %arg6: memref<2x32xf32, #tpu.memory_space<vmem>>, %arg7: memref<2x2xf32, #tpu.memory_space<vmem>>) attributes {dimension_semantics = [#tpu.dimension_semantics<arbitrary>], iteration_bounds = array<i64: 1>, scalar_prefetch = 0 : i64, scratch_operands = 0 : i64, tpu.core_type = #tpu.core_type<tc>, window_params = [{pipeline_mode = #tpu.pipeline_mode<synchronous>, transform_indices = @transform_0, window_bounds = array<i64: 2, 160>}, {pipeline_mode = #tpu.pipeline_mode<synchronous>, transform_indices = @transform_1, window_bounds = array<i64: 160, 32>}, {pipeline_mode = #tpu.pipeline_mode<synchronous>, transform_indices = @transform_2, window_bounds = array<i64: 1, 32>}, {pipeline_mode = #tpu.pipeline_mode<synchronous>, transform_indices = @transform_3, window_bounds = array<i64: 32, 2>}, {pipeline_mode = #tpu.pipeline_mode<synchronous>, transform_indices = @transform_4, window_bounds = array<i64: 1, 2>}, {pipeline_mode = #tpu.pipeline_mode<synchronous>, transform_indices = @transform_5, window_bounds = array<i64: 2, 32>}, {pipeline_mode = #tpu.pipeline_mode<synchronous>, transform_indices = @transform_6, window_bounds = array<i64: 2, 2>}]} {
    %c0 = arith.constant 0 : index
    %c0_0 = arith.constant 0 : index
    %0 = vector.load %arg1[%c0, %c0_0] : memref<2x160xf32, #tpu.memory_space<vmem>>, vector<2x160xf32>
    %1 = arith.truncf %0 : vector<2x160xf32> to vector<2x160xbf16>
    %c0_1 = arith.constant 0 : index
    %c0_2 = arith.constant 0 : index
    %2 = vector.load %arg2[%c0_1, %c0_2] : memref<160x32xbf16, #tpu.memory_space<vmem>>, vector<160x32xbf16>
    %cst = arith.constant dense<0.000000e+00> : vector<2x32xf32>
    %3 = tpu.matmul %1, %2, %cst {dimension_numbers = #tpu.dot_dimension_numbers<[1], [0], [0], [1], [0, 0, 1, 1], [], []>} : vector<2x160xbf16>, vector<160x32xbf16>, vector<2x32xf32> -> vector<2x32xf32>
    %c0_3 = arith.constant 0 : index
    %c0_4 = arith.constant 0 : index
    %4 = vector.load %arg3[%c0_3, %c0_4] : memref<1x32xf32, #tpu.memory_space<vmem>>, vector<1x32xf32>
    %5 = vector.broadcast %4 : vector<1x32xf32> to vector<2x32xf32>
    %6 = arith.addf %3, %5 : vector<2x32xf32>
    %c0_5 = arith.constant 0 : index
    %c0_6 = arith.constant 0 : index
    %7 = vector.load %arg6[%c0_5, %c0_6] : memref<2x32xf32, #tpu.memory_space<vmem>>, vector<2x32xf32>
    tpu.vector_store %arg6[%c0_5, %c0_6], %6 {strides = array<i32>} : memref<2x32xf32, #tpu.memory_space<vmem>>, vector<2x32xf32>,
    %cst_7 = arith.constant 0.000000e+00 : f32
    %8 = vector.broadcast %cst_7 : f32 to vector<2x32xf32>
    %9 = arith.maximumf %6, %8 : vector<2x32xf32>
    %10 = arith.truncf %9 : vector<2x32xf32> to vector<2x32xbf16>
    %c0_8 = arith.constant 0 : index
    %c0_9 = arith.constant 0 : index
    %11 = vector.load %arg4[%c0_8, %c0_9] : memref<32x2xbf16, #tpu.memory_space<vmem>>, vector<32x2xbf16>
    %cst_10 = arith.constant dense<0.000000e+00> : vector<2x2xf32>
    %12 = tpu.matmul %10, %11, %cst_10 {dimension_numbers = #tpu.dot_dimension_numbers<[1], [0], [0], [1], [0, 0, 1, 1], [], []>} : vector<2x32xbf16>, vector<32x2xbf16>, vector<2x2xf32> -> vector<2x2xf32>
    %c0_11 = arith.constant 0 : index
    %c0_12 = arith.constant 0 : index
    %13 = vector.load %arg5[%c0_11, %c0_12] : memref<1x2xf32, #tpu.memory_space<vmem>>, vector<1x2xf32>
    %14 = vector.broadcast %13 : vector<1x2xf32> to vector<2x2xf32>
    %15 = arith.addf %12, %14 : vector<2x2xf32>
    %c0_13 = arith.constant 0 : index
    %c0_14 = arith.constant 0 : index
    %16 = vector.load %arg7[%c0_13, %c0_14] : memref<2x2xf32, #tpu.memory_space<vmem>>, vector<2x2xf32>
    tpu.vector_store %arg7[%c0_13, %c0_14], %15 {strides = array<i32>} : memref<2x2xf32, #tpu.memory_space<vmem>>, vector<2x2xf32>,
    return
  }
  func.func @transform_0(%arg0: i32) -> (i32, i32) {
    %c0_i32 = arith.constant 0 : i32
    %c0_i32_0 = arith.constant 0 : i32
    %c0_i32_1 = arith.constant 0 : i32
    return %c0_i32, %c0_i32_0 : i32, i32
  }
  func.func @transform_1(%arg0: i32) -> (i32, i32) {
    %c0_i32 = arith.constant 0 : i32
    %c0_i32_0 = arith.constant 0 : i32
    %c0_i32_1 = arith.constant 0 : i32
    return %c0_i32, %c0_i32_0 : i32, i32
  }
  func.func @transform_2(%arg0: i32) -> (i32, i32) {
    %c0_i32 = arith.constant 0 : i32
    %c0_i32_0 = arith.constant 0 : i32
    %c0_i32_1 = arith.constant 0 : i32
    return %c0_i32, %c0_i32_0 : i32, i32
  }
  func.func @transform_3(%arg0: i32) -> (i32, i32) {
    %c0_i32 = arith.constant 0 : i32
    %c0_i32_0 = arith.constant 0 : i32
    %c0_i32_1 = arith.constant 0 : i32
    return %c0_i32, %c0_i32_0 : i32, i32
  }
  func.func @transform_4(%arg0: i32) -> (i32, i32) {
    %c0_i32 = arith.constant 0 : i32
    %c0_i32_0 = arith.constant 0 : i32
    %c0_i32_1 = arith.constant 0 : i32
    return %c0_i32, %c0_i32_0 : i32, i32
  }
  func.func @transform_5(%arg0: i32) -> (i32, i32) {
    %c0_i32 = arith.constant 0 : i32
    %c0_i32_0 = arith.constant 0 : i32
    %c0_i32_1 = arith.constant 0 : i32
    return %c0_i32, %c0_i32_0 : i32, i32
  }
  func.func @transform_6(%arg0: i32) -> (i32, i32) {
    %c0_i32 = arith.constant 0 : i32
    %c0_i32_0 = arith.constant 0 : i32
    %c0_i32_1 = arith.constant 0 : i32
    return %c0_i32, %c0_i32_0 : i32, i32
  }
}

</mosaic_0001>

<llo_original>
// kernel: _lambda_.5
$region0: #{_lambda_.5}
  #allocation0 [shape = 'u32[]', space=smem, size = 0x4, offset = 0x4, fixed_abs, tag = 'smem constant byte address 0x4 - core index']
  #allocation1 [shape = 'u32[144,128]{1,0:T(1,128)}', space=vmem, size = 0x12000, scoped, tag = 'internal scratch']
  %s0 = inlined_call_operand.vmem [shape: f32[2,8,8], index: 0, kind: input, shape index: {}]
  %s1 = inlined_call_operand.vmem [shape: f32[2,8,16], index: 1, kind: input, shape index: {}]
  %s2 = inlined_call_operand.vmem [shape: f32[2,8,1], index: 2, kind: input, shape index: {}]
  %s3 = inlined_call_operand.vmem [shape: bf16[16,32], index: 3, kind: input, shape index: {}]
  %s4 = inlined_call_operand.vmem [shape: bf16[32,96], index: 4, kind: input, shape index: {}]
  %s5 = inlined_call_operand.vmem [shape: bf16[32,96], index: 5, kind: input, shape index: {}]
  %s6 = inlined_call_operand.vmem [shape: f32[1,96], index: 6, kind: input, shape index: {}]
  %s7 = inlined_call_operand.vmem [shape: bf16[32,32], index: 7, kind: input, shape index: {}]
  %s8 = inlined_call_operand.vmem [shape: bf16[32,16], index: 8, kind: input, shape index: {}]
  %s9 = inlined_call_operand.vmem [shape: bf16[32,16], index: 9, kind: input, shape index: {}]
  %s10 = inlined_call_operand.vmem [shape: f32[2,1,32], index: 10, kind: output, shape index: {0}]
  %s11 = inlined_call_operand.vmem [shape: f32[2,1,16], index: 11, kind: output, shape index: {1}]
  %s12 = inlined_call_operand.vmem [shape: f32[2,1,16], index: 12, kind: output, shape index: {2}]
  %13 = xla_tuple %s10, %s11, %s12
  %s14 = sld [smem:[#allocation0]]
  $region89: #{_lambda_.5} parent=0
    _
  %s16 = ssub.s32 1, %s14
  %s17 = scalar_select 0, %s16, %s14
  loop: start=0, step=1, limit=4
  $region2: #{_lambda_.5} parent=0 // loop_pre_header
    _
  $region3: #{_lambda_.5} parent=0 // loop_header
    %s19 = sphi 0, %s23
    %p20 = scmp.ge.s32.totalorder %s19, 4
    %s29 = sphi 0, %s31
    %s32 = sphi 0, %s29
    %s33 = sphi 0, %s32
    %s49 = sphi 0, %s33
    %s55 = sphi 0, %s57
    %s58 = sphi 0, %s55
    %s59 = sphi 0, %s58
    %s75 = sphi 0, %s59
    %s81 = sphi 0, %s83
    %s84 = sphi 0, %s81
    %s85 = sphi 0, %s84
    %s101 = sphi 0, %s85
    %s105 = sphi 0, %s105
    %s107 = sphi 0, %s105
    %s108 = sphi 0, %s107
    %s122 = sphi 0, %s108
    %s126 = sphi 0, %s126
    %s128 = sphi 0, %s126
    %s129 = sphi 0, %s128
    %s143 = sphi 0, %s129
    %s147 = sphi 0, %s147
    %s149 = sphi 0, %s147
    %s150 = sphi 0, %s149
    %s164 = sphi 0, %s150
    %s168 = sphi 0, %s168
    %s170 = sphi 0, %s168
    %s171 = sphi 0, %s170
    %s185 = sphi 0, %s171
    %s189 = sphi 0, %s189
    %s191 = sphi 0, %s189
    %s192 = sphi 0, %s191
    %s206 = sphi 0, %s192
    %s210 = sphi 0, %s210
    %s212 = sphi 0, %s210
    %s213 = sphi 0, %s212
    %s227 = sphi 0, %s213
    %s231 = sphi 0, %s231
    %s233 = sphi 0, %s231
    %s234 = sphi 0, %s233
    %s248 = sphi 0, %s234
    %s254 = sphi 0, %s256
    %s257 = sphi 0, %s254
    %s258 = sphi 0, %s257
    %s274 = sphi 0, %s258
    %s280 = sphi 0, %s282
    %s283 = sphi 0, %s280
    %s284 = sphi 0, %s283
    %s300 = sphi 0, %s284
    %s306 = sphi 0, %s308
    %s309 = sphi 0, %s306
    %s310 = sphi 0, %s309
    %s326 = sphi 0, %s310
  $region4: #{_lambda_.5} parent=0 // loop_header_branch
    %22 = sbr.rel (%p20) target = $region8
  $region5: #{_lambda_.5} parent=0 // loop_body
    %s24 = ssub.s32 %s19, 1
    %s25 = ssub.s32 %s19, 2
    %s26 = sadd.s32 %s19, 1
    %s27 = ssub.s32 %s19, %s26
    %p28 = scmp.eq.s32.totalorder %s27, 0
    %s30 = sadd.s32 %s29, 1
    %s31 = scalar_select %p28, %s29, %s30
    %p34 = pneg %p28
    %p35 = scmp.eq.s32.totalorder %s19, 1
    %p36 = por %p34, %p35
    %p37 = scmp.ne.s32.totalorder %s29, %s32
    %p38 = scmp.eq.s32.totalorder %s19, 0
    %p39 = por %p37, %p38
    %p40 = scmp.ne.s32.totalorder %s29, %s32
    %p41 = scmp.eq.s32.totalorder %s24, 1
    %p42 = por %p40, %p41
    %p43 = scmp.ne.s32.totalorder %s32, %s33
    %p44 = scmp.eq.s32.totalorder %s24, 0
    %p45 = por %p43, %p44
    %p46 = scmp.ne.s32.totalorder %s32, %s33
    %p47 = scmp.eq.s32.totalorder %s25, 1
    %p48 = por %p46, %p47
    %p50 = scmp.ne.s32.totalorder %s33, %s49
    %p51 = scmp.eq.s32.totalorder %s25, 0
    %p52 = por %p50, %p51
    %s53 = ssub.s32 %s19, %s26
    %p54 = scmp.eq.s32.totalorder %s53, 0
    %s56 = sadd.s32 %s55, 1
    %s57 = scalar_select %p54, %s55, %s56
    %p60 = pneg %p54
    %p61 = scmp.eq.s32.totalorder %s19, 1
    %p62 = por %p60, %p61
    %p63 = scmp.ne.s32.totalorder %s55, %s58
    %p64 = scmp.eq.s32.totalorder %s19, 0
    %p65 = por %p63, %p64
    %p66 = scmp.ne.s32.totalorder %s55, %s58
    %p67 = scmp.eq.s32.totalorder %s24, 1
    %p68 = por %p66, %p67
    %p69 = scmp.ne.s32.totalorder %s58, %s59
    %p70 = scmp.eq.s32.totalorder %s24, 0
    %p71 = por %p69, %p70
    %p72 = scmp.ne.s32.totalorder %s58, %s59
    %p73 = scmp.eq.s32.totalorder %s25, 1
    %p74 = por %p72, %p73
    %p76 = scmp.ne.s32.totalorder %s59, %s75
    %p77 = scmp.eq.s32.totalorder %s25, 0
    %p78 = por %p76, %p77
    %s79 = ssub.s32 %s19, %s26
    %p80 = scmp.eq.s32.totalorder %s79, 0
    %s82 = sadd.s32 %s81, 1
    %s83 = scalar_select %p80, %s81, %s82
    %p86 = pneg %p80
    %p87 = scmp.eq.s32.totalorder %s19, 1
    %p88 = por %p86, %p87
    %p89 = scmp.ne.s32.totalorder %s81, %s84
    %p90 = scmp.eq.s32.totalorder %s19, 0
    %p91 = por %p89, %p90
    %p92 = scmp.ne.s32.totalorder %s81, %s84
    %p93 = scmp.eq.s32.totalorder %s24, 1
    %p94 = por %p92, %p93
    %p95 = scmp.ne.s32.totalorder %s84, %s85
    %p96 = scmp.eq.s32.totalorder %s24, 0
    %p97 = por %p95, %p96
    %p98 = scmp.ne.s32.totalorder %s84, %s85
    %p99 = scmp.eq.s32.totalorder %s25, 1
    %p100 = por %p98, %p99
    %p102 = scmp.ne.s32.totalorder %s85, %s101
    %p103 = scmp.eq.s32.totalorder %s25, 0
    %p104 = por %p102, %p103
    %s106 = sadd.s32 %s105, 1
    %p109 = scmp.eq.s32.totalorder %s19, 1
    %p110 = scmp.ne.s32.totalorder %s105, %s107
    %p111 = scmp.eq.s32.totalorder %s19, 0
    %p112 = por %p110, %p111
    %p113 = scmp.ne.s32.totalorder %s105, %s107
    %p114 = scmp.eq.s32.totalorder %s24, 1
    %p115 = por %p113, %p114
    %p116 = scmp.ne.s32.totalorder %s107, %s108
    %p117 = scmp.eq.s32.totalorder %s24, 0
    %p118 = por %p116, %p117
    %p119 = scmp.ne.s32.totalorder %s107, %s108
    %p120 = scmp.eq.s32.totalorder %s25, 1
    %p121 = por %p119, %p120
    %p123 = scmp.ne.s32.totalorder %s108, %s122
    %p124 = scmp.eq.s32.totalorder %s25, 0
    %p125 = por %p123, %p124
    %s127 = sadd.s32 %s126, 1
    %p130 = scmp.eq.s32.totalorder %s19, 1
    %p131 = scmp.ne.s32.totalorder %s126, %s128
    %p132 = scmp.eq.s32.totalorder %s19, 0
    %p133 = por %p131, %p132
    %p134 = scmp.ne.s32.totalorder %s126, %s128
    %p135 = scmp.eq.s32.totalorder %s24, 1
    %p136 = por %p134, %p135
    %p137 = scmp.ne.s32.totalorder %s128, %s129
    %p138 = scmp.eq.s32.totalorder %s24, 0
    %p139 = por %p137, %p138
    %p140 = scmp.ne.s32.totalorder %s128, %s129
    %p141 = scmp.eq.s32.totalorder %s25, 1
    %p142 = por %p140, %p141
    %p144 = scmp.ne.s32.totalorder %s129, %s143
    %p145 = scmp.eq.s32.totalorder %s25, 0
    %p146 = por %p144, %p145
    %s148 = sadd.s32 %s147, 1
    %p151 = scmp.eq.s32.totalorder %s19, 1
    %p152 = scmp.ne.s32.totalorder %s147, %s149
    %p153 = scmp.eq.s32.totalorder %s19, 0
    %p154 = por %p152, %p153
    %p155 = scmp.ne.s32.totalorder %s147, %s149
    %p156 = scmp.eq.s32.totalorder %s24, 1
    %p157 = por %p155, %p156
    %p158 = scmp.ne.s32.totalorder %s149, %s150
    %p159 = scmp.eq.s32.totalorder %s24, 0
    %p160 = por %p158, %p159
    %p161 = scmp.ne.s32.totalorder %s149, %s150
    %p162 = scmp.eq.s32.totalorder %s25, 1
    %p163 = por %p161, %p162
    %p165 = scmp.ne.s32.totalorder %s150, %s164
    %p166 = scmp.eq.s32.totalorder %s25, 0
    %p167 = por %p165, %p166
    %s169 = sadd.s32 %s168, 1
    %p172 = scmp.eq.s32.totalorder %s19, 1
    %p173 = scmp.ne.s32.totalorder %s168, %s170
    %p174 = scmp.eq.s32.totalorder %s19, 0
    %p175 = por %p173, %p174
    %p176 = scmp.ne.s32.totalorder %s168, %s170
    %p177 = scmp.eq.s32.totalorder %s24, 1
    %p178 = por %p176, %p177
    %p179 = scmp.ne.s32.totalorder %s170, %s171
    %p180 = scmp.eq.s32.totalorder %s24, 0
    %p181 = por %p179, %p180
    %p182 = scmp.ne.s32.totalorder %s170, %s171
    %p183 = scmp.eq.s32.totalorder %s25, 1
    %p184 = por %p182, %p183
    %p186 = scmp.ne.s32.totalorder %s171, %s185
    %p187 = scmp.eq.s32.totalorder %s25, 0
    %p188 = por %p186, %p187
    %s190 = sadd.s32 %s189, 1
    %p193 = scmp.eq.s32.totalorder %s19, 1
    %p194 = scmp.ne.s32.totalorder %s189, %s191
    %p195 = scmp.eq.s32.totalorder %s19, 0
    %p196 = por %p194, %p195
    %p197 = scmp.ne.s32.totalorder %s189, %s191
    %p198 = scmp.eq.s32.totalorder %s24, 1
    %p199 = por %p197, %p198
    %p200 = scmp.ne.s32.totalorder %s191, %s192
    %p201 = scmp.eq.s32.totalorder %s24, 0
    %p202 = por %p200, %p201
    %p203 = scmp.ne.s32.totalorder %s191, %s192
    %p204 = scmp.eq.s32.totalorder %s25, 1
    %p205 = por %p203, %p204
    %p207 = scmp.ne.s32.totalorder %s192, %s206
    %p208 = scmp.eq.s32.totalorder %s25, 0
    %p209 = por %p207, %p208
    %s211 = sadd.s32 %s210, 1
    %p214 = scmp.eq.s32.totalorder %s19, 1
    %p215 = scmp.ne.s32.totalorder %s210, %s212
    %p216 = scmp.eq.s32.totalorder %s19, 0
    %p217 = por %p215, %p216
    %p218 = scmp.ne.s32.totalorder %s210, %s212
    %p219 = scmp.eq.s32.totalorder %s24, 1
    %p220 = por %p218, %p219
    %p221 = scmp.ne.s32.totalorder %s212, %s213
    %p222 = scmp.eq.s32.totalorder %s24, 0
    %p223 = por %p221, %p222
    %p224 = scmp.ne.s32.totalorder %s212, %s213
    %p225 = scmp.eq.s32.totalorder %s25, 1
    %p226 = por %p224, %p225
    %p228 = scmp.ne.s32.totalorder %s213, %s227
    %p229 = scmp.eq.s32.totalorder %s25, 0
    %p230 = por %p228, %p229
    %s232 = sadd.s32 %s231, 1
    %p235 = scmp.eq.s32.totalorder %s19, 1
    %p236 = scmp.ne.s32.totalorder %s231, %s233
    %p237 = scmp.eq.s32.totalorder %s19, 0
    %p238 = por %p236, %p237
    %p239 = scmp.ne.s32.totalorder %s231, %s233
    %p240 = scmp.eq.s32.totalorder %s24, 1
    %p241 = por %p239, %p240
    %p242 = scmp.ne.s32.totalorder %s233, %s234
    %p243 = scmp.eq.s32.totalorder %s24, 0
    %p244 = por %p242, %p243
    %p245 = scmp.ne.s32.totalorder %s233, %s234
    %p246 = scmp.eq.s32.totalorder %s25, 1
    %p247 = por %p245, %p246
    %p249 = scmp.ne.s32.totalorder %s234, %s248
    %p250 = scmp.eq.s32.totalorder %s25, 0
    %p251 = por %p249, %p250
    %s252 = ssub.s32 %s19, %s26
    %p253 = scmp.eq.s32.totalorder %s252, 0
    %s255 = sadd.s32 %s254, 1
    %s256 = scalar_select %p253, %s254, %s255
    %p259 = pneg %p253
    %p260 = scmp.eq.s32.totalorder %s19, 1
    %p261 = por %p259, %p260
    %p262 = scmp.ne.s32.totalorder %s254, %s257
    %p263 = scmp.eq.s32.totalorder %s19, 0
    %p264 = por %p262, %p263
    %p265 = scmp.ne.s32.totalorder %s254, %s257
    %p266 = scmp.eq.s32.totalorder %s24, 1
    %p267 = por %p265, %p266
    %p268 = scmp.ne.s32.totalorder %s257, %s258
    %p269 = scmp.eq.s32.totalorder %s24, 0
    %p270 = por %p268, %p269
    %p271 = scmp.ne.s32.totalorder %s257, %s258
    %p272 = scmp.eq.s32.totalorder %s25, 1
    %p273 = por %p271, %p272
    %p275 = scmp.ne.s32.totalorder %s258, %s274
    %p276 = scmp.eq.s32.totalorder %s25, 0
    %p277 = por %p275, %p276
    %s278 = ssub.s32 %s19, %s26
    %p279 = scmp.eq.s32.totalorder %s278, 0
    %s281 = sadd.s32 %s280, 1
    %s282 = scalar_select %p279, %s280, %s281
    %p285 = pneg %p279
    %p286 = scmp.eq.s32.totalorder %s19, 1
    %p287 = por %p285, %p286
    %p288 = scmp.ne.s32.totalorder %s280, %s283
    %p289 = scmp.eq.s32.totalorder %s19, 0
    %p290 = por %p288, %p289
    %p291 = scmp.ne.s32.totalorder %s280, %s283
    %p292 = scmp.eq.s32.totalorder %s24, 1
    %p293 = por %p291, %p292
    %p294 = scmp.ne.s32.totalorder %s283, %s284
    %p295 = scmp.eq.s32.totalorder %s24, 0
    %p296 = por %p294, %p295
    %p297 = scmp.ne.s32.totalorder %s283, %s284
    %p298 = scmp.eq.s32.totalorder %s25, 1
    %p299 = por %p297, %p298
    %p301 = scmp.ne.s32.totalorder %s284, %s300
    %p302 = scmp.eq.s32.totalorder %s25, 0
    %p303 = por %p301, %p302
    %s304 = ssub.s32 %s19, %s26
    %p305 = scmp.eq.s32.totalorder %s304, 0
    %s307 = sadd.s32 %s306, 1
    %s308 = scalar_select %p305, %s306, %s307
    %p311 = pneg %p305
    %p312 = scmp.eq.s32.totalorder %s19, 1
    %p313 = por %p311, %p312
    %p314 = scmp.ne.s32.totalorder %s306, %s309
    %p315 = scmp.eq.s32.totalorder %s19, 0
    %p316 = por %p314, %p315
    %p317 = scmp.ne.s32.totalorder %s306, %s309
    %p318 = scmp.eq.s32.totalorder %s24, 1
    %p319 = por %p317, %p318
    %p320 = scmp.ne.s32.totalorder %s309, %s310
    %p321 = scmp.eq.s32.totalorder %s24, 0
    %p322 = por %p320, %p321
    %p323 = scmp.ne.s32.totalorder %s309, %s310
    %p324 = scmp.eq.s32.totalorder %s25, 1
    %p325 = por %p323, %p324
    %p327 = scmp.ne.s32.totalorder %s310, %s326
    %p328 = scmp.eq.s32.totalorder %s25, 0
    %p329 = por %p327, %p328
    %p330 = scmp.le.s32.totalorder 1, %s19
    %p331 = scmp.lt.s32.totalorder %s19, 3
    %p332 = pnand %p330, %p331
    %p333 = pneg %p332
    // Predicated region
    $region9: #{_lambda_.5} parent=5 // pred_check
      _
    $region10: #{_lambda_.5} parent=5 // pred_check_branch
      %335 = sbr.rel (%p332) target = $region12
    $region11: #{_lambda_.5} parent=5 // pred_region
      %s336 = ssub.s32 %s19, 1
      // Predicated region
      $region13: #{_lambda_.5} parent=11 // pred_check
        %p337 = pneg %p118
      $region14: #{_lambda_.5} parent=11 // pred_check_branch
        %339 = sbr.rel (%p337) target = $region16
      $region15: #{_lambda_.5} parent=11 // pred_region
        _
      $region16: #{_lambda_.5} parent=11 // pred_fallthru
        _
      // Predicated region
      $region17: #{_lambda_.5} parent=11 // pred_check
        %p340 = pneg %p139
      $region18: #{_lambda_.5} parent=11 // pred_check_branch
        %342 = sbr.rel (%p340) target = $region20
      $region19: #{_lambda_.5} parent=11 // pred_region
        _
      $region20: #{_lambda_.5} parent=11 // pred_fallthru
        _
      // Predicated region
      $region21: #{_lambda_.5} parent=11 // pred_check
        %p343 = pneg %p160
      $region22: #{_lambda_.5} parent=11 // pred_check_branch
        %345 = sbr.rel (%p343) target = $region24
      $region23: #{_lambda_.5} parent=11 // pred_region
        _
      $region24: #{_lambda_.5} parent=11 // pred_fallthru
        _
      // Predicated region
      $region25: #{_lambda_.5} parent=11 // pred_check
        %p346 = pneg %p181
      $region26: #{_lambda_.5} parent=11 // pred_check_branch
        %348 = sbr.rel (%p346) target = $region28
      $region27: #{_lambda_.5} parent=11 // pred_region
        _
      $region28: #{_lambda_.5} parent=11 // pred_fallthru
        _
      // Predicated region
      $region29: #{_lambda_.5} parent=11 // pred_check
        %p349 = pneg %p202
      $region30: #{_lambda_.5} parent=11 // pred_check_branch
        %351 = sbr.rel (%p349) target = $region32
      $region31: #{_lambda_.5} parent=11 // pred_region
        _
      $region32: #{_lambda_.5} parent=11 // pred_fallthru
        _
      // Predicated region
      $region33: #{_lambda_.5} parent=11 // pred_check
        %p352 = pneg %p223
      $region34: #{_lambda_.5} parent=11 // pred_check_branch
        %354 = sbr.rel (%p352) target = $region36
      $region35: #{_lambda_.5} parent=11 // pred_region
        _
      $region36: #{_lambda_.5} parent=11 // pred_fallthru
        _
      // Predicated region
      $region37: #{_lambda_.5} parent=11 // pred_check
        %p355 = pneg %p244
      $region38: #{_lambda_.5} parent=11 // pred_check_branch
        %357 = sbr.rel (%p355) target = $region40
      $region39: #{_lambda_.5} parent=11 // pred_region
        _
      $region40: #{_lambda_.5} parent=11 // pred_fallthru
        _
    $region12: #{_lambda_.5} parent=5 // pred_fallthru
      _
    %p358 = scmp.lt.s32.totalorder %s19, 2
    // Predicated region
    $region41: #{_lambda_.5} parent=5 // pred_check
      %p359 = pneg %p358
    $region42: #{_lambda_.5} parent=5 // pred_check_branch
      %361 = sbr.rel (%p359) target = $region44
    $region43: #{_lambda_.5} parent=5 // pred_region
      // Predicated region
      $region45: #{_lambda_.5} parent=43 // pred_check
        %p362 = pneg %p39
      $region46: #{_lambda_.5} parent=43 // pred_check_branch
        %364 = sbr.rel (%p362) target = $region48
      $region47: #{_lambda_.5} parent=43 // pred_region
        %p365 = scmp.lt.s32.totalorder %s19, 1
        %s366 = scalar_select %p365, %s19, 1
        %s367 = smul.addr %s366, 8
        %s368 = scalar_lea.vmem %s0, %s367
      $region48: #{_lambda_.5} parent=43 // pred_fallthru
        _
      // Predicated region
      $region49: #{_lambda_.5} parent=43 // pred_check
        %p369 = pneg %p65
      $region50: #{_lambda_.5} parent=43 // pred_check_branch
        %371 = sbr.rel (%p369) target = $region52
      $region51: #{_lambda_.5} parent=43 // pred_region
        %p372 = scmp.lt.s32.totalorder %s19, 1
        %s373 = scalar_select %p372, %s19, 1
        %s374 = smul.addr %s373, 8
        %s375 = scalar_lea.vmem %s1, %s374
      $region52: #{_lambda_.5} parent=43 // pred_fallthru
        _
      // Predicated region
      $region53: #{_lambda_.5} parent=43 // pred_check
        %p376 = pneg %p91
      $region54: #{_lambda_.5} parent=43 // pred_check_branch
        %378 = sbr.rel (%p376) target = $region56
      $region55: #{_lambda_.5} parent=43 // pred_region
        %p379 = scmp.lt.s32.totalorder %s19, 1
        %s380 = scalar_select %p379, %s19, 1
        %s381 = smul.addr %s380, 8
        %s382 = scalar_lea.vmem %s2, %s381
      $region56: #{_lambda_.5} parent=43 // pred_fallthru
        _
    $region44: #{_lambda_.5} parent=5 // pred_fallthru
      _
    %p383 = scmp.le.s32.totalorder 1, %s19
    %p384 = scmp.lt.s32.totalorder %s19, 3
    %p385 = pnand %p383, %p384
    %p386 = pneg %p385
    // Predicated region
    $region57: #{_lambda_.5} parent=5 // pred_check
      _
    $region58: #{_lambda_.5} parent=5 // pred_check_branch
      %388 = sbr.rel (%p385) target = $region60
    $region59: #{_lambda_.5} parent=5 // pred_region
      %s389 = ssub.s32 %s19, 1
      %p390 = scmp.lt.s32.totalorder %s24, 1
      %s391 = scalar_select %p390, %s24, 1
      %s392 = smul.addr %s391, 8
      %s393 = scalar_lea.vmem %s0, %s392
      %p394 = pneg %p45
      %p395 = pneg %p42
      %p396 = scmp.lt.s32.totalorder %s24, 1
      %s397 = scalar_select %p396, %s24, 1
      %s398 = smul.addr %s397, 8
      %s399 = scalar_lea.vmem %s1, %s398
      %p400 = pneg %p71
      %p401 = pneg %p68
      %p402 = scmp.lt.s32.totalorder %s24, 1
      %s403 = scalar_select %p402, %s24, 1
      %s404 = smul.addr %s403, 8
      %s405 = scalar_lea.vmem %s2, %s404
      %p406 = pneg %p97
      %p407 = pneg %p94
      %p408 = pneg %p118
      %p409 = pneg %p115
      %p410 = pneg %p139
      %p411 = pneg %p136
      %p412 = pneg %p160
      %p413 = pneg %p157
      %p414 = pneg %p181
      %p415 = pneg %p178
      %p416 = pneg %p202
      %p417 = pneg %p199
      %p418 = pneg %p223
      %p419 = pneg %p220
      %p420 = pneg %p244
      %p421 = pneg %p241
      %p422 = pneg %p270
      %p423 = pneg %p267
      %p424 = scmp.lt.s32.totalorder %s24, 1
      %s425 = scalar_select %p424, %s24, 1
      %s426 = scalar_lea.vmem %s10, %s425
      %p427 = pneg %p296
      %p428 = pneg %p293
      %p429 = scmp.lt.s32.totalorder %s24, 1
      %s430 = scalar_select %p429, %s24, 1
      %s431 = scalar_lea.vmem %s11, %s430
      %p432 = pneg %p322
      %p433 = pneg %p319
      %p434 = scmp.lt.s32.totalorder %s24, 1
      %s435 = scalar_select %p434, %s24, 1
      %s436 = scalar_lea.vmem %s12, %s435
      %p437 = scmp.lt.s32.totalorder %s24, 1
      %s438 = scalar_select %p437, %s24, 1
      %s439 = smul.addr %s438, 8
      %s440 = scalar_lea.vmem %s0, %s439
      %p441 = scmp.lt.s32.totalorder %s24, 1
      %s442 = scalar_select %p441, %s24, 1
      %s443 = smul.addr %s442, 8
      %s444 = scalar_lea.vmem %s1, %s443
      %p445 = scmp.lt.s32.totalorder %s24, 1
      %s446 = scalar_select %p445, %s24, 1
      %s447 = smul.addr %s446, 8
      %s448 = scalar_lea.vmem %s2, %s447
      %p449 = scmp.lt.s32.totalorder %s24, 1
      %s450 = scalar_select %p449, %s24, 1
      %s451 = scalar_lea.vmem %s10, %s450
      %p452 = scmp.lt.s32.totalorder %s24, 1
      %s453 = scalar_select %p452, %s24, 1
      %s454 = scalar_lea.vmem %s11, %s453
      %p455 = scmp.lt.s32.totalorder %s24, 1
      %s456 = scalar_select %p455, %s24, 1
      %s457 = scalar_lea.vmem %s12, %s456
      %v459 = vld [vmem:[%s440] sm:$0xff]
      %v460 = vld [vmem:[%s444] sm:$0xff]
      %v461 = vpack.c.bf16 %v460, %v460
      %v462 = vld [vmem:[%s3] sm:$0xf]
      %v463 = vld [vmem:[%s3 + $0x4] sm:$0xf]
      %v466 = vunpack.c.l.b16 %v462
      %v467 = vunpack.c.l.b16 %v463
      %v468 = vpack.c.b16 %v467, %v466
      %vm470 = vcmask 130048
      %v472 = vsel %vm470, %v461, 0
      %474 = vmatprep.subr.bf16.mxu0 0
      %475 = vmatpush1.bf16.msra.mxu0 0
      %476 = vmatprep.subr.bf16.mxu0 0
      %477 = vmatpush1.bf16.msra.mxu0 0
      %478 = vmatprep.subr.bf16.mxu0 0
      %479 = vmatpush1.bf16.msra.mxu0 0
      %480 = vmatprep.subr.bf16.mxu0 0
      %481 = vmatpush1.bf16.msra.mxu0 0
      %482 = vmatprep.subr.bf16.mxu0 0
      %483 = vmatpush1.bf16.msra.mxu0 0
      %484 = vmatprep.subr.bf16.mxu0 0
      %485 = vmatpush1.bf16.msra.mxu0 0
      %486 = vmatprep.subr.bf16.mxu0 0
      %487 = vmatpush1.bf16.msra.mxu0 0
      %488 = vmatprep.subr.bf16.mxu0 0
      %489 = vmatpush1.bf16.msra.mxu0 %v468
      %490 = vmatprep.subr.bf16.mxu0 0
      %491 = vmatpush2.bf16.msra.mxu0 0
      %492 = vmatprep.subr.bf16.mxu0 0
      %493 = vmatpush2.bf16.msra.mxu0 0
      %494 = vmatprep.subr.bf16.mxu0 0
      %495 = vmatpush2.bf16.msra.mxu0 0
      %496 = vmatprep.subr.bf16.mxu0 0
      %497 = vmatpush2.bf16.msra.mxu0 0
      %498 = vmatprep.subr.bf16.mxu0 0
      %499 = vmatpush2.bf16.msra.mxu0 0
      %500 = vmatprep.subr.bf16.mxu0 0
      %501 = vmatpush2.bf16.msra.mxu0 0
      %502 = vmatprep.subr.bf16.mxu0 0
      %503 = vmatpush2.bf16.msra.mxu0 0
      %504 = vmatprep.subr.bf16.mxu0 0
      %505 = vmatpush2.bf16.msra.mxu0 0
      %506 = vmatprep.mubr.bf16.mxu0 0
      %507 = vmatmul.mubr.bf16.gmra.mxu0 %v472
      %v508 = vpop.f32.mrf.mxu0
      %v509 = vadd.f32 0.0, %v508
      %v510 = vpop.f32.mrf.mxu0
      %v511 = vpop.f32.mrf.mxu0
      %v512 = vpop.f32.mrf.mxu0
      %513 = vdwg.mxu0
      %v514 = vpack.c.bf16 %v459, %v459
      %v515 = vpack.c.bf16 %v509, %v509
      %vm516 = vcmask 64512
      %v518 = vsel %vm516, %v514, 0
      %vm520 = vcmask 1043456
      %v522 = vsel %vm520, %v515, 0
      %524 = vmatprep.subr.bf16.mxu0 0
      %525 = vmatpush1.bf16.msra.mxu0 0
      %526 = vmatprep.subr.bf16.mxu0 0
      %527 = vmatpush1.bf16.msra.mxu0 0
      %528 = vmatprep.subr.bf16.mxu0 0
      %529 = vmatpush1.bf16.msra.mxu0 0
      %530 = vmatprep.subr.bf16.mxu0 0
      %531 = vmatpush1.bf16.msra.mxu0 0
      %532 = vmatprep.subr.bf16.mxu0 0
      %533 = vmatpush1.bf16.msra.mxu0 0
      %534 = vmatprep.subr.bf16.mxu0 0
      %535 = vmatpush1.bf16.msra.mxu0 0
      %536 = vmatprep.subr.bf16.mxu0 0
      %537 = vmatpush1.bf16.msra.mxu0 0
      %538 = vmatprep.subr.bf16.mxu0 0
      %539 = vmatpush1.bf16.msra.mxu0 %v522
      %540 = vmatprep.subr.bf16.mxu0 0
      %541 = vmatpush2.bf16.msra.mxu0 0
      %542 = vmatprep.subr.bf16.mxu0 0
      %543 = vmatpush2.bf16.msra.mxu0 0
      %544 = vmatprep.subr.bf16.mxu0 0
      %545 = vmatpush2.bf16.msra.mxu0 0
      %546 = vmatprep.subr.bf16.mxu0 0
      %547 = vmatpush2.bf16.msra.mxu0 0
      %548 = vmatprep.subr.bf16.mxu0 0
      %549 = vmatpush2.bf16.msra.mxu0 0
      %550 = vmatprep.subr.bf16.mxu0 0
      %551 = vmatpush2.bf16.msra.mxu0 0
      %552 = vmatprep.subr.bf16.mxu0 0
      %553 = vmatpush2.bf16.msra.mxu0 0
      %554 = vmatprep.subr.bf16.mxu0 0
      %555 = vmatpush2.bf16.msra.mxu0 0
      %556 = vmatprep.mubr.bf16.mxu0 0
      %557 = vmatmul.mubr.bf16.gmra.mxu0 %v518
      %v558 = vpop.f32.mrf.mxu0
      %v559 = vadd.f32 0.0, %v558
      %v560 = vpop.f32.mrf.mxu0
      %v561 = vpop.f32.mrf.mxu0
      %v562 = vpop.f32.mrf.mxu0
      %563 = vdwg.mxu0
      %v564 = vpack.c.bf16 %v559, %v559
      %v565 = vld [vmem:[%s4] sm:$0xf]
      %v566 = vld [vmem:[%s4 + $0x4] sm:$0xf]
      %v567 = vld [vmem:[%s4 + $0x8] sm:$0xf]
      %v568 = vld [vmem:[%s4 + $0xc] sm:$0xf]
      %v569 = vld [vmem:[%s5] sm:$0xf]
      %v570 = vld [vmem:[%s5 + $0x4] sm:$0xf]
      %v571 = vld [vmem:[%s5 + $0x8] sm:$0xf]
      %v572 = vld [vmem:[%s5 + $0xc] sm:$0xf]
      %v577 = vunpack.c.l.b16 %v569
      %v578 = vunpack.c.l.b16 %v570
      %v579 = vunpack.c.l.b16 %v571
      %v580 = vunpack.c.l.b16 %v572
      %v581 = vpack.c.b16 %v578, %v577
      %v582 = vpack.c.b16 %v580, %v579
      %vm585 = vcmask 261120
      %v586 = vsel %vm585, %v515, 0
      %588 = vmatprep.subr.bf16.mxu0 0
      %589 = vmatpush1.bf16.msra.mxu0 0
      %590 = vmatprep.subr.bf16.mxu0 0
      %591 = vmatpush1.bf16.msra.mxu0 0
      %592 = vmatprep.subr.bf16.mxu0 0
      %593 = vmatpush1.bf16.msra.mxu0 0
      %594 = vmatprep.subr.bf16.mxu0 0
      %595 = vmatpush1.bf16.msra.mxu0 0
      %596 = vmatprep.subr.bf16.mxu0 0
      %597 = vmatpush1.bf16.msra.mxu0 0
      %598 = vmatprep.subr.bf16.mxu0 0
      %599 = vmatpush1.bf16.msra.mxu0 0
      %600 = vmatprep.subr.bf16.mxu0 0
      %601 = vmatpush1.bf16.msra.mxu0 %v582
      %602 = vmatprep.subr.bf16.mxu0 0
      %603 = vmatpush1.bf16.msra.mxu0 %v581
      %604 = vmatprep.subr.bf16.mxu0 0
      %605 = vmatpush2.bf16.msra.mxu0 0
      %606 = vmatprep.subr.bf16.mxu0 0
      %607 = vmatpush2.bf16.msra.mxu0 0
      %608 = vmatprep.subr.bf16.mxu0 0
      %609 = vmatpush2.bf16.msra.mxu0 0
      %610 = vmatprep.subr.bf16.mxu0 0
      %611 = vmatpush2.bf16.msra.mxu0 0
      %612 = vmatprep.subr.bf16.mxu0 0
      %613 = vmatpush2.bf16.msra.mxu0 0
      %614 = vmatprep.subr.bf16.mxu0 0
      %615 = vmatpush2.bf16.msra.mxu0 0
      %616 = vmatprep.subr.bf16.mxu0 0
      %617 = vmatpush2.bf16.msra.mxu0 0
      %618 = vmatprep.subr.bf16.mxu0 0
      %619 = vmatpush2.bf16.msra.mxu0 0
      %620 = vmatprep.mubr.bf16.mxu0 0
      %621 = vmatmul.mubr.bf16.gmra.mxu0 %v586
      %v622 = vpop.f32.mrf.mxu0
      %v623 = vadd.f32 0.0, %v622
      %v624 = vpop.f32.mrf.mxu0
      %v625 = vpop.f32.mrf.mxu0
      %v626 = vpop.f32.mrf.mxu0
      %627 = vdwg.mxu0
      %v632 = vunpack.c.l.b16 %v565
      %v633 = vunpack.c.l.b16 %v566
      %v634 = vunpack.c.l.b16 %v567
      %v635 = vunpack.c.l.b16 %v568
      %v636 = vpack.c.b16 %v633, %v632
      %v637 = vpack.c.b16 %v635, %v634
      %v641 = vsel %vm585, %v564, 0
      %643 = vmatprep.subr.bf16.mxu0 0
      %644 = vmatpush1.bf16.msra.mxu0 0
      %645 = vmatprep.subr.bf16.mxu0 0
      %646 = vmatpush1.bf16.msra.mxu0 0
      %647 = vmatprep.subr.bf16.mxu0 0
      %648 = vmatpush1.bf16.msra.mxu0 0
      %649 = vmatprep.subr.bf16.mxu0 0
      %650 = vmatpush1.bf16.msra.mxu0 0
      %651 = vmatprep.subr.bf16.mxu0 0
      %652 = vmatpush1.bf16.msra.mxu0 0
      %653 = vmatprep.subr.bf16.mxu0 0
      %654 = vmatpush1.bf16.msra.mxu0 0
      %655 = vmatprep.subr.bf16.mxu0 0
      %656 = vmatpush1.bf16.msra.mxu0 %v637
      %657 = vmatprep.subr.bf16.mxu0 0
      %658 = vmatpush1.bf16.msra.mxu0 %v636
      %659 = vmatprep.subr.bf16.mxu0 0
      %660 = vmatpush2.bf16.msra.mxu0 0
      %661 = vmatprep.subr.bf16.mxu0 0
      %662 = vmatpush2.bf16.msra.mxu0 0
      %663 = vmatprep.subr.bf16.mxu0 0
      %664 = vmatpush2.bf16.msra.mxu0 0
      %665 = vmatprep.subr.bf16.mxu0 0
      %666 = vmatpush2.bf16.msra.mxu0 0
      %667 = vmatprep.subr.bf16.mxu0 0
      %668 = vmatpush2.bf16.msra.mxu0 0
      %669 = vmatprep.subr.bf16.mxu0 0
      %670 = vmatpush2.bf16.msra.mxu0 0
      %671 = vmatprep.subr.bf16.mxu0 0
      %672 = vmatpush2.bf16.msra.mxu0 0
      %673 = vmatprep.subr.bf16.mxu0 0
      %674 = vmatpush2.bf16.msra.mxu0 0
      %675 = vmatprep.mubr.bf16.mxu0 0
      %676 = vmatmul.mubr.bf16.gmra.mxu0 %v641
      %v677 = vpop.f32.mrf.mxu0
      %v678 = vadd.f32 %v623, %v677
      %v679 = vpop.f32.mrf.mxu0
      %v680 = vpop.f32.mrf.mxu0
      %v681 = vpop.f32.mrf.mxu0
      %682 = vdwg.mxu0
      %v683 = vld [vmem:[%s6] sm:$0x1]
      %v685 = vlaneseq
      %v686 = vshrl.u32 %v685, 7
      %v687 = vsub.s32 0, %v686
      %v688 = vrot.slane %v683, %v687
      %v690 = vadd.f32 %v678, %v688
      %v691 = vxor.u32 %v690, 2147483648
      %v692 = vmul.f32 %v691, 1.442695
      %v693 = vpow.pop %v692
      %v694 = vadd.f32 %v693, 1.0
      %v695 = vrcp.pop %v694
      %v696 = vmul.f32 1.0, %v695
      %698 = vrot.lane.b32.xlu0 %v509, 32
      %v699 = vpop.permute.xlu0 %698
      %v701 = vmul.f32 %v696, %v699
      %v702 = vpack.c.bf16 %v701, %v701
      %v703 = vld [vmem:[%s7] sm:$0xf]
      %v704 = vld [vmem:[%s7 + $0x4] sm:$0xf]
      %v705 = vld [vmem:[%s7 + $0x8] sm:$0xf]
      %v706 = vld [vmem:[%s7 + $0xc] sm:$0xf]
      %708 = vrot.lane.b32.xlu0 %v702, 96
      %v709 = vpop.permute.xlu0 %708
      %v714 = vunpack.c.l.b16 %v703
      %v715 = vunpack.c.l.b16 %v704
      %v716 = vunpack.c.l.b16 %v705
      %v717 = vunpack.c.l.b16 %v706
      %v718 = vpack.c.b16 %v715, %v714
      %v719 = vpack.c.b16 %v717, %v716
      %v723 = vsel %vm585, %v709, 0
      %725 = vmatprep.subr.bf16.mxu0 0
      %726 = vmatpush1.bf16.msra.mxu0 0
      %727 = vmatprep.subr.bf16.mxu0 0
      %728 = vmatpush1.bf16.msra.mxu0 0
      %729 = vmatprep.subr.bf16.mxu0 0
      %730 = vmatpush1.bf16.msra.mxu0 0
      %731 = vmatprep.subr.bf16.mxu0 0
      %732 = vmatpush1.bf16.msra.mxu0 0
      %733 = vmatprep.subr.bf16.mxu0 0
      %734 = vmatpush1.bf16.msra.mxu0 0
      %735 = vmatprep.subr.bf16.mxu0 0
      %736 = vmatpush1.bf16.msra.mxu0 0
      %737 = vmatprep.subr.bf16.mxu0 0
      %738 = vmatpush1.bf16.msra.mxu0 %v719
      %739 = vmatprep.subr.bf16.mxu0 0
      %740 = vmatpush1.bf16.msra.mxu0 %v718
      %741 = vmatprep.subr.bf16.mxu0 0
      %742 = vmatpush2.bf16.msra.mxu0 0
      %743 = vmatprep.subr.bf16.mxu0 0
      %744 = vmatpush2.bf16.msra.mxu0 0
      %745 = vmatprep.subr.bf16.mxu0 0
      %746 = vmatpush2.bf16.msra.mxu0 0
      %747 = vmatprep.subr.bf16.mxu0 0
      %748 = vmatpush2.bf16.msra.mxu0 0
      %749 = vmatprep.subr.bf16.mxu0 0
      %750 = vmatpush2.bf16.msra.mxu0 0
      %751 = vmatprep.subr.bf16.mxu0 0
      %752 = vmatpush2.bf16.msra.mxu0 0
      %753 = vmatprep.subr.bf16.mxu0 0
      %754 = vmatpush2.bf16.msra.mxu0 0
      %755 = vmatprep.subr.bf16.mxu0 0
      %756 = vmatpush2.bf16.msra.mxu0 0
      %757 = vmatprep.mubr.bf16.mxu0 0
      %758 = vmatmul.mubr.bf16.gmra.mxu0 %v723
      %v759 = vpop.f32.mrf.mxu0
      %v760 = vadd.f32 0.0, %v759
      %v761 = vpop.f32.mrf.mxu0
      %v762 = vpop.f32.mrf.mxu0
      %v763 = vpop.f32.mrf.mxu0
      %764 = vdwg.mxu0
      %766 = vrot.lane.b32.xlu0 %v760, 64
      %v767 = vpop.permute.xlu0 %766
      %v769 = vadd.f32 %v690, %v767
      %v770 = vtanh.pop %v769
      %772 = vrot.lane.b32.xlu0 %v696, 64
      %v773 = vpop.permute.xlu0 %772
      %v775 = vmul.f32 %v770, %v773
      %v776 = vsub.f32 1.0, %v696
      %v777 = vmul.f32 %v509, %v776
      %779 = vrot.lane.b32.xlu0 %v777, 64
      %v780 = vpop.permute.xlu0 %779
      %v782 = vadd.f32 %v775, %v780
      %v783 = vld [vmem:[%s448] sm:$0xff]
      %785 = vset.pattern.permute.xlu0 0
      %786 = vperm.xlu0 %785, %v783
      %v787 = vpop.permute.xlu0 %786
      %v789 = vmul.f32 %v782, %v787
      %vm790 = vcmask 785920
      %v791 = vsel %vm790, %v789, 0.0
      %v792 = vrot.slane %v791, 4
      %v793 = vadd.f32 %v791, %v792
      %v794 = vrot.slane %v793, 2
      %v795 = vadd.f32 %v793, %v794
      %v796 = vrot.slane %v795, 1
      %v797 = vadd.f32 %v795, %v796
      %vm798 = vcmask 7168
      %v799 = vsel %vm798, %v783, 0.0
      %v800 = vrot.slane %v799, 4
      %v801 = vadd.f32 %v799, %v800
      %v802 = vrot.slane %v801, 2
      %v803 = vadd.f32 %v801, %v802
      %v804 = vrot.slane %v803, 1
      %v805 = vadd.f32 %v803, %v804
      %807 = vset.pattern.permute.xlu0 0
      %808 = vperm.xlu0 %807, %v805
      %v809 = vpop.permute.xlu0 %808
      %v811 = vrcp.pop %v809
      %v812 = vmul.f32 %v797, %v811
      %814 = vrot.lane.b32.xlu0 %v812, 64
      %v815 = vpop.permute.xlu0 %814
      %vm817 = vcmask 253952
      %818 = vst.msk [vmem:[%s451] sm:$0x1] %vm817, %v815
      %v819 = vpack.c.bf16 %v812, %v812
      %v820 = vld [vmem:[%s8] sm:$0xf]
      %v821 = vld [vmem:[%s8 + $0x4] sm:$0xf]
      %v822 = vld [vmem:[%s8 + $0x8] sm:$0xf]
      %v823 = vld [vmem:[%s8 + $0xc] sm:$0xf]
      %825 = vrot.lane.b32.xlu0 %v819, 64
      %v826 = vpop.permute.xlu0 %825
      %v831 = vunpack.c.l.b16 %v820
      %v832 = vunpack.c.l.b16 %v821
      %v833 = vunpack.c.l.b16 %v822
      %v834 = vunpack.c.l.b16 %v823
      %v835 = vpack.c.b16 %v832, %v831
      %v836 = vpack.c.b16 %v834, %v833
      %v840 = vsel %vm585, %v826, 0
      %842 = vmatprep.subr.bf16.mxu0 0
      %843 = vmatpush1.bf16.msra.mxu0 0
      %844 = vmatprep.subr.bf16.mxu0 0
      %845 = vmatpush1.bf16.msra.mxu0 0
      %846 = vmatprep.subr.bf16.mxu0 0
      %847 = vmatpush1.bf16.msra.mxu0 0
      %848 = vmatprep.subr.bf16.mxu0 0
      %849 = vmatpush1.bf16.msra.mxu0 0
      %850 = vmatprep.subr.bf16.mxu0 0
      %851 = vmatpush1.bf16.msra.mxu0 0
      %852 = vmatprep.subr.bf16.mxu0 0
      %853 = vmatpush1.bf16.msra.mxu0 0
      %854 = vmatprep.subr.bf16.mxu0 0
      %855 = vmatpush1.bf16.msra.mxu0 %v836
      %856 = vmatprep.subr.bf16.mxu0 0
      %857 = vmatpush1.bf16.msra.mxu0 %v835
      %858 = vmatprep.subr.bf16.mxu0 0
      %859 = vmatpush2.bf16.msra.mxu0 0
      %860 = vmatprep.subr.bf16.mxu0 0
      %861 = vmatpush2.bf16.msra.mxu0 0
      %862 = vmatprep.subr.bf16.mxu0 0
      %863 = vmatpush2.bf16.msra.mxu0 0
      %864 = vmatprep.subr.bf16.mxu0 0
      %865 = vmatpush2.bf16.msra.mxu0 0
      %866 = vmatprep.subr.bf16.mxu0 0
      %867 = vmatpush2.bf16.msra.mxu0 0
      %868 = vmatprep.subr.bf16.mxu0 0
      %869 = vmatpush2.bf16.msra.mxu0 0
      %870 = vmatprep.subr.bf16.mxu0 0
      %871 = vmatpush2.bf16.msra.mxu0 0
      %872 = vmatprep.subr.bf16.mxu0 0
      %873 = vmatpush2.bf16.msra.mxu0 0
      %874 = vmatprep.mubr.bf16.mxu0 0
      %875 = vmatmul.mubr.bf16.gmra.mxu0 %v840
      %v876 = vpop.f32.mrf.mxu0
      %v877 = vadd.f32 0.0, %v876
      %v878 = vpop.f32.mrf.mxu0
      %v879 = vpop.f32.mrf.mxu0
      %v880 = vpop.f32.mrf.mxu0
      %881 = vdwg.mxu0
      %vm882 = vcmask 122880
      %883 = vst.msk [vmem:[%s454] sm:$0x1] %vm882, %v877
      %v884 = vld [vmem:[%s9] sm:$0xf]
      %v885 = vld [vmem:[%s9 + $0x4] sm:$0xf]
      %v886 = vld [vmem:[%s9 + $0x8] sm:$0xf]
      %v887 = vld [vmem:[%s9 + $0xc] sm:$0xf]
      %v892 = vunpack.c.l.b16 %v884
      %v893 = vunpack.c.l.b16 %v885
      %v894 = vunpack.c.l.b16 %v886
      %v895 = vunpack.c.l.b16 %v887
      %v896 = vpack.c.b16 %v893, %v892
      %v897 = vpack.c.b16 %v895, %v894
      %900 = vmatprep.subr.bf16.mxu0 0
      %901 = vmatpush1.bf16.msra.mxu0 0
      %902 = vmatprep.subr.bf16.mxu0 0
      %903 = vmatpush1.bf16.msra.mxu0 0
      %904 = vmatprep.subr.bf16.mxu0 0
      %905 = vmatpush1.bf16.msra.mxu0 0
      %906 = vmatprep.subr.bf16.mxu0 0
      %907 = vmatpush1.bf16.msra.mxu0 0
      %908 = vmatprep.subr.bf16.mxu0 0
      %909 = vmatpush1.bf16.msra.mxu0 0
      %910 = vmatprep.subr.bf16.mxu0 0
      %911 = vmatpush1.bf16.msra.mxu0 0
      %912 = vmatprep.subr.bf16.mxu0 0
      %913 = vmatpush1.bf16.msra.mxu0 %v897
      %914 = vmatprep.subr.bf16.mxu0 0
      %915 = vmatpush1.bf16.msra.mxu0 %v896
      %916 = vmatprep.subr.bf16.mxu0 0
      %917 = vmatpush2.bf16.msra.mxu0 0
      %918 = vmatprep.subr.bf16.mxu0 0
      %919 = vmatpush2.bf16.msra.mxu0 0
      %920 = vmatprep.subr.bf16.mxu0 0
      %921 = vmatpush2.bf16.msra.mxu0 0
      %922 = vmatprep.subr.bf16.mxu0 0
      %923 = vmatpush2.bf16.msra.mxu0 0
      %924 = vmatprep.subr.bf16.mxu0 0
      %925 = vmatpush2.bf16.msra.mxu0 0
      %926 = vmatprep.subr.bf16.mxu0 0
      %927 = vmatpush2.bf16.msra.mxu0 0
      %928 = vmatprep.subr.bf16.mxu0 0
      %929 = vmatpush2.bf16.msra.mxu0 0
      %930 = vmatprep.subr.bf16.mxu0 0
      %931 = vmatpush2.bf16.msra.mxu0 0
      %932 = vmatprep.mubr.bf16.mxu0 0
      %933 = vmatmul.mubr.bf16.gmra.mxu0 %v840
      %v934 = vpop.f32.mrf.mxu0
      %v935 = vadd.f32 0.0, %v934
      %v936 = vpop.f32.mrf.mxu0
      %v937 = vpop.f32.mrf.mxu0
      %v938 = vpop.f32.mrf.mxu0
      %939 = vdwg.mxu0
      %940 = vst.msk [vmem:[%s457] sm:$0x1] %vm882, %v935
      %p941 = scmp.lt.s32.totalorder %s24, 1
      %s942 = scalar_select %p941, %s24, 1
      %s943 = scalar_lea.vmem %s10, %s942
      %p944 = scmp.lt.s32.totalorder %s24, 1
      %s945 = scalar_select %p944, %s24, 1
      %s946 = scalar_lea.vmem %s11, %s945
      %p947 = scmp.lt.s32.totalorder %s24, 1
      %s948 = scalar_select %p947, %s24, 1
      %s949 = scalar_lea.vmem %s12, %s948
      // Predicated region
      $region61: #{_lambda_.5} parent=59 // pred_check
        %p950 = pneg %p267
      $region62: #{_lambda_.5} parent=59 // pred_check_branch
        %952 = sbr.rel (%p950) target = $region64
      $region63: #{_lambda_.5} parent=59 // pred_region
        _
      $region64: #{_lambda_.5} parent=59 // pred_fallthru
        _
      // Predicated region
      $region65: #{_lambda_.5} parent=59 // pred_check
        %p953 = pneg %p293
      $region66: #{_lambda_.5} parent=59 // pred_check_branch
        %955 = sbr.rel (%p953) target = $region68
      $region67: #{_lambda_.5} parent=59 // pred_region
        _
      $region68: #{_lambda_.5} parent=59 // pred_fallthru
        _
      // Predicated region
      $region69: #{_lambda_.5} parent=59 // pred_check
        %p956 = pneg %p319
      $region70: #{_lambda_.5} parent=59 // pred_check_branch
        %958 = sbr.rel (%p956) target = $region72
      $region71: #{_lambda_.5} parent=59 // pred_region
        _
      $region72: #{_lambda_.5} parent=59 // pred_fallthru
        _
    $region60: #{_lambda_.5} parent=5 // pred_fallthru
      _
    %p959 = scmp.le.s32.totalorder 2, %s19
    // Predicated region
    $region73: #{_lambda_.5} parent=5 // pred_check
      %p960 = pneg %p959
    $region74: #{_lambda_.5} parent=5 // pred_check_branch
      %962 = sbr.rel (%p960) target = $region76
    $region75: #{_lambda_.5} parent=5 // pred_region
      %s963 = ssub.s32 %s19, 2
      // Predicated region
      $region77: #{_lambda_.5} parent=75 // pred_check
        %p964 = pneg %p273
      $region78: #{_lambda_.5} parent=75 // pred_check_branch
        %966 = sbr.rel (%p964) target = $region80
      $region79: #{_lambda_.5} parent=75 // pred_region
        %p967 = scmp.lt.s32.totalorder %s25, 1
        %s968 = scalar_select %p967, %s25, 1
        %s969 = scalar_lea.vmem %s10, %s968
      $region80: #{_lambda_.5} parent=75 // pred_fallthru
        _
      // Predicated region
      $region81: #{_lambda_.5} parent=75 // pred_check
        %p970 = pneg %p299
      $region82: #{_lambda_.5} parent=75 // pred_check_branch
        %972 = sbr.rel (%p970) target = $region84
      $region83: #{_lambda_.5} parent=75 // pred_region
        %p973 = scmp.lt.s32.totalorder %s25, 1
        %s974 = scalar_select %p973, %s25, 1
        %s975 = scalar_lea.vmem %s11, %s974
      $region84: #{_lambda_.5} parent=75 // pred_fallthru
        _
      // Predicated region
      $region85: #{_lambda_.5} parent=75 // pred_check
        %p976 = pneg %p325
      $region86: #{_lambda_.5} parent=75 // pred_check_branch
        %978 = sbr.rel (%p976) target = $region88
      $region87: #{_lambda_.5} parent=75 // pred_region
        %p979 = scmp.lt.s32.totalorder %s25, 1
        %s980 = scalar_select %p979, %s25, 1
        %s981 = scalar_lea.vmem %s12, %s980
      $region88: #{_lambda_.5} parent=75 // pred_fallthru
        _
    $region76: #{_lambda_.5} parent=5 // pred_fallthru
      _
  $region6: #{_lambda_.5} parent=0 // loop_footer
    %s23 = sadd.s32 1, %s19
  $region7: #{_lambda_.5} parent=0 // loop_footer_branch
    %18 = sbr.rel target = $region3
  $region8: #{_lambda_.5} parent=0 // loop_exit
    _

// kernel: _lambda_.6
$region0: #{_lambda_.6}
  #allocation0 [shape = 'u32[]', space=smem, size = 0x4, offset = 0x4, fixed_abs, tag = 'smem constant byte address 0x4 - core index']
  #allocation1 [shape = 'u32[144,128]{1,0:T(1,128)}', space=vmem, size = 0x12000, scoped, tag = 'internal scratch']
  %s0 = inlined_call_operand.vmem [shape: f32[6,16,16], index: 0, kind: input, shape index: {}]
  %s1 = inlined_call_operand.vmem [shape: f32[6,16,16], index: 1, kind: input, shape index: {}]
  %s2 = inlined_call_operand.vmem [shape: bf16[16,32], index: 2, kind: input, shape index: {}]
  %s3 = inlined_call_operand.vmem [shape: bf16[32,96], index: 3, kind: input, shape index: {}]
  %s4 = inlined_call_operand.vmem [shape: bf16[32,96], index: 4, kind: input, shape index: {}]
  %s5 = inlined_call_operand.vmem [shape: f32[1,96], index: 5, kind: input, shape index: {}]
  %s6 = inlined_call_operand.vmem [shape: bf16[32,32], index: 6, kind: input, shape index: {}]
  %s7 = inlined_call_operand.vmem [shape: f32[1,32], index: 7, kind: input, shape index: {}]
  %s8 = inlined_call_operand.vmem [shape: f32[12], index: 8, kind: input, shape index: {}]
  %s9 = inlined_call_operand.vmem [shape: f32[6,16,32], index: 9, kind: output, shape index: {0}]
  %s10 = inlined_call_operand.vmem [shape: f32[6,1,16], index: 10, kind: output, shape index: {1}]
  %11 = xla_tuple %s9, %s10
  %s12 = sld [smem:[#allocation0]]
  $region81: #{_lambda_.6} parent=0
    _
  %s14 = ssub.s32 1, %s12
  %s15 = scalar_select 0, %s14, %s12
  $region1: #{_lambda_.6} parent=0
    #allocation2 [shape = 'u8[512]{0}', space=smem, size = 0x200, scoped, tag = 'input window, operand 8, single buffered']
    #allocation3 [shape = 's32[2]{0}', space=sflag, size = 0x8, scoped, tag = 'scoped memory for _lambda_.6']
    %16 = vsyncpa [#allocation3], 0
    loop: start=0, step=1, limit=4
    $region2: #{_lambda_.6} parent=1 // loop_pre_header
      _
    $region3: #{_lambda_.6} parent=1 // loop_header
      %s18 = sphi 0, %s22
      %p19 = scmp.ge.s32.totalorder %s18, 4
      %s28 = sphi 0, %s30
      %s31 = sphi 0, %s28
      %s32 = sphi 0, %s31
      %s48 = sphi 0, %s32
      %s54 = sphi 0, %s56
      %s57 = sphi 0, %s54
      %s58 = sphi 0, %s57
      %s74 = sphi 0, %s58
      %s78 = sphi 0, %s78
      %s80 = sphi 0, %s78
      %s81 = sphi 0, %s80
      %s95 = sphi 0, %s81
      %s99 = sphi 0, %s99
      %s101 = sphi 0, %s99
      %s102 = sphi 0, %s101
      %s116 = sphi 0, %s102
      %s120 = sphi 0, %s120
      %s122 = sphi 0, %s120
      %s123 = sphi 0, %s122
      %s137 = sphi 0, %s123
      %s141 = sphi 0, %s141
      %s143 = sphi 0, %s141
      %s144 = sphi 0, %s143
      %s158 = sphi 0, %s144
      %s162 = sphi 0, %s162
      %s164 = sphi 0, %s162
      %s165 = sphi 0, %s164
      %s179 = sphi 0, %s165
      %s183 = sphi 0, %s183
      %s185 = sphi 0, %s183
      %s186 = sphi 0, %s185
      %s200 = sphi 0, %s186
      %s204 = sphi 0, %s204
      %s206 = sphi 0, %s204
      %s207 = sphi 0, %s206
      %s221 = sphi 0, %s207
      %s227 = sphi 0, %s229
      %s230 = sphi 0, %s227
      %s231 = sphi 0, %s230
      %s247 = sphi 0, %s231
      %s253 = sphi 0, %s255
      %s256 = sphi 0, %s253
      %s257 = sphi 0, %s256
      %s273 = sphi 0, %s257
    $region4: #{_lambda_.6} parent=1 // loop_header_branch
      %21 = sbr.rel (%p19) target = $region8
    $region5: #{_lambda_.6} parent=1 // loop_body
      %s23 = ssub.s32 %s18, 1
      %s24 = ssub.s32 %s18, 2
      %s25 = sadd.s32 %s18, 1
      %s26 = ssub.s32 %s18, %s25
      %p27 = scmp.eq.s32.totalorder %s26, 0
      %s29 = sadd.s32 %s28, 1
      %s30 = scalar_select %p27, %s28, %s29
      %p33 = pneg %p27
      %p34 = scmp.eq.s32.totalorder %s18, 1
      %p35 = por %p33, %p34
      %p36 = scmp.ne.s32.totalorder %s28, %s31
      %p37 = scmp.eq.s32.totalorder %s18, 0
      %p38 = por %p36, %p37
      %p39 = scmp.ne.s32.totalorder %s28, %s31
      %p40 = scmp.eq.s32.totalorder %s23, 1
      %p41 = por %p39, %p40
      %p42 = scmp.ne.s32.totalorder %s31, %s32
      %p43 = scmp.eq.s32.totalorder %s23, 0
      %p44 = por %p42, %p43
      %p45 = scmp.ne.s32.totalorder %s31, %s32
      %p46 = scmp.eq.s32.totalorder %s24, 1
      %p47 = por %p45, %p46
      %p49 = scmp.ne.s32.totalorder %s32, %s48
      %p50 = scmp.eq.s32.totalorder %s24, 0
      %p51 = por %p49, %p50
      %s52 = ssub.s32 %s18, %s25
      %p53 = scmp.eq.s32.totalorder %s52, 0
      %s55 = sadd.s32 %s54, 1
      %s56 = scalar_select %p53, %s54, %s55
      %p59 = pneg %p53
      %p60 = scmp.eq.s32.totalorder %s18, 1
      %p61 = por %p59, %p60
      %p62 = scmp.ne.s32.totalorder %s54, %s57
      %p63 = scmp.eq.s32.totalorder %s18, 0
      %p64 = por %p62, %p63
      %p65 = scmp.ne.s32.totalorder %s54, %s57
      %p66 = scmp.eq.s32.totalorder %s23, 1
      %p67 = por %p65, %p66
      %p68 = scmp.ne.s32.totalorder %s57, %s58
      %p69 = scmp.eq.s32.totalorder %s23, 0
      %p70 = por %p68, %p69
      %p71 = scmp.ne.s32.totalorder %s57, %s58
      %p72 = scmp.eq.s32.totalorder %s24, 1
      %p73 = por %p71, %p72
      %p75 = scmp.ne.s32.totalorder %s58, %s74
      %p76 = scmp.eq.s32.totalorder %s24, 0
      %p77 = por %p75, %p76
      %s79 = sadd.s32 %s78, 1
      %p82 = scmp.eq.s32.totalorder %s18, 1
      %p83 = scmp.ne.s32.totalorder %s78, %s80
      %p84 = scmp.eq.s32.totalorder %s18, 0
      %p85 = por %p83, %p84
      %p86 = scmp.ne.s32.totalorder %s78, %s80
      %p87 = scmp.eq.s32.totalorder %s23, 1
      %p88 = por %p86, %p87
      %p89 = scmp.ne.s32.totalorder %s80, %s81
      %p90 = scmp.eq.s32.totalorder %s23, 0
      %p91 = por %p89, %p90
      %p92 = scmp.ne.s32.totalorder %s80, %s81
      %p93 = scmp.eq.s32.totalorder %s24, 1
      %p94 = por %p92, %p93
      %p96 = scmp.ne.s32.totalorder %s81, %s95
      %p97 = scmp.eq.s32.totalorder %s24, 0
      %p98 = por %p96, %p97
      %s100 = sadd.s32 %s99, 1
      %p103 = scmp.eq.s32.totalorder %s18, 1
      %p104 = scmp.ne.s32.totalorder %s99, %s101
      %p105 = scmp.eq.s32.totalorder %s18, 0
      %p106 = por %p104, %p105
      %p107 = scmp.ne.s32.totalorder %s99, %s101
      %p108 = scmp.eq.s32.totalorder %s23, 1
      %p109 = por %p107, %p108
      %p110 = scmp.ne.s32.totalorder %s101, %s102
      %p111 = scmp.eq.s32.totalorder %s23, 0
      %p112 = por %p110, %p111
      %p113 = scmp.ne.s32.totalorder %s101, %s102
      %p114 = scmp.eq.s32.totalorder %s24, 1
      %p115 = por %p113, %p114
      %p117 = scmp.ne.s32.totalorder %s102, %s116
      %p118 = scmp.eq.s32.totalorder %s24, 0
      %p119 = por %p117, %p118
      %s121 = sadd.s32 %s120, 1
      %p124 = scmp.eq.s32.totalorder %s18, 1
      %p125 = scmp.ne.s32.totalorder %s120, %s122
      %p126 = scmp.eq.s32.totalorder %s18, 0
      %p127 = por %p125, %p126
      %p128 = scmp.ne.s32.totalorder %s120, %s122
      %p129 = scmp.eq.s32.totalorder %s23, 1
      %p130 = por %p128, %p129
      %p131 = scmp.ne.s32.totalorder %s122, %s123
      %p132 = scmp.eq.s32.totalorder %s23, 0
      %p133 = por %p131, %p132
      %p134 = scmp.ne.s32.totalorder %s122, %s123
      %p135 = scmp.eq.s32.totalorder %s24, 1
      %p136 = por %p134, %p135
      %p138 = scmp.ne.s32.totalorder %s123, %s137
      %p139 = scmp.eq.s32.totalorder %s24, 0
      %p140 = por %p138, %p139
      %s142 = sadd.s32 %s141, 1
      %p145 = scmp.eq.s32.totalorder %s18, 1
      %p146 = scmp.ne.s32.totalorder %s141, %s143
      %p147 = scmp.eq.s32.totalorder %s18, 0
      %p148 = por %p146, %p147
      %p149 = scmp.ne.s32.totalorder %s141, %s143
      %p150 = scmp.eq.s32.totalorder %s23, 1
      %p151 = por %p149, %p150
      %p152 = scmp.ne.s32.totalorder %s143, %s144
      %p153 = scmp.eq.s32.totalorder %s23, 0
      %p154 = por %p152, %p153
      %p155 = scmp.ne.s32.totalorder %s143, %s144
      %p156 = scmp.eq.s32.totalorder %s24, 1
      %p157 = por %p155, %p156
      %p159 = scmp.ne.s32.totalorder %s144, %s158
      %p160 = scmp.eq.s32.totalorder %s24, 0
      %p161 = por %p159, %p160
      %s163 = sadd.s32 %s162, 1
      %p166 = scmp.eq.s32.totalorder %s18, 1
      %p167 = scmp.ne.s32.totalorder %s162, %s164
      %p168 = scmp.eq.s32.totalorder %s18, 0
      %p169 = por %p167, %p168
      %p170 = scmp.ne.s32.totalorder %s162, %s164
      %p171 = scmp.eq.s32.totalorder %s23, 1
      %p172 = por %p170, %p171
      %p173 = scmp.ne.s32.totalorder %s164, %s165
      %p174 = scmp.eq.s32.totalorder %s23, 0
      %p175 = por %p173, %p174
      %p176 = scmp.ne.s32.totalorder %s164, %s165
      %p177 = scmp.eq.s32.totalorder %s24, 1
      %p178 = por %p176, %p177
      %p180 = scmp.ne.s32.totalorder %s165, %s179
      %p181 = scmp.eq.s32.totalorder %s24, 0
      %p182 = por %p180, %p181
      %s184 = sadd.s32 %s183, 1
      %p187 = scmp.eq.s32.totalorder %s18, 1
      %p188 = scmp.ne.s32.totalorder %s183, %s185
      %p189 = scmp.eq.s32.totalorder %s18, 0
      %p190 = por %p188, %p189
      %p191 = scmp.ne.s32.totalorder %s183, %s185
      %p192 = scmp.eq.s32.totalorder %s23, 1
      %p193 = por %p191, %p192
      %p194 = scmp.ne.s32.totalorder %s185, %s186
      %p195 = scmp.eq.s32.totalorder %s23, 0
      %p196 = por %p194, %p195
      %p197 = scmp.ne.s32.totalorder %s185, %s186
      %p198 = scmp.eq.s32.totalorder %s24, 1
      %p199 = por %p197, %p198
      %p201 = scmp.ne.s32.totalorder %s186, %s200
      %p202 = scmp.eq.s32.totalorder %s24, 0
      %p203 = por %p201, %p202
      %s205 = sadd.s32 %s204, 1
      %p208 = scmp.eq.s32.totalorder %s18, 1
      %p209 = scmp.ne.s32.totalorder %s204, %s206
      %p210 = scmp.eq.s32.totalorder %s18, 0
      %p211 = por %p209, %p210
      %p212 = scmp.ne.s32.totalorder %s204, %s206
      %p213 = scmp.eq.s32.totalorder %s23, 1
      %p214 = por %p212, %p213
      %p215 = scmp.ne.s32.totalorder %s206, %s207
      %p216 = scmp.eq.s32.totalorder %s23, 0
      %p217 = por %p215, %p216
      %p218 = scmp.ne.s32.totalorder %s206, %s207
      %p219 = scmp.eq.s32.totalorder %s24, 1
      %p220 = por %p218, %p219
      %p222 = scmp.ne.s32.totalorder %s207, %s221
      %p223 = scmp.eq.s32.totalorder %s24, 0
      %p224 = por %p222, %p223
      %s225 = ssub.s32 %s18, %s25
      %p226 = scmp.eq.s32.totalorder %s225, 0
      %s228 = sadd.s32 %s227, 1
      %s229 = scalar_select %p226, %s227, %s228
      %p232 = pneg %p226
      %p233 = scmp.eq.s32.totalorder %s18, 1
      %p234 = por %p232, %p233
      %p235 = scmp.ne.s32.totalorder %s227, %s230
      %p236 = scmp.eq.s32.totalorder %s18, 0
      %p237 = por %p235, %p236
      %p238 = scmp.ne.s32.totalorder %s227, %s230
      %p239 = scmp.eq.s32.totalorder %s23, 1
      %p240 = por %p238, %p239
      %p241 = scmp.ne.s32.totalorder %s230, %s231
      %p242 = scmp.eq.s32.totalorder %s23, 0
      %p243 = por %p241, %p242
      %p244 = scmp.ne.s32.totalorder %s230, %s231
      %p245 = scmp.eq.s32.totalorder %s24, 1
      %p246 = por %p244, %p245
      %p248 = scmp.ne.s32.totalorder %s231, %s247
      %p249 = scmp.eq.s32.totalorder %s24, 0
      %p250 = por %p248, %p249
      %s251 = ssub.s32 %s18, %s25
      %p252 = scmp.eq.s32.totalorder %s251, 0
      %s254 = sadd.s32 %s253, 1
      %s255 = scalar_select %p252, %s253, %s254
      %p258 = pneg %p252
      %p259 = scmp.eq.s32.totalorder %s18, 1
      %p260 = por %p258, %p259
      %p261 = scmp.ne.s32.totalorder %s253, %s256
      %p262 = scmp.eq.s32.totalorder %s18, 0
      %p263 = por %p261, %p262
      %p264 = scmp.ne.s32.totalorder %s253, %s256
      %p265 = scmp.eq.s32.totalorder %s23, 1
      %p266 = por %p264, %p265
      %p267 = scmp.ne.s32.totalorder %s256, %s257
      %p268 = scmp.eq.s32.totalorder %s23, 0
      %p269 = por %p267, %p268
      %p270 = scmp.ne.s32.totalorder %s256, %s257
      %p271 = scmp.eq.s32.totalorder %s24, 1
      %p272 = por %p270, %p271
      %p274 = scmp.ne.s32.totalorder %s257, %s273
      %p275 = scmp.eq.s32.totalorder %s24, 0
      %p276 = por %p274, %p275
      %p277 = scmp.le.s32.totalorder 1, %s18
      %p278 = scmp.lt.s32.totalorder %s18, 3
      %p279 = pnand %p277, %p278
      %p280 = pneg %p279
      // Predicated region
      $region9: #{_lambda_.6} parent=5 // pred_check
        _
      $region10: #{_lambda_.6} parent=5 // pred_check_branch
        %282 = sbr.rel (%p279) target = $region12
      $region11: #{_lambda_.6} parent=5 // pred_region
        %s283 = ssub.s32 %s18, 1
        // Predicated region
        $region13: #{_lambda_.6} parent=11 // pred_check
          %p284 = pneg %p91
        $region14: #{_lambda_.6} parent=11 // pred_check_branch
          %286 = sbr.rel (%p284) target = $region16
        $region15: #{_lambda_.6} parent=11 // pred_region
          _
        $region16: #{_lambda_.6} parent=11 // pred_fallthru
          _
        // Predicated region
        $region17: #{_lambda_.6} parent=11 // pred_check
          %p287 = pneg %p112
        $region18: #{_lambda_.6} parent=11 // pred_check_branch
          %289 = sbr.rel (%p287) target = $region20
        $region19: #{_lambda_.6} parent=11 // pred_region
          _
        $region20: #{_lambda_.6} parent=11 // pred_fallthru
          _
        // Predicated region
        $region21: #{_lambda_.6} parent=11 // pred_check
          %p290 = pneg %p133
        $region22: #{_lambda_.6} parent=11 // pred_check_branch
          %292 = sbr.rel (%p290) target = $region24
        $region23: #{_lambda_.6} parent=11 // pred_region
          _
        $region24: #{_lambda_.6} parent=11 // pred_fallthru
          _
        // Predicated region
        $region25: #{_lambda_.6} parent=11 // pred_check
          %p293 = pneg %p154
        $region26: #{_lambda_.6} parent=11 // pred_check_branch
          %295 = sbr.rel (%p293) target = $region28
        $region27: #{_lambda_.6} parent=11 // pred_region
          _
        $region28: #{_lambda_.6} parent=11 // pred_fallthru
          _
        // Predicated region
        $region29: #{_lambda_.6} parent=11 // pred_check
          %p296 = pneg %p175
        $region30: #{_lambda_.6} parent=11 // pred_check_branch
          %298 = sbr.rel (%p296) target = $region32
        $region31: #{_lambda_.6} parent=11 // pred_region
          _
        $region32: #{_lambda_.6} parent=11 // pred_fallthru
          _
        // Predicated region
        $region33: #{_lambda_.6} parent=11 // pred_check
          %p299 = pneg %p196
        $region34: #{_lambda_.6} parent=11 // pred_check_branch
          %301 = sbr.rel (%p299) target = $region36
        $region35: #{_lambda_.6} parent=11 // pred_region
          _
        $region36: #{_lambda_.6} parent=11 // pred_fallthru
          _
        // Predicated region
        $region37: #{_lambda_.6} parent=11 // pred_check
          %p302 = pneg %p217
        $region38: #{_lambda_.6} parent=11 // pred_check_branch
          %304 = sbr.rel (%p302) target = $region40
        $region39: #{_lambda_.6} parent=11 // pred_region
          %s306 = ssub.s32 16, 16
          %307 = vsyncadd [#allocation3], %s306
          %s309 = sshll.u32 %s8, 4
          %s310 = int_to_ptr.vmem [resolvable:$true] %s309
          %312 = dma.vmem_to_smem %s310, 16, [#allocation2], [#allocation3]
        $region40: #{_lambda_.6} parent=11 // pred_fallthru
          _
      $region12: #{_lambda_.6} parent=5 // pred_fallthru
        _
      %p313 = scmp.lt.s32.totalorder %s18, 2
      // Predicated region
      $region41: #{_lambda_.6} parent=5 // pred_check
        %p314 = pneg %p313
      $region42: #{_lambda_.6} parent=5 // pred_check_branch
        %316 = sbr.rel (%p314) target = $region44
      $region43: #{_lambda_.6} parent=5 // pred_region
        // Predicated region
        $region45: #{_lambda_.6} parent=43 // pred_check
          %p317 = pneg %p38
        $region46: #{_lambda_.6} parent=43 // pred_check_branch
          %319 = sbr.rel (%p317) target = $region48
        $region47: #{_lambda_.6} parent=43 // pred_region
          %s320 = smul.u32 3, %s18
          %p321 = scmp.lt.s32.totalorder %s320, 5
          %s322 = scalar_select %p321, %s320, 5
          %s323 = smul.addr %s322, 2
          %s324 = smul.addr %s323, 8
          %s325 = scalar_lea.vmem %s0, %s324
          %s326 = smul.u32 3, %s18
        $region48: #{_lambda_.6} parent=43 // pred_fallthru
          _
        // Predicated region
        $region49: #{_lambda_.6} parent=43 // pred_check
          %p327 = pneg %p64
        $region50: #{_lambda_.6} parent=43 // pred_check_branch
          %329 = sbr.rel (%p327) target = $region52
        $region51: #{_lambda_.6} parent=43 // pred_region
          %s330 = smul.u32 3, %s18
          %p331 = scmp.lt.s32.totalorder %s330, 5
          %s332 = scalar_select %p331, %s330, 5
          %s333 = smul.addr %s332, 2
          %s334 = smul.addr %s333, 8
          %s335 = scalar_lea.vmem %s1, %s334
          %s336 = smul.u32 3, %s18
        $region52: #{_lambda_.6} parent=43 // pred_fallthru
          _
      $region44: #{_lambda_.6} parent=5 // pred_fallthru
        _
      %p337 = scmp.le.s32.totalorder 1, %s18
      %p338 = scmp.lt.s32.totalorder %s18, 3
      %p339 = pnand %p337, %p338
      %p340 = pneg %p339
      // Predicated region
      $region53: #{_lambda_.6} parent=5 // pred_check
        _
      $region54: #{_lambda_.6} parent=5 // pred_check_branch
        %342 = sbr.rel (%p339) target = $region56
      $region55: #{_lambda_.6} parent=5 // pred_region
        %s343 = ssub.s32 %s18, 1
        // Predicated region
        $region57: #{_lambda_.6} parent=55 // pred_check
          %p344 = pneg %p217
        $region58: #{_lambda_.6} parent=55 // pred_check_branch
          %346 = sbr.rel (%p344) target = $region60
        $region59: #{_lambda_.6} parent=55 // pred_region
          %347 = dma.done [#allocation3], 16
        $region60: #{_lambda_.6} parent=55 // pred_fallthru
          _
        %348 = sfence
        %s349 = smul.u32 3, %s23
        %p350 = scmp.lt.s32.totalorder %s349, 5
        %s351 = scalar_select %p350, %s349, 5
        %s352 = smul.addr %s351, 2
        %s353 = smul.addr %s352, 8
        %s354 = scalar_lea.vmem %s0, %s353
        %p355 = pneg %p44
        %p356 = pneg %p41
        %s357 = smul.u32 3, %s23
        %p358 = scmp.lt.s32.totalorder %s357, 5
        %s359 = scalar_select %p358, %s357, 5
        %s360 = smul.addr %s359, 2
        %s361 = smul.addr %s360, 8
        %s362 = scalar_lea.vmem %s1, %s361
        %p363 = pneg %p70
        %p364 = pneg %p67
        %p365 = pneg %p91
        %p366 = pneg %p88
        %p367 = pneg %p112
        %p368 = pneg %p109
        %p369 = pneg %p133
        %p370 = pneg %p130
        %p371 = pneg %p154
        %p372 = pneg %p151
        %p373 = pneg %p175
        %p374 = pneg %p172
        %p375 = pneg %p196
        %p376 = pneg %p193
        %p377 = pneg %p217
        %p378 = pneg %p214
        %p379 = pneg %p243
        %p380 = pneg %p240
        %s381 = smul.u32 3, %s23
        %p382 = scmp.lt.s32.totalorder %s381, 5
        %s383 = scalar_select %p382, %s381, 5
        %s384 = smul.addr %s383, 2
        %s385 = smul.addr %s384, 8
        %s386 = scalar_lea.vmem %s9, %s385
        %p387 = pneg %p269
        %p388 = pneg %p266
        %s389 = smul.u32 3, %s23
        %p390 = scmp.lt.s32.totalorder %s389, 5
        %s391 = scalar_select %p390, %s389, 5
        %s392 = scalar_lea.vmem %s10, %s391
        %s393 = smul.u32 3, %s23
        %p394 = scmp.lt.s32.totalorder %s393, 5
        %s395 = scalar_select %p394, %s393, 5
        %s396 = smul.addr %s395, 2
        %s397 = smul.addr %s396, 8
        %s398 = scalar_lea.vmem %s0, %s397
        %s399 = smul.u32 3, %s23
        %s400 = smul.u32 3, %s23
        %p401 = scmp.lt.s32.totalorder %s400, 5
        %s402 = scalar_select %p401, %s400, 5
        %s403 = smul.addr %s402, 2
        %s404 = smul.addr %s403, 8
        %s405 = scalar_lea.vmem %s1, %s404
        %s406 = smul.u32 3, %s23
        %s407 = smul.u32 3, %s23
        %p408 = scmp.lt.s32.totalorder %s407, 5
        %s409 = scalar_select %p408, %s407, 5
        %s410 = smul.addr %s409, 2
        %s411 = smul.addr %s410, 8
        %s412 = scalar_lea.vmem %s9, %s411
        %s413 = smul.u32 3, %s23
        %s414 = smul.u32 3, %s23
        %p415 = scmp.lt.s32.totalorder %s414, 5
        %s416 = scalar_select %p415, %s414, 5
        %s417 = scalar_lea.vmem %s10, %s416
        %s418 = smul.u32 3, %s23
        %v420 = vld [vmem:[%s398] sm:$0xff]
        %v421 = vld [vmem:[%s398 + $0x8] sm:$0xff]
        %v422 = vld [vmem:[%s398 + $0x10] sm:$0xff]
        %v423 = vld [vmem:[%s398 + $0x18] sm:$0xff]
        %v424 = vld [vmem:[%s398 + $0x20] sm:$0xff]
        %v425 = vld [vmem:[%s398 + $0x28] sm:$0xff]
        %v426 = vld [vmem:[%s405] sm:$0xff]
        %v427 = vld [vmem:[%s405 + $0x8] sm:$0xff]
        %v428 = vld [vmem:[%s405 + $0x10] sm:$0xff]
        %v429 = vld [vmem:[%s405 + $0x18] sm:$0xff]
        %v430 = vld [vmem:[%s405 + $0x20] sm:$0xff]
        %v431 = vld [vmem:[%s405 + $0x28] sm:$0xff]
        %v432 = vpack.c.bf16 %v427, %v426
        %v433 = vpack.c.bf16 %v429, %v428
        %v434 = vpack.c.bf16 %v431, %v430
        %v435 = vld [vmem:[%s2] sm:$0xf]
        %v436 = vld [vmem:[%s2 + $0x4] sm:$0xf]
        %v439 = vunpack.c.l.b16 %v435
        %v440 = vunpack.c.l.b16 %v436
        %v441 = vpack.c.b16 %v440, %v439
        %vm443 = vcmask 130048
        %v445 = vsel %vm443, %v432, 0
        %v448 = vsel %vm443, %v433, 0
        %v451 = vsel %vm443, %v434, 0
        %453 = vmatprep.subr.bf16.mxu0 0
        %454 = vmatpush1.bf16.msra.mxu0 0
        %455 = vmatprep.subr.bf16.mxu0 0
        %456 = vmatpush1.bf16.msra.mxu0 0
        %457 = vmatprep.subr.bf16.mxu0 0
        %458 = vmatpush1.bf16.msra.mxu0 0
        %459 = vmatprep.subr.bf16.mxu0 0
        %460 = vmatpush1.bf16.msra.mxu0 0
        %461 = vmatprep.subr.bf16.mxu0 0
        %462 = vmatpush1.bf16.msra.mxu0 0
        %463 = vmatprep.subr.bf16.mxu0 0
        %464 = vmatpush1.bf16.msra.mxu0 0
        %465 = vmatprep.subr.bf16.mxu0 0
        %466 = vmatpush1.bf16.msra.mxu0 0
        %467 = vmatprep.subr.bf16.mxu0 0
        %468 = vmatpush1.bf16.msra.mxu0 %v441
        %469 = vmatprep.subr.bf16.mxu0 0
        %470 = vmatpush2.bf16.msra.mxu0 0
        %471 = vmatprep.subr.bf16.mxu0 0
        %472 = vmatpush2.bf16.msra.mxu0 0
        %473 = vmatprep.subr.bf16.mxu0 0
        %474 = vmatpush2.bf16.msra.mxu0 0
        %475 = vmatprep.subr.bf16.mxu0 0
        %476 = vmatpush2.bf16.msra.mxu0 0
        %477 = vmatprep.subr.bf16.mxu0 0
        %478 = vmatpush2.bf16.msra.mxu0 0
        %479 = vmatprep.subr.bf16.mxu0 0
        %480 = vmatpush2.bf16.msra.mxu0 0
        %481 = vmatprep.subr.bf16.mxu0 0
        %482 = vmatpush2.bf16.msra.mxu0 0
        %483 = vmatprep.subr.bf16.mxu0 0
        %484 = vmatpush2.bf16.msra.mxu0 0
        %485 = vmatprep.mubr.bf16.mxu0 0
        %486 = vmatmul.mubr.bf16.gmra.mxu0 %v445
        %v487 = vpop.f32.mrf.mxu0
        %v488 = vadd.f32 0.0, %v487
        %v489 = vpop.f32.mrf.mxu0
        %v490 = vpop.f32.mrf.mxu0
        %v491 = vadd.f32 0.0, %v490
        %v492 = vpop.f32.mrf.mxu0
        %493 = vmatprep.mubr.bf16.mxu0 0
        %494 = vmatmul.mubr.bf16.gmra.mxu0 %v448
        %v495 = vpop.f32.mrf.mxu0
        %v496 = vadd.f32 0.0, %v495
        %v497 = vpop.f32.mrf.mxu0
        %v498 = vpop.f32.mrf.mxu0
        %v499 = vadd.f32 0.0, %v498
        %v500 = vpop.f32.mrf.mxu0
        %501 = vmatprep.mubr.bf16.mxu0 0
        %502 = vmatmul.mubr.bf16.gmra.mxu0 %v451
        %v503 = vpop.f32.mrf.mxu0
        %v504 = vadd.f32 0.0, %v503
        %v505 = vpop.f32.mrf.mxu0
        %v506 = vpop.f32.mrf.mxu0
        %v507 = vadd.f32 0.0, %v506
        %v508 = vpop.f32.mrf.mxu0
        %509 = vdwg.mxu0
        %v510 = vpack.c.bf16 %v421, %v420
        %v511 = vpack.c.bf16 %v423, %v422
        %v512 = vpack.c.bf16 %v425, %v424
        %v513 = vpack.c.bf16 %v491, %v488
        %v514 = vpack.c.bf16 %v499, %v496
        %v515 = vpack.c.bf16 %v507, %v504
        %v517 = vsel %vm443, %v510, 0
        %519 = vmatprep.subr.bf16.mxu0 0
        %520 = vmatpush1.bf16.msra.mxu0 0
        %521 = vmatprep.subr.bf16.mxu0 0
        %522 = vmatpush1.bf16.msra.mxu0 0
        %523 = vmatprep.subr.bf16.mxu0 0
        %524 = vmatpush1.bf16.msra.mxu0 0
        %525 = vmatprep.subr.bf16.mxu0 0
        %526 = vmatpush1.bf16.msra.mxu0 0
        %527 = vmatprep.subr.bf16.mxu0 0
        %528 = vmatpush1.bf16.msra.mxu0 0
        %529 = vmatprep.subr.bf16.mxu0 0
        %530 = vmatpush1.bf16.msra.mxu0 0
        %531 = vmatprep.subr.bf16.mxu0 0
        %532 = vmatpush1.bf16.msra.mxu0 0
        %533 = vmatprep.subr.bf16.mxu0 0
        %534 = vmatpush1.bf16.msra.mxu0 %v513
        %535 = vmatprep.subr.bf16.mxu0 0
        %536 = vmatpush2.bf16.msra.mxu0 0
        %537 = vmatprep.subr.bf16.mxu0 0
        %538 = vmatpush2.bf16.msra.mxu0 0
        %539 = vmatprep.subr.bf16.mxu0 0
        %540 = vmatpush2.bf16.msra.mxu0 0
        %541 = vmatprep.subr.bf16.mxu0 0
        %542 = vmatpush2.bf16.msra.mxu0 0
        %543 = vmatprep.subr.bf16.mxu0 0
        %544 = vmatpush2.bf16.msra.mxu0 0
        %545 = vmatprep.subr.bf16.mxu0 0
        %546 = vmatpush2.bf16.msra.mxu0 0
        %547 = vmatprep.subr.bf16.mxu0 0
        %548 = vmatpush2.bf16.msra.mxu0 0
        %549 = vmatprep.subr.bf16.mxu0 0
        %550 = vmatpush2.bf16.msra.mxu0 0
        %551 = vmatprep.mubr.bf16.mxu0 0
        %552 = vmatmul.mubr.bf16.gmra.mxu0 %v517
        %v553 = vpop.f32.mrf.mxu0
        %v554 = vadd.f32 0.0, %v553
        %v555 = vpop.f32.mrf.mxu0
        %v556 = vpop.f32.mrf.mxu0
        %v557 = vadd.f32 0.0, %v556
        %v558 = vpop.f32.mrf.mxu0
        %559 = vdwg.mxu0
        %v561 = vsel %vm443, %v511, 0
        %563 = vmatprep.subr.bf16.mxu0 0
        %564 = vmatpush1.bf16.msra.mxu0 0
        %565 = vmatprep.subr.bf16.mxu0 0
        %566 = vmatpush1.bf16.msra.mxu0 0
        %567 = vmatprep.subr.bf16.mxu0 0
        %568 = vmatpush1.bf16.msra.mxu0 0
        %569 = vmatprep.subr.bf16.mxu0 0
        %570 = vmatpush1.bf16.msra.mxu0 0
        %571 = vmatprep.subr.bf16.mxu0 0
        %572 = vmatpush1.bf16.msra.mxu0 0
        %573 = vmatprep.subr.bf16.mxu0 0
        %574 = vmatpush1.bf16.msra.mxu0 0
        %575 = vmatprep.subr.bf16.mxu0 0
        %576 = vmatpush1.bf16.msra.mxu0 0
        %577 = vmatprep.subr.bf16.mxu0 0
        %578 = vmatpush1.bf16.msra.mxu0 %v514
        %579 = vmatprep.subr.bf16.mxu0 0
        %580 = vmatpush2.bf16.msra.mxu0 0
        %581 = vmatprep.subr.bf16.mxu0 0
        %582 = vmatpush2.bf16.msra.mxu0 0
        %583 = vmatprep.subr.bf16.mxu0 0
        %584 = vmatpush2.bf16.msra.mxu0 0
        %585 = vmatprep.subr.bf16.mxu0 0
        %586 = vmatpush2.bf16.msra.mxu0 0
        %587 = vmatprep.subr.bf16.mxu0 0
        %588 = vmatpush2.bf16.msra.mxu0 0
        %589 = vmatprep.subr.bf16.mxu0 0
        %590 = vmatpush2.bf16.msra.mxu0 0
        %591 = vmatprep.subr.bf16.mxu0 0
        %592 = vmatpush2.bf16.msra.mxu0 0
        %593 = vmatprep.subr.bf16.mxu0 0
        %594 = vmatpush2.bf16.msra.mxu0 0
        %595 = vmatprep.mubr.bf16.mxu0 0
        %596 = vmatmul.mubr.bf16.gmra.mxu0 %v561
        %v597 = vpop.f32.mrf.mxu0
        %v598 = vadd.f32 0.0, %v597
        %v599 = vpop.f32.mrf.mxu0
        %v600 = vpop.f32.mrf.mxu0
        %v601 = vadd.f32 0.0, %v600
        %v602 = vpop.f32.mrf.mxu0
        %603 = vdwg.mxu0
        %v605 = vsel %vm443, %v512, 0
        %607 = vmatprep.subr.bf16.mxu0 0
        %608 = vmatpush1.bf16.msra.mxu0 0
        %609 = vmatprep.subr.bf16.mxu0 0
        %610 = vmatpush1.bf16.msra.mxu0 0
        %611 = vmatprep.subr.bf16.mxu0 0
        %612 = vmatpush1.bf16.msra.mxu0 0
        %613 = vmatprep.subr.bf16.mxu0 0
        %614 = vmatpush1.bf16.msra.mxu0 0
        %615 = vmatprep.subr.bf16.mxu0 0
        %616 = vmatpush1.bf16.msra.mxu0 0
        %617 = vmatprep.subr.bf16.mxu0 0
        %618 = vmatpush1.bf16.msra.mxu0 0
        %619 = vmatprep.subr.bf16.mxu0 0
        %620 = vmatpush1.bf16.msra.mxu0 0
        %621 = vmatprep.subr.bf16.mxu0 0
        %622 = vmatpush1.bf16.msra.mxu0 %v515
        %623 = vmatprep.subr.bf16.mxu0 0
        %624 = vmatpush2.bf16.msra.mxu0 0
        %625 = vmatprep.subr.bf16.mxu0 0
        %626 = vmatpush2.bf16.msra.mxu0 0
        %627 = vmatprep.subr.bf16.mxu0 0
        %628 = vmatpush2.bf16.msra.mxu0 0
        %629 = vmatprep.subr.bf16.mxu0 0
        %630 = vmatpush2.bf16.msra.mxu0 0
        %631 = vmatprep.subr.bf16.mxu0 0
        %632 = vmatpush2.bf16.msra.mxu0 0
        %633 = vmatprep.subr.bf16.mxu0 0
        %634 = vmatpush2.bf16.msra.mxu0 0
        %635 = vmatprep.subr.bf16.mxu0 0
        %636 = vmatpush2.bf16.msra.mxu0 0
        %637 = vmatprep.subr.bf16.mxu0 0
        %638 = vmatpush2.bf16.msra.mxu0 0
        %639 = vmatprep.mubr.bf16.mxu0 0
        %640 = vmatmul.mubr.bf16.gmra.mxu0 %v605
        %v641 = vpop.f32.mrf.mxu0
        %v642 = vadd.f32 0.0, %v641
        %v643 = vpop.f32.mrf.mxu0
        %v644 = vpop.f32.mrf.mxu0
        %v645 = vadd.f32 0.0, %v644
        %v646 = vpop.f32.mrf.mxu0
        %647 = vdwg.mxu0
        %v648 = vpack.c.bf16 %v557, %v554
        %v649 = vpack.c.bf16 %v601, %v598
        %v650 = vpack.c.bf16 %v645, %v642
        %v651 = vld [vmem:[%s3] sm:$0xf]
        %v652 = vld [vmem:[%s3 + $0x4] sm:$0xf]
        %v653 = vld [vmem:[%s3 + $0x8] sm:$0xf]
        %v654 = vld [vmem:[%s3 + $0xc] sm:$0xf]
        %v655 = vld [vmem:[%s4] sm:$0xf]
        %v656 = vld [vmem:[%s4 + $0x4] sm:$0xf]
        %v657 = vld [vmem:[%s4 + $0x8] sm:$0xf]
        %v658 = vld [vmem:[%s4 + $0xc] sm:$0xf]
        %v663 = vunpack.c.l.b16 %v655
        %v664 = vunpack.c.l.b16 %v656
        %v665 = vunpack.c.l.b16 %v657
        %v666 = vunpack.c.l.b16 %v658
        %v667 = vpack.c.b16 %v664, %v663
        %v668 = vpack.c.b16 %v666, %v665
        %vm671 = vcmask 261120
        %v673 = vsel %vm671, %v513, 0
        %v676 = vsel %vm671, %v514, 0
        %v679 = vsel %vm671, %v515, 0
        %681 = vmatprep.subr.bf16.mxu0 0
        %682 = vmatpush1.bf16.msra.mxu0 0
        %683 = vmatprep.subr.bf16.mxu0 0
        %684 = vmatpush1.bf16.msra.mxu0 0
        %685 = vmatprep.subr.bf16.mxu0 0
        %686 = vmatpush1.bf16.msra.mxu0 0
        %687 = vmatprep.subr.bf16.mxu0 0
        %688 = vmatpush1.bf16.msra.mxu0 0
        %689 = vmatprep.subr.bf16.mxu0 0
        %690 = vmatpush1.bf16.msra.mxu0 0
        %691 = vmatprep.subr.bf16.mxu0 0
        %692 = vmatpush1.bf16.msra.mxu0 0
        %693 = vmatprep.subr.bf16.mxu0 0
        %694 = vmatpush1.bf16.msra.mxu0 %v668
        %695 = vmatprep.subr.bf16.mxu0 0
        %696 = vmatpush1.bf16.msra.mxu0 %v667
        %697 = vmatprep.subr.bf16.mxu0 0
        %698 = vmatpush2.bf16.msra.mxu0 0
        %699 = vmatprep.subr.bf16.mxu0 0
        %700 = vmatpush2.bf16.msra.mxu0 0
        %701 = vmatprep.subr.bf16.mxu0 0
        %702 = vmatpush2.bf16.msra.mxu0 0
        %703 = vmatprep.subr.bf16.mxu0 0
        %704 = vmatpush2.bf16.msra.mxu0 0
        %705 = vmatprep.subr.bf16.mxu0 0
        %706 = vmatpush2.bf16.msra.mxu0 0
        %707 = vmatprep.subr.bf16.mxu0 0
        %708 = vmatpush2.bf16.msra.mxu0 0
        %709 = vmatprep.subr.bf16.mxu0 0
        %710 = vmatpush2.bf16.msra.mxu0 0
        %711 = vmatprep.subr.bf16.mxu0 0
        %712 = vmatpush2.bf16.msra.mxu0 0
        %713 = vmatprep.mubr.bf16.mxu0 0
        %714 = vmatmul.mubr.bf16.gmra.mxu0 %v673
        %v715 = vpop.f32.mrf.mxu0
        %v716 = vadd.f32 0.0, %v715
        %v717 = vpop.f32.mrf.mxu0
        %v718 = vpop.f32.mrf.mxu0
        %v719 = vadd.f32 0.0, %v718
        %v720 = vpop.f32.mrf.mxu0
        %721 = vmatprep.mubr.bf16.mxu0 0
        %722 = vmatmul.mubr.bf16.gmra.mxu0 %v676
        %v723 = vpop.f32.mrf.mxu0
        %v724 = vadd.f32 0.0, %v723
        %v725 = vpop.f32.mrf.mxu0
        %v726 = vpop.f32.mrf.mxu0
        %v727 = vadd.f32 0.0, %v726
        %v728 = vpop.f32.mrf.mxu0
        %729 = vmatprep.mubr.bf16.mxu0 0
        %730 = vmatmul.mubr.bf16.gmra.mxu0 %v679
        %v731 = vpop.f32.mrf.mxu0
        %v732 = vadd.f32 0.0, %v731
        %v733 = vpop.f32.mrf.mxu0
        %v734 = vpop.f32.mrf.mxu0
        %v735 = vadd.f32 0.0, %v734
        %v736 = vpop.f32.mrf.mxu0
        %737 = vdwg.mxu0
        %v742 = vunpack.c.l.b16 %v651
        %v743 = vunpack.c.l.b16 %v652
        %v744 = vunpack.c.l.b16 %v653
        %v745 = vunpack.c.l.b16 %v654
        %v746 = vpack.c.b16 %v743, %v742
        %v747 = vpack.c.b16 %v745, %v744
        %v751 = vsel %vm671, %v648, 0
        %v754 = vsel %vm671, %v649, 0
        %v757 = vsel %vm671, %v650, 0
        %759 = vmatprep.subr.bf16.mxu0 0
        %760 = vmatpush1.bf16.msra.mxu0 0
        %761 = vmatprep.subr.bf16.mxu0 0
        %762 = vmatpush1.bf16.msra.mxu0 0
        %763 = vmatprep.subr.bf16.mxu0 0
        %764 = vmatpush1.bf16.msra.mxu0 0
        %765 = vmatprep.subr.bf16.mxu0 0
        %766 = vmatpush1.bf16.msra.mxu0 0
        %767 = vmatprep.subr.bf16.mxu0 0
        %768 = vmatpush1.bf16.msra.mxu0 0
        %769 = vmatprep.subr.bf16.mxu0 0
        %770 = vmatpush1.bf16.msra.mxu0 0
        %771 = vmatprep.subr.bf16.mxu0 0
        %772 = vmatpush1.bf16.msra.mxu0 %v747
        %773 = vmatprep.subr.bf16.mxu0 0
        %774 = vmatpush1.bf16.msra.mxu0 %v746
        %775 = vmatprep.subr.bf16.mxu0 0
        %776 = vmatpush2.bf16.msra.mxu0 0
        %777 = vmatprep.subr.bf16.mxu0 0
        %778 = vmatpush2.bf16.msra.mxu0 0
        %779 = vmatprep.subr.bf16.mxu0 0
        %780 = vmatpush2.bf16.msra.mxu0 0
        %781 = vmatprep.subr.bf16.mxu0 0
        %782 = vmatpush2.bf16.msra.mxu0 0
        %783 = vmatprep.subr.bf16.mxu0 0
        %784 = vmatpush2.bf16.msra.mxu0 0
        %785 = vmatprep.subr.bf16.mxu0 0
        %786 = vmatpush2.bf16.msra.mxu0 0
        %787 = vmatprep.subr.bf16.mxu0 0
        %788 = vmatpush2.bf16.msra.mxu0 0
        %789 = vmatprep.subr.bf16.mxu0 0
        %790 = vmatpush2.bf16.msra.mxu0 0
        %791 = vmatprep.mubr.bf16.mxu0 0
        %792 = vmatmul.mubr.bf16.gmra.mxu0 %v751
        %v793 = vpop.f32.mrf.mxu0
        %v794 = vadd.f32 %v716, %v793
        %v795 = vpop.f32.mrf.mxu0
        %v796 = vpop.f32.mrf.mxu0
        %v797 = vadd.f32 %v719, %v796
        %v798 = vpop.f32.mrf.mxu0
        %799 = vmatprep.mubr.bf16.mxu0 0
        %800 = vmatmul.mubr.bf16.gmra.mxu0 %v754
        %v801 = vpop.f32.mrf.mxu0
        %v802 = vadd.f32 %v724, %v801
        %v803 = vpop.f32.mrf.mxu0
        %v804 = vpop.f32.mrf.mxu0
        %v805 = vadd.f32 %v727, %v804
        %v806 = vpop.f32.mrf.mxu0
        %807 = vmatprep.mubr.bf16.mxu0 0
        %808 = vmatmul.mubr.bf16.gmra.mxu0 %v757
        %v809 = vpop.f32.mrf.mxu0
        %v810 = vadd.f32 %v732, %v809
        %v811 = vpop.f32.mrf.mxu0
        %v812 = vpop.f32.mrf.mxu0
        %v813 = vadd.f32 %v735, %v812
        %v814 = vpop.f32.mrf.mxu0
        %815 = vdwg.mxu0
        %v816 = vld [vmem:[%s5] sm:$0x1]
        %v818 = vlaneseq
        %v819 = vshrl.u32 %v818, 7
        %v820 = vsub.s32 0, %v819
        %v821 = vrot.slane %v816, %v820
        %v823 = vadd.f32 %v794, %v821
        %v824 = vadd.f32 %v797, %v821
        %v825 = vadd.f32 %v802, %v821
        %v826 = vadd.f32 %v805, %v821
        %v827 = vadd.f32 %v810, %v821
        %v828 = vadd.f32 %v813, %v821
        %v829 = vxor.u32 %v823, 2147483648
        %v830 = vxor.u32 %v824, 2147483648
        %v831 = vxor.u32 %v825, 2147483648
        %v832 = vxor.u32 %v826, 2147483648
        %v833 = vxor.u32 %v827, 2147483648
        %v834 = vxor.u32 %v828, 2147483648
        %v835 = vmul.f32 %v829, 1.442695
        %v836 = vpow.pop %v835
        %v837 = vmul.f32 %v830, 1.442695
        %v838 = vpow.pop %v837
        %v839 = vmul.f32 %v831, 1.442695
        %v840 = vpow.pop %v839
        %v841 = vmul.f32 %v832, 1.442695
        %v842 = vpow.pop %v841
        %v843 = vmul.f32 %v833, 1.442695
        %v844 = vpow.pop %v843
        %v845 = vmul.f32 %v834, 1.442695
        %v846 = vpow.pop %v845
        %v847 = vadd.f32 %v836, 1.0
        %v848 = vadd.f32 %v838, 1.0
        %v849 = vadd.f32 %v840, 1.0
        %v850 = vadd.f32 %v842, 1.0
        %v851 = vadd.f32 %v844, 1.0
        %v852 = vadd.f32 %v846, 1.0
        %v853 = vrcp.pop %v847
        %v854 = vmul.f32 1.0, %v853
        %v855 = vrcp.pop %v848
        %v856 = vmul.f32 1.0, %v855
        %v857 = vrcp.pop %v849
        %v858 = vmul.f32 1.0, %v857
        %v859 = vrcp.pop %v850
        %v860 = vmul.f32 1.0, %v859
        %v861 = vrcp.pop %v851
        %v862 = vmul.f32 1.0, %v861
        %v863 = vrcp.pop %v852
        %v864 = vmul.f32 1.0, %v863
        %871 = vrot.lane.b32.xlu0 %v488, 32
        %v872 = vpop.permute.xlu0 %871
        %873 = vrot.lane.b32.xlu0 %v491, 32
        %v874 = vpop.permute.xlu0 %873
        %875 = vrot.lane.b32.xlu0 %v496, 32
        %v876 = vpop.permute.xlu0 %875
        %877 = vrot.lane.b32.xlu0 %v499, 32
        %v878 = vpop.permute.xlu0 %877
        %879 = vrot.lane.b32.xlu0 %v504, 32
        %v880 = vpop.permute.xlu0 %879
        %881 = vrot.lane.b32.xlu0 %v507, 32
        %v882 = vpop.permute.xlu0 %881
        %v889 = vmul.f32 %v854, %v872
        %v890 = vmul.f32 %v856, %v874
        %v891 = vmul.f32 %v858, %v876
        %v892 = vmul.f32 %v860, %v878
        %v893 = vmul.f32 %v862, %v880
        %v894 = vmul.f32 %v864, %v882
        %v895 = vpack.c.bf16 %v890, %v889
        %v896 = vpack.c.bf16 %v892, %v891
        %v897 = vpack.c.bf16 %v894, %v893
        %v898 = vld [vmem:[%s6] sm:$0xf]
        %v899 = vld [vmem:[%s6 + $0x4] sm:$0xf]
        %v900 = vld [vmem:[%s6 + $0x8] sm:$0xf]
        %v901 = vld [vmem:[%s6 + $0xc] sm:$0xf]
        %905 = vrot.lane.b32.xlu0 %v895, 96
        %v906 = vpop.permute.xlu0 %905
        %907 = vrot.lane.b32.xlu0 %v896, 96
        %v908 = vpop.permute.xlu0 %907
        %909 = vrot.lane.b32.xlu0 %v897, 96
        %v910 = vpop.permute.xlu0 %909
        %v915 = vunpack.c.l.b16 %v898
        %v916 = vunpack.c.l.b16 %v899
        %v917 = vunpack.c.l.b16 %v900
        %v918 = vunpack.c.l.b16 %v901
        %v919 = vpack.c.b16 %v916, %v915
        %v920 = vpack.c.b16 %v918, %v917
        %v924 = vsel %vm671, %v906, 0
        %v927 = vsel %vm671, %v908, 0
        %v930 = vsel %vm671, %v910, 0
        %932 = vmatprep.subr.bf16.mxu0 0
        %933 = vmatpush1.bf16.msra.mxu0 0
        %934 = vmatprep.subr.bf16.mxu0 0
        %935 = vmatpush1.bf16.msra.mxu0 0
        %936 = vmatprep.subr.bf16.mxu0 0
        %937 = vmatpush1.bf16.msra.mxu0 0
        %938 = vmatprep.subr.bf16.mxu0 0
        %939 = vmatpush1.bf16.msra.mxu0 0
        %940 = vmatprep.subr.bf16.mxu0 0
        %941 = vmatpush1.bf16.msra.mxu0 0
        %942 = vmatprep.subr.bf16.mxu0 0
        %943 = vmatpush1.bf16.msra.mxu0 0
        %944 = vmatprep.subr.bf16.mxu0 0
        %945 = vmatpush1.bf16.msra.mxu0 %v920
        %946 = vmatprep.subr.bf16.mxu0 0
        %947 = vmatpush1.bf16.msra.mxu0 %v919
        %948 = vmatprep.subr.bf16.mxu0 0
        %949 = vmatpush2.bf16.msra.mxu0 0
        %950 = vmatprep.subr.bf16.mxu0 0
        %951 = vmatpush2.bf16.msra.mxu0 0
        %952 = vmatprep.subr.bf16.mxu0 0
        %953 = vmatpush2.bf16.msra.mxu0 0
        %954 = vmatprep.subr.bf16.mxu0 0
        %955 = vmatpush2.bf16.msra.mxu0 0
        %956 = vmatprep.subr.bf16.mxu0 0
        %957 = vmatpush2.bf16.msra.mxu0 0
        %958 = vmatprep.subr.bf16.mxu0 0
        %959 = vmatpush2.bf16.msra.mxu0 0
        %960 = vmatprep.subr.bf16.mxu0 0
        %961 = vmatpush2.bf16.msra.mxu0 0
        %962 = vmatprep.subr.bf16.mxu0 0
        %963 = vmatpush2.bf16.msra.mxu0 0
        %964 = vmatprep.mubr.bf16.mxu0 0
        %965 = vmatmul.mubr.bf16.gmra.mxu0 %v924
        %v966 = vpop.f32.mrf.mxu0
        %v967 = vadd.f32 0.0, %v966
        %v968 = vpop.f32.mrf.mxu0
        %v969 = vpop.f32.mrf.mxu0
        %v970 = vadd.f32 0.0, %v969
        %v971 = vpop.f32.mrf.mxu0
        %972 = vmatprep.mubr.bf16.mxu0 0
        %973 = vmatmul.mubr.bf16.gmra.mxu0 %v927
        %v974 = vpop.f32.mrf.mxu0
        %v975 = vadd.f32 0.0, %v974
        %v976 = vpop.f32.mrf.mxu0
        %v977 = vpop.f32.mrf.mxu0
        %v978 = vadd.f32 0.0, %v977
        %v979 = vpop.f32.mrf.mxu0
        %980 = vmatprep.mubr.bf16.mxu0 0
        %981 = vmatmul.mubr.bf16.gmra.mxu0 %v930
        %v982 = vpop.f32.mrf.mxu0
        %v983 = vadd.f32 0.0, %v982
        %v984 = vpop.f32.mrf.mxu0
        %v985 = vpop.f32.mrf.mxu0
        %v986 = vadd.f32 0.0, %v985
        %v987 = vpop.f32.mrf.mxu0
        %988 = vdwg.mxu0
        %995 = vrot.lane.b32.xlu0 %v967, 64
        %v996 = vpop.permute.xlu0 %995
        %997 = vrot.lane.b32.xlu0 %v970, 64
        %v998 = vpop.permute.xlu0 %997
        %999 = vrot.lane.b32.xlu0 %v975, 64
        %v1000 = vpop.permute.xlu0 %999
        %1001 = vrot.lane.b32.xlu0 %v978, 64
        %v1002 = vpop.permute.xlu0 %1001
        %1003 = vrot.lane.b32.xlu0 %v983, 64
        %v1004 = vpop.permute.xlu0 %1003
        %1005 = vrot.lane.b32.xlu0 %v986, 64
        %v1006 = vpop.permute.xlu0 %1005
        %v1013 = vadd.f32 %v823, %v996
        %v1014 = vadd.f32 %v824, %v998
        %v1015 = vadd.f32 %v825, %v1000
        %v1016 = vadd.f32 %v826, %v1002
        %v1017 = vadd.f32 %v827, %v1004
        %v1018 = vadd.f32 %v828, %v1006
        %v1019 = vtanh.pop %v1013
        %v1020 = vtanh.pop %v1014
        %v1021 = vtanh.pop %v1015
        %v1022 = vtanh.pop %v1016
        %v1023 = vtanh.pop %v1017
        %v1024 = vtanh.pop %v1018
        %1031 = vrot.lane.b32.xlu0 %v854, 64
        %v1032 = vpop.permute.xlu0 %1031
        %1033 = vrot.lane.b32.xlu0 %v856, 64
        %v1034 = vpop.permute.xlu0 %1033
        %1035 = vrot.lane.b32.xlu0 %v858, 64
        %v1036 = vpop.permute.xlu0 %1035
        %1037 = vrot.lane.b32.xlu0 %v860, 64
        %v1038 = vpop.permute.xlu0 %1037
        %1039 = vrot.lane.b32.xlu0 %v862, 64
        %v1040 = vpop.permute.xlu0 %1039
        %1041 = vrot.lane.b32.xlu0 %v864, 64
        %v1042 = vpop.permute.xlu0 %1041
        %v1049 = vmul.f32 %v1019, %v1032
        %v1050 = vmul.f32 %v1020, %v1034
        %v1051 = vmul.f32 %v1021, %v1036
        %v1052 = vmul.f32 %v1022, %v1038
        %v1053 = vmul.f32 %v1023, %v1040
        %v1054 = vmul.f32 %v1024, %v1042
        %v1055 = vsub.f32 1.0, %v854
        %v1056 = vsub.f32 1.0, %v856
        %v1057 = vsub.f32 1.0, %v858
        %v1058 = vsub.f32 1.0, %v860
        %v1059 = vsub.f32 1.0, %v862
        %v1060 = vsub.f32 1.0, %v864
        %v1061 = vmul.f32 %v488, %v1055
        %v1062 = vmul.f32 %v491, %v1056
        %v1063 = vmul.f32 %v496, %v1057
        %v1064 = vmul.f32 %v499, %v1058
        %v1065 = vmul.f32 %v504, %v1059
        %v1066 = vmul.f32 %v507, %v1060
        %1073 = vrot.lane.b32.xlu0 %v1061, 64
        %v1074 = vpop.permute.xlu0 %1073
        %1075 = vrot.lane.b32.xlu0 %v1062, 64
        %v1076 = vpop.permute.xlu0 %1075
        %1077 = vrot.lane.b32.xlu0 %v1063, 64
        %v1078 = vpop.permute.xlu0 %1077
        %1079 = vrot.lane.b32.xlu0 %v1064, 64
        %v1080 = vpop.permute.xlu0 %1079
        %1081 = vrot.lane.b32.xlu0 %v1065, 64
        %v1082 = vpop.permute.xlu0 %1081
        %1083 = vrot.lane.b32.xlu0 %v1066, 64
        %v1084 = vpop.permute.xlu0 %1083
        %v1091 = vadd.f32 %v1049, %v1074
        %v1092 = vadd.f32 %v1050, %v1076
        %v1093 = vadd.f32 %v1051, %v1078
        %v1094 = vadd.f32 %v1052, %v1080
        %v1095 = vadd.f32 %v1053, %v1082
        %v1096 = vadd.f32 %v1054, %v1084
        %1103 = vrot.lane.b32.xlu0 %v1091, 64
        %v1104 = vpop.permute.xlu0 %1103
        %1105 = vrot.lane.b32.xlu0 %v1092, 64
        %v1106 = vpop.permute.xlu0 %1105
        %1107 = vrot.lane.b32.xlu0 %v1093, 64
        %v1108 = vpop.permute.xlu0 %1107
        %1109 = vrot.lane.b32.xlu0 %v1094, 64
        %v1110 = vpop.permute.xlu0 %1109
        %1111 = vrot.lane.b32.xlu0 %v1095, 64
        %v1112 = vpop.permute.xlu0 %1111
        %1113 = vrot.lane.b32.xlu0 %v1096, 64
        %v1114 = vpop.permute.xlu0 %1113
        %1121 = vst.msk [vmem:[%s412] sm:$0xff] %vm671, %v1104
        %1122 = vst.msk [vmem:[%s412 + $0x8] sm:$0xff] %vm671, %v1106
        %1123 = vst.msk [vmem:[%s412 + $0x10] sm:$0xff] %vm671, %v1108
        %1124 = vst.msk [vmem:[%s412 + $0x18] sm:$0xff] %vm671, %v1110
        %1125 = vst.msk [vmem:[%s412 + $0x20] sm:$0xff] %vm671, %v1112
        %1126 = vst.msk [vmem:[%s412 + $0x28] sm:$0xff] %vm671, %v1114
        %v1127 = vld [vmem:[%s7] sm:$0x1]
        %v1129 = vlaneseq
        %v1130 = vshrl.u32 %v1129, 7
        %v1131 = vsub.s32 0, %v1130
        %v1132 = vrot.slane %v1127, %v1131
        %1133 = vrot.lane.b32.xlu0 %v1132, 64
        %v1134 = vpop.permute.xlu0 %1133
        %v1136 = vmul.f32 %v1091, %v1134
        %v1137 = vmul.f32 %v1092, %v1134
        %v1138 = vmul.f32 %v1093, %v1134
        %v1139 = vmul.f32 %v1094, %v1134
        %v1140 = vmul.f32 %v1095, %v1134
        %v1141 = vmul.f32 %v1096, %v1134
        %1148 = vrot.lane.b32.xlu0 %v1136, 64
        %v1149 = vpop.permute.xlu0 %1148
        %1150 = vrot.lane.b32.xlu0 %v1137, 64
        %v1151 = vpop.permute.xlu0 %1150
        %1152 = vrot.lane.b32.xlu0 %v1138, 64
        %v1153 = vpop.permute.xlu0 %1152
        %1154 = vrot.lane.b32.xlu0 %v1139, 64
        %v1155 = vpop.permute.xlu0 %1154
        %1156 = vrot.lane.b32.xlu0 %v1140, 64
        %v1157 = vpop.permute.xlu0 %1156
        %1158 = vrot.lane.b32.xlu0 %v1141, 64
        %v1159 = vpop.permute.xlu0 %1158
        %v1166 = vsel %vm671, %v1149, 0.0
        %1167 = vadd.xlane.f32.xlu0 %v1166
        %v1168 = vpop.xlane.xlu0 %1167
        %v1169 = vsel %vm671, %v1151, 0.0
        %1170 = vadd.xlane.f32.xlu0 %v1169
        %v1171 = vpop.xlane.xlu0 %1170
        %v1172 = vsel %vm671, %v1153, 0.0
        %1173 = vadd.xlane.f32.xlu0 %v1172
        %v1174 = vpop.xlane.xlu0 %1173
        %v1175 = vsel %vm671, %v1155, 0.0
        %1176 = vadd.xlane.f32.xlu0 %v1175
        %v1177 = vpop.xlane.xlu0 %1176
        %v1178 = vsel %vm671, %v1157, 0.0
        %1179 = vadd.xlane.f32.xlu0 %v1178
        %v1180 = vpop.xlane.xlu0 %1179
        %v1181 = vsel %vm671, %v1159, 0.0
        %1182 = vadd.xlane.f32.xlu0 %v1181
        %v1183 = vpop.xlane.xlu0 %1182
        %v1190 = vlaneseq
        %v1191 = vand.u32 %v1190, 127
        %v1192 = vlaneseq
        %v1193 = vshrl.u32 %v1192, 7
        %v1194 = vsub.s32 %v1191, %v1193
        %v1195 = vrot.slane %v1168, %v1194
        %v1196 = vadd.s32 %v1191, 4294967288
        %v1197 = vlaneseq
        %v1198 = vshrl.u32 %v1197, 7
        %v1199 = vsub.s32 %v1196, %v1198
        %v1200 = vrot.slane %v1171, %v1199
        %vm1201 = vcmask 130112
        %v1202 = vsel %vm1201, %v1200, %v1195
        %v1203 = vlaneseq
        %v1204 = vshrl.u32 %v1203, 7
        %v1205 = vsub.s32 %v1191, %v1204
        %v1206 = vrot.slane %v1174, %v1205
        %v1207 = vlaneseq
        %v1208 = vshrl.u32 %v1207, 7
        %v1209 = vsub.s32 %v1196, %v1208
        %v1210 = vrot.slane %v1177, %v1209
        %v1211 = vsel %vm1201, %v1210, %v1206
        %v1212 = vlaneseq
        %v1213 = vshrl.u32 %v1212, 7
        %v1214 = vsub.s32 %v1191, %v1213
        %v1215 = vrot.slane %v1180, %v1214
        %v1216 = vlaneseq
        %v1217 = vshrl.u32 %v1216, 7
        %v1218 = vsub.s32 %v1196, %v1217
        %v1219 = vrot.slane %v1183, %v1218
        %v1220 = vsel %vm1201, %v1219, %v1215
        %vm1221 = vcmask 1042434
        %v1222 = vsel %vm1221, %v1202, %v1202
        %vm1223 = vcmask 1043459
        %v1224 = vsel %vm1223, %v1202, %v1222
        %vm1225 = vcmask 1044484
        %v1226 = vsel %vm1225, %v1202, %v1224
        %vm1227 = vcmask 1045509
        %v1228 = vsel %vm1227, %v1202, %v1226
        %vm1229 = vcmask 1046534
        %v1230 = vsel %vm1229, %v1202, %v1228
        %vm1231 = vcmask 1047559
        %v1232 = vsel %vm1231, %v1202, %v1230
        %v1233 = vsel %vm1221, %v1211, %v1211
        %v1234 = vsel %vm1223, %v1211, %v1233
        %v1235 = vsel %vm1225, %v1211, %v1234
        %v1236 = vsel %vm1227, %v1211, %v1235
        %v1237 = vsel %vm1229, %v1211, %v1236
        %v1238 = vsel %vm1231, %v1211, %v1237
        %v1239 = vsel %vm1221, %v1220, %v1220
        %v1240 = vsel %vm1223, %v1220, %v1239
        %v1241 = vsel %vm1225, %v1220, %v1240
        %v1242 = vsel %vm1227, %v1220, %v1241
        %v1243 = vsel %vm1229, %v1220, %v1242
        %v1244 = vsel %vm1231, %v1220, %v1243
        %v1248 = vmul.f32 %v420, %v1232
        %v1249 = vmul.f32 %v421, %v1232
        %v1250 = vmul.f32 %v422, %v1238
        %v1251 = vmul.f32 %v423, %v1238
        %v1252 = vmul.f32 %v424, %v1244
        %v1253 = vmul.f32 %v425, %v1244
        %v1254 = vsel %vm443, %v1248, 0.0
        %1255 = vadd.xlane.f32.xlu0 %v1254
        %v1256 = vpop.xlane.xlu0 %1255
        %v1257 = vsel %vm443, %v1249, 0.0
        %1258 = vadd.xlane.f32.xlu0 %v1257
        %v1259 = vpop.xlane.xlu0 %1258
        %v1260 = vsel %vm443, %v1250, 0.0
        %1261 = vadd.xlane.f32.xlu0 %v1260
        %v1262 = vpop.xlane.xlu0 %1261
        %v1263 = vsel %vm443, %v1251, 0.0
        %1264 = vadd.xlane.f32.xlu0 %v1263
        %v1265 = vpop.xlane.xlu0 %1264
        %v1266 = vsel %vm443, %v1252, 0.0
        %1267 = vadd.xlane.f32.xlu0 %v1266
        %v1268 = vpop.xlane.xlu0 %1267
        %v1269 = vsel %vm443, %v1253, 0.0
        %1270 = vadd.xlane.f32.xlu0 %v1269
        %v1271 = vpop.xlane.xlu0 %1270
        %s1272 = sld [smem:[#allocation2]]
        %v1273 = vstv %s1272
        %v1274 = vmul.f32 %v1256, %v1273
        %v1275 = vmul.f32 %v1259, %v1273
        %v1276 = vmul.f32 %v1262, %v1273
        %v1277 = vmul.f32 %v1265, %v1273
        %v1278 = vmul.f32 %v1268, %v1273
        %v1279 = vmul.f32 %v1271, %v1273
        %s1280 = sld [smem:[#allocation2 + $0x1]]
        %v1281 = vstv %s1280
        %v1282 = vadd.f32 %v1274, %v1281
        %v1283 = vadd.f32 %v1275, %v1281
        %v1284 = vadd.f32 %v1276, %v1281
        %v1285 = vadd.f32 %v1277, %v1281
        %v1286 = vadd.f32 %v1278, %v1281
        %v1287 = vadd.f32 %v1279, %v1281
        %s1288 = sld [smem:[#allocation2 + $0x2]]
        %v1289 = vstv %s1288
        %v1290 = vmul.f32 %v1168, %v1289
        %v1291 = vmul.f32 %v1171, %v1289
        %v1292 = vmul.f32 %v1174, %v1289
        %v1293 = vmul.f32 %v1177, %v1289
        %v1294 = vmul.f32 %v1180, %v1289
        %v1295 = vmul.f32 %v1183, %v1289
        %v1296 = vadd.f32 %v1282, %v1290
        %v1297 = vadd.f32 %v1283, %v1291
        %v1298 = vadd.f32 %v1284, %v1292
        %v1299 = vadd.f32 %v1285, %v1293
        %v1300 = vadd.f32 %v1286, %v1294
        %v1301 = vadd.f32 %v1287, %v1295
        %s1302 = sld [smem:[#allocation2 + $0x3]]
        %v1303 = vstv %s1302
        %v1304 = vadd.f32 %v1296, %v1303
        %v1305 = vadd.f32 %v1297, %v1303
        %v1306 = vadd.f32 %v1298, %v1303
        %v1307 = vadd.f32 %v1299, %v1303
        %v1308 = vadd.f32 %v1300, %v1303
        %v1309 = vadd.f32 %v1301, %v1303
        %v1310 = vxor.u32 %v1304, 2147483648
        %v1311 = vxor.u32 %v1305, 2147483648
        %v1312 = vxor.u32 %v1306, 2147483648
        %v1313 = vxor.u32 %v1307, 2147483648
        %v1314 = vxor.u32 %v1308, 2147483648
        %v1315 = vxor.u32 %v1309, 2147483648
        %v1316 = vmul.f32 %v1310, 1.442695
        %v1317 = vpow.pop %v1316
        %v1318 = vmul.f32 %v1311, 1.442695
        %v1319 = vpow.pop %v1318
        %v1320 = vmul.f32 %v1312, 1.442695
        %v1321 = vpow.pop %v1320
        %v1322 = vmul.f32 %v1313, 1.442695
        %v1323 = vpow.pop %v1322
        %v1324 = vmul.f32 %v1314, 1.442695
        %v1325 = vpow.pop %v1324
        %v1326 = vmul.f32 %v1315, 1.442695
        %v1327 = vpow.pop %v1326
        %v1328 = vadd.f32 %v1317, 1.0
        %v1329 = vadd.f32 %v1319, 1.0
        %v1330 = vadd.f32 %v1321, 1.0
        %v1331 = vadd.f32 %v1323, 1.0
        %v1332 = vadd.f32 %v1325, 1.0
        %v1333 = vadd.f32 %v1327, 1.0
        %v1334 = vrcp.pop %v1328
        %v1335 = vmul.f32 1.0, %v1334
        %v1336 = vrcp.pop %v1329
        %v1337 = vmul.f32 1.0, %v1336
        %v1338 = vrcp.pop %v1330
        %v1339 = vmul.f32 1.0, %v1338
        %v1340 = vrcp.pop %v1331
        %v1341 = vmul.f32 1.0, %v1340
        %v1342 = vrcp.pop %v1332
        %v1343 = vmul.f32 1.0, %v1342
        %v1344 = vrcp.pop %v1333
        %v1345 = vmul.f32 1.0, %v1344
        %s1346 = sld [smem:[#allocation2 + $0x4]]
        %v1347 = vstv %s1346
        %v1348 = vmul.f32 %v1256, %v1347
        %v1349 = vmul.f32 %v1259, %v1347
        %v1350 = vmul.f32 %v1262, %v1347
        %v1351 = vmul.f32 %v1265, %v1347
        %v1352 = vmul.f32 %v1268, %v1347
        %v1353 = vmul.f32 %v1271, %v1347
        %s1354 = sld [smem:[#allocation2 + $0x5]]
        %v1355 = vstv %s1354
        %v1356 = vadd.f32 %v1348, %v1355
        %v1357 = vadd.f32 %v1349, %v1355
        %v1358 = vadd.f32 %v1350, %v1355
        %v1359 = vadd.f32 %v1351, %v1355
        %v1360 = vadd.f32 %v1352, %v1355
        %v1361 = vadd.f32 %v1353, %v1355
        %s1362 = sld [smem:[#allocation2 + $0x6]]
        %v1363 = vstv %s1362
        %v1364 = vmul.f32 %v1168, %v1363
        %v1365 = vmul.f32 %v1171, %v1363
        %v1366 = vmul.f32 %v1174, %v1363
        %v1367 = vmul.f32 %v1177, %v1363
        %v1368 = vmul.f32 %v1180, %v1363
        %v1369 = vmul.f32 %v1183, %v1363
        %v1370 = vadd.f32 %v1356, %v1364
        %v1371 = vadd.f32 %v1357, %v1365
        %v1372 = vadd.f32 %v1358, %v1366
        %v1373 = vadd.f32 %v1359, %v1367
        %v1374 = vadd.f32 %v1360, %v1368
        %v1375 = vadd.f32 %v1361, %v1369
        %s1376 = sld [smem:[#allocation2 + $0x7]]
        %v1377 = vstv %s1376
        %v1378 = vadd.f32 %v1370, %v1377
        %v1379 = vadd.f32 %v1371, %v1377
        %v1380 = vadd.f32 %v1372, %v1377
        %v1381 = vadd.f32 %v1373, %v1377
        %v1382 = vadd.f32 %v1374, %v1377
        %v1383 = vadd.f32 %v1375, %v1377
        %v1384 = vxor.u32 %v1378, 2147483648
        %v1385 = vxor.u32 %v1379, 2147483648
        %v1386 = vxor.u32 %v1380, 2147483648
        %v1387 = vxor.u32 %v1381, 2147483648
        %v1388 = vxor.u32 %v1382, 2147483648
        %v1389 = vxor.u32 %v1383, 2147483648
        %v1390 = vmul.f32 %v1384, 1.442695
        %v1391 = vpow.pop %v1390
        %v1392 = vmul.f32 %v1385, 1.442695
        %v1393 = vpow.pop %v1392
        %v1394 = vmul.f32 %v1386, 1.442695
        %v1395 = vpow.pop %v1394
        %v1396 = vmul.f32 %v1387, 1.442695
        %v1397 = vpow.pop %v1396
        %v1398 = vmul.f32 %v1388, 1.442695
        %v1399 = vpow.pop %v1398
        %v1400 = vmul.f32 %v1389, 1.442695
        %v1401 = vpow.pop %v1400
        %v1402 = vadd.f32 %v1391, 1.0
        %v1403 = vadd.f32 %v1393, 1.0
        %v1404 = vadd.f32 %v1395, 1.0
        %v1405 = vadd.f32 %v1397, 1.0
        %v1406 = vadd.f32 %v1399, 1.0
        %v1407 = vadd.f32 %v1401, 1.0
        %v1408 = vrcp.pop %v1402
        %v1409 = vmul.f32 1.0, %v1408
        %v1410 = vrcp.pop %v1403
        %v1411 = vmul.f32 1.0, %v1410
        %v1412 = vrcp.pop %v1404
        %v1413 = vmul.f32 1.0, %v1412
        %v1414 = vrcp.pop %v1405
        %v1415 = vmul.f32 1.0, %v1414
        %v1416 = vrcp.pop %v1406
        %v1417 = vmul.f32 1.0, %v1416
        %v1418 = vrcp.pop %v1407
        %v1419 = vmul.f32 1.0, %v1418
        %s1420 = sld [smem:[#allocation2 + $0x8]]
        %v1421 = vstv %s1420
        %v1422 = vmul.f32 %v1256, %v1421
        %v1423 = vmul.f32 %v1259, %v1421
        %v1424 = vmul.f32 %v1262, %v1421
        %v1425 = vmul.f32 %v1265, %v1421
        %v1426 = vmul.f32 %v1268, %v1421
        %v1427 = vmul.f32 %v1271, %v1421
        %s1428 = sld [smem:[#allocation2 + $0x9]]
        %v1429 = vstv %s1428
        %v1430 = vadd.f32 %v1422, %v1429
        %v1431 = vadd.f32 %v1423, %v1429
        %v1432 = vadd.f32 %v1424, %v1429
        %v1433 = vadd.f32 %v1425, %v1429
        %v1434 = vadd.f32 %v1426, %v1429
        %v1435 = vadd.f32 %v1427, %v1429
        %v1436 = vmul.f32 %v1409, %v1168
        %v1437 = vmul.f32 %v1411, %v1171
        %v1438 = vmul.f32 %v1413, %v1174
        %v1439 = vmul.f32 %v1415, %v1177
        %v1440 = vmul.f32 %v1417, %v1180
        %v1441 = vmul.f32 %v1419, %v1183
        %s1442 = sld [smem:[#allocation2 + $0xa]]
        %v1443 = vstv %s1442
        %v1444 = vmul.f32 %v1436, %v1443
        %v1445 = vmul.f32 %v1437, %v1443
        %v1446 = vmul.f32 %v1438, %v1443
        %v1447 = vmul.f32 %v1439, %v1443
        %v1448 = vmul.f32 %v1440, %v1443
        %v1449 = vmul.f32 %v1441, %v1443
        %v1450 = vadd.f32 %v1430, %v1444
        %v1451 = vadd.f32 %v1431, %v1445
        %v1452 = vadd.f32 %v1432, %v1446
        %v1453 = vadd.f32 %v1433, %v1447
        %v1454 = vadd.f32 %v1434, %v1448
        %v1455 = vadd.f32 %v1435, %v1449
        %s1456 = sld [smem:[#allocation2 + $0xb]]
        %v1457 = vstv %s1456
        %v1458 = vadd.f32 %v1450, %v1457
        %v1459 = vadd.f32 %v1451, %v1457
        %v1460 = vadd.f32 %v1452, %v1457
        %v1461 = vadd.f32 %v1453, %v1457
        %v1462 = vadd.f32 %v1454, %v1457
        %v1463 = vadd.f32 %v1455, %v1457
        %v1464 = vtanh.pop %v1458
        %v1465 = vtanh.pop %v1459
        %v1466 = vtanh.pop %v1460
        %v1467 = vtanh.pop %v1461
        %v1468 = vtanh.pop %v1462
        %v1469 = vtanh.pop %v1463
        %v1470 = vmul.f32 %v1464, %v1335
        %v1471 = vmul.f32 %v1465, %v1337
        %v1472 = vmul.f32 %v1466, %v1339
        %v1473 = vmul.f32 %v1467, %v1341
        %v1474 = vmul.f32 %v1468, %v1343
        %v1475 = vmul.f32 %v1469, %v1345
        %v1476 = vsub.f32 1.0, %v1335
        %v1477 = vsub.f32 1.0, %v1337
        %v1478 = vsub.f32 1.0, %v1339
        %v1479 = vsub.f32 1.0, %v1341
        %v1480 = vsub.f32 1.0, %v1343
        %v1481 = vsub.f32 1.0, %v1345
        %v1482 = vmul.f32 %v1168, %v1476
        %v1483 = vmul.f32 %v1171, %v1477
        %v1484 = vmul.f32 %v1174, %v1478
        %v1485 = vmul.f32 %v1177, %v1479
        %v1486 = vmul.f32 %v1180, %v1480
        %v1487 = vmul.f32 %v1183, %v1481
        %v1488 = vadd.f32 %v1470, %v1482
        %v1489 = vadd.f32 %v1471, %v1483
        %v1490 = vadd.f32 %v1472, %v1484
        %v1491 = vadd.f32 %v1473, %v1485
        %v1492 = vadd.f32 %v1474, %v1486
        %v1493 = vadd.f32 %v1475, %v1487
        %v1496 = vlaneseq
        %v1497 = vshrl.u32 %v1496, 7
        %v1498 = vsub.s32 %v1191, %v1497
        %v1499 = vrot.slane %v1488, %v1498
        %v1500 = vlaneseq
        %v1501 = vshrl.u32 %v1500, 7
        %v1502 = vsub.s32 %v1196, %v1501
        %v1503 = vrot.slane %v1489, %v1502
        %v1504 = vsel %vm1201, %v1503, %v1499
        %vm1506 = vcmask 122880
        %1507 = vst.msk [vmem:[%s417] sm:$0x1] %vm1506, %v1504
        %v1510 = vlaneseq
        %v1511 = vshrl.u32 %v1510, 7
        %v1512 = vsub.s32 %v1191, %v1511
        %v1513 = vrot.slane %v1490, %v1512
        %v1514 = vlaneseq
        %v1515 = vshrl.u32 %v1514, 7
        %v1516 = vsub.s32 %v1196, %v1515
        %v1517 = vrot.slane %v1491, %v1516
        %v1518 = vsel %vm1201, %v1517, %v1513
        %s1520 = scalar_lea.vmem %s417, 1
        %1521 = vst.msk [vmem:[%s1520] sm:$0x1] %vm1506, %v1518
        %v1524 = vlaneseq
        %v1525 = vshrl.u32 %v1524, 7
        %v1526 = vsub.s32 %v1191, %v1525
        %v1527 = vrot.slane %v1492, %v1526
        %v1528 = vlaneseq
        %v1529 = vshrl.u32 %v1528, 7
        %v1530 = vsub.s32 %v1196, %v1529
        %v1531 = vrot.slane %v1493, %v1530
        %v1532 = vsel %vm1201, %v1531, %v1527
        %s1534 = scalar_lea.vmem %s417, 2
        %1535 = vst.msk [vmem:[%s1534] sm:$0x1] %vm1506, %v1532
        %s1536 = smul.u32 3, %s23
        %p1537 = scmp.lt.s32.totalorder %s1536, 5
        %s1538 = scalar_select %p1537, %s1536, 5
        %s1539 = smul.addr %s1538, 2
        %s1540 = smul.addr %s1539, 8
        %s1541 = scalar_lea.vmem %s9, %s1540
        %s1542 = smul.u32 3, %s23
        %p1543 = scmp.lt.s32.totalorder %s1542, 5
        %s1544 = scalar_select %p1543, %s1542, 5
        %s1545 = scalar_lea.vmem %s10, %s1544
        // Predicated region
        $region61: #{_lambda_.6} parent=55 // pred_check
          %p1546 = pneg %p240
        $region62: #{_lambda_.6} parent=55 // pred_check_branch
          %1548 = sbr.rel (%p1546) target = $region64
        $region63: #{_lambda_.6} parent=55 // pred_region
          %s1549 = smul.u32 3, %s23
        $region64: #{_lambda_.6} parent=55 // pred_fallthru
          _
        // Predicated region
        $region65: #{_lambda_.6} parent=55 // pred_check
          %p1550 = pneg %p266
        $region66: #{_lambda_.6} parent=55 // pred_check_branch
          %1552 = sbr.rel (%p1550) target = $region68
        $region67: #{_lambda_.6} parent=55 // pred_region
          %s1553 = smul.u32 3, %s23
        $region68: #{_lambda_.6} parent=55 // pred_fallthru
          _
      $region56: #{_lambda_.6} parent=5 // pred_fallthru
        _
      %p1554 = scmp.le.s32.totalorder 2, %s18
      // Predicated region
      $region69: #{_lambda_.6} parent=5 // pred_check
        %p1555 = pneg %p1554
      $region70: #{_lambda_.6} parent=5 // pred_check_branch
        %1557 = sbr.rel (%p1555) target = $region72
      $region71: #{_lambda_.6} parent=5 // pred_region
        %s1558 = ssub.s32 %s18, 2
        // Predicated region
        $region73: #{_lambda_.6} parent=71 // pred_check
          %p1559 = pneg %p246
        $region74: #{_lambda_.6} parent=71 // pred_check_branch
          %1561 = sbr.rel (%p1559) target = $region76
        $region75: #{_lambda_.6} parent=71 // pred_region
          %s1562 = smul.u32 3, %s24
          %p1563 = scmp.lt.s32.totalorder %s1562, 5
          %s1564 = scalar_select %p1563, %s1562, 5
          %s1565 = smul.addr %s1564, 2
          %s1566 = smul.addr %s1565, 8
          %s1567 = scalar_lea.vmem %s9, %s1566
        $region76: #{_lambda_.6} parent=71 // pred_fallthru
          _
        // Predicated region
        $region77: #{_lambda_.6} parent=71 // pred_check
          %p1568 = pneg %p272
        $region78: #{_lambda_.6} parent=71 // pred_check_branch
          %1570 = sbr.rel (%p1568) target = $region80
        $region79: #{_lambda_.6} parent=71 // pred_region
          %s1571 = smul.u32 3, %s24
          %p1572 = scmp.lt.s32.totalorder %s1571, 5
          %s1573 = scalar_select %p1572, %s1571, 5
          %s1574 = scalar_lea.vmem %s10, %s1573
        $region80: #{_lambda_.6} parent=71 // pred_fallthru
          _
      $region72: #{_lambda_.6} parent=5 // pred_fallthru
        _
    $region6: #{_lambda_.6} parent=1 // loop_footer
      %s22 = sadd.s32 1, %s18
    $region7: #{_lambda_.6} parent=1 // loop_footer_branch
      %17 = sbr.rel target = $region3
    $region8: #{_lambda_.6} parent=1 // loop_exit
      _
    %1575 = vsyncpa [#allocation3], 1
    %s1576 = scalar_lea.sflag [#allocation3], 1
    %1577 = vsyncpa %s1576, 1

// kernel: _lambda_.8
$region0: #{_lambda_.8}
  #allocation0 [shape = 'u32[]', space=smem, size = 0x4, offset = 0x4, fixed_abs, tag = 'smem constant byte address 0x4 - core index']
  #allocation1 [shape = 'u32[144,128]{1,0:T(1,128)}', space=vmem, size = 0x12000, scoped, tag = 'internal scratch']
  %s0 = inlined_call_operand.vmem [shape: f32[2,1,16], index: 0, kind: input, shape index: {}]
  %s1 = inlined_call_operand.vmem [shape: f32[2,4,64], index: 1, kind: input, shape index: {}]
  %s2 = inlined_call_operand.vmem [shape: f32[2,4,1], index: 2, kind: input, shape index: {}]
  %s3 = inlined_call_operand.vmem [shape: bf16[64,16], index: 3, kind: input, shape index: {}]
  %s4 = inlined_call_operand.vmem [shape: bf16[16,2], index: 4, kind: input, shape index: {}]
  %s5 = inlined_call_operand.vmem [shape: f32[2,2,64], index: 5, kind: output, shape index: {}]
  %s6 = sld [smem:[#allocation0]]
  $region53: #{_lambda_.8} parent=0
    _
  %s8 = ssub.s32 1, %s6
  %s9 = scalar_select 0, %s8, %s6
  loop: start=0, step=1, limit=4
  $region2: #{_lambda_.8} parent=0 // loop_pre_header
    _
  $region3: #{_lambda_.8} parent=0 // loop_header
    %s11 = sphi 0, %s15
    %p12 = scmp.ge.s32.totalorder %s11, 4
    %s21 = sphi 0, %s23
    %s24 = sphi 0, %s21
    %s25 = sphi 0, %s24
    %s41 = sphi 0, %s25
    %s47 = sphi 0, %s49
    %s50 = sphi 0, %s47
    %s51 = sphi 0, %s50
    %s67 = sphi 0, %s51
    %s73 = sphi 0, %s75
    %s76 = sphi 0, %s73
    %s77 = sphi 0, %s76
    %s93 = sphi 0, %s77
    %s97 = sphi 0, %s97
    %s99 = sphi 0, %s97
    %s100 = sphi 0, %s99
    %s114 = sphi 0, %s100
    %s118 = sphi 0, %s118
    %s120 = sphi 0, %s118
    %s121 = sphi 0, %s120
    %s135 = sphi 0, %s121
    %s141 = sphi 0, %s143
    %s144 = sphi 0, %s141
    %s145 = sphi 0, %s144
    %s161 = sphi 0, %s145
  $region4: #{_lambda_.8} parent=0 // loop_header_branch
    %14 = sbr.rel (%p12) target = $region8
  $region5: #{_lambda_.8} parent=0 // loop_body
    %s16 = ssub.s32 %s11, 1
    %s17 = ssub.s32 %s11, 2
    %s18 = sadd.s32 %s11, 1
    %s19 = ssub.s32 %s11, %s18
    %p20 = scmp.eq.s32.totalorder %s19, 0
    %s22 = sadd.s32 %s21, 1
    %s23 = scalar_select %p20, %s21, %s22
    %p26 = pneg %p20
    %p27 = scmp.eq.s32.totalorder %s11, 1
    %p28 = por %p26, %p27
    %p29 = scmp.ne.s32.totalorder %s21, %s24
    %p30 = scmp.eq.s32.totalorder %s11, 0
    %p31 = por %p29, %p30
    %p32 = scmp.ne.s32.totalorder %s21, %s24
    %p33 = scmp.eq.s32.totalorder %s16, 1
    %p34 = por %p32, %p33
    %p35 = scmp.ne.s32.totalorder %s24, %s25
    %p36 = scmp.eq.s32.totalorder %s16, 0
    %p37 = por %p35, %p36
    %p38 = scmp.ne.s32.totalorder %s24, %s25
    %p39 = scmp.eq.s32.totalorder %s17, 1
    %p40 = por %p38, %p39
    %p42 = scmp.ne.s32.totalorder %s25, %s41
    %p43 = scmp.eq.s32.totalorder %s17, 0
    %p44 = por %p42, %p43
    %s45 = ssub.s32 %s11, %s18
    %p46 = scmp.eq.s32.totalorder %s45, 0
    %s48 = sadd.s32 %s47, 1
    %s49 = scalar_select %p46, %s47, %s48
    %p52 = pneg %p46
    %p53 = scmp.eq.s32.totalorder %s11, 1
    %p54 = por %p52, %p53
    %p55 = scmp.ne.s32.totalorder %s47, %s50
    %p56 = scmp.eq.s32.totalorder %s11, 0
    %p57 = por %p55, %p56
    %p58 = scmp.ne.s32.totalorder %s47, %s50
    %p59 = scmp.eq.s32.totalorder %s16, 1
    %p60 = por %p58, %p59
    %p61 = scmp.ne.s32.totalorder %s50, %s51
    %p62 = scmp.eq.s32.totalorder %s16, 0
    %p63 = por %p61, %p62
    %p64 = scmp.ne.s32.totalorder %s50, %s51
    %p65 = scmp.eq.s32.totalorder %s17, 1
    %p66 = por %p64, %p65
    %p68 = scmp.ne.s32.totalorder %s51, %s67
    %p69 = scmp.eq.s32.totalorder %s17, 0
    %p70 = por %p68, %p69
    %s71 = ssub.s32 %s11, %s18
    %p72 = scmp.eq.s32.totalorder %s71, 0
    %s74 = sadd.s32 %s73, 1
    %s75 = scalar_select %p72, %s73, %s74
    %p78 = pneg %p72
    %p79 = scmp.eq.s32.totalorder %s11, 1
    %p80 = por %p78, %p79
    %p81 = scmp.ne.s32.totalorder %s73, %s76
    %p82 = scmp.eq.s32.totalorder %s11, 0
    %p83 = por %p81, %p82
    %p84 = scmp.ne.s32.totalorder %s73, %s76
    %p85 = scmp.eq.s32.totalorder %s16, 1
    %p86 = por %p84, %p85
    %p87 = scmp.ne.s32.totalorder %s76, %s77
    %p88 = scmp.eq.s32.totalorder %s16, 0
    %p89 = por %p87, %p88
    %p90 = scmp.ne.s32.totalorder %s76, %s77
    %p91 = scmp.eq.s32.totalorder %s17, 1
    %p92 = por %p90, %p91
    %p94 = scmp.ne.s32.totalorder %s77, %s93
    %p95 = scmp.eq.s32.totalorder %s17, 0
    %p96 = por %p94, %p95
    %s98 = sadd.s32 %s97, 1
    %p101 = scmp.eq.s32.totalorder %s11, 1
    %p102 = scmp.ne.s32.totalorder %s97, %s99
    %p103 = scmp.eq.s32.totalorder %s11, 0
    %p104 = por %p102, %p103
    %p105 = scmp.ne.s32.totalorder %s97, %s99
    %p106 = scmp.eq.s32.totalorder %s16, 1
    %p107 = por %p105, %p106
    %p108 = scmp.ne.s32.totalorder %s99, %s100
    %p109 = scmp.eq.s32.totalorder %s16, 0
    %p110 = por %p108, %p109
    %p111 = scmp.ne.s32.totalorder %s99, %s100
    %p112 = scmp.eq.s32.totalorder %s17, 1
    %p113 = por %p111, %p112
    %p115 = scmp.ne.s32.totalorder %s100, %s114
    %p116 = scmp.eq.s32.totalorder %s17, 0
    %p117 = por %p115, %p116
    %s119 = sadd.s32 %s118, 1
    %p122 = scmp.eq.s32.totalorder %s11, 1
    %p123 = scmp.ne.s32.totalorder %s118, %s120
    %p124 = scmp.eq.s32.totalorder %s11, 0
    %p125 = por %p123, %p124
    %p126 = scmp.ne.s32.totalorder %s118, %s120
    %p127 = scmp.eq.s32.totalorder %s16, 1
    %p128 = por %p126, %p127
    %p129 = scmp.ne.s32.totalorder %s120, %s121
    %p130 = scmp.eq.s32.totalorder %s16, 0
    %p131 = por %p129, %p130
    %p132 = scmp.ne.s32.totalorder %s120, %s121
    %p133 = scmp.eq.s32.totalorder %s17, 1
    %p134 = por %p132, %p133
    %p136 = scmp.ne.s32.totalorder %s121, %s135
    %p137 = scmp.eq.s32.totalorder %s17, 0
    %p138 = por %p136, %p137
    %s139 = ssub.s32 %s11, %s18
    %p140 = scmp.eq.s32.totalorder %s139, 0
    %s142 = sadd.s32 %s141, 1
    %s143 = scalar_select %p140, %s141, %s142
    %p146 = pneg %p140
    %p147 = scmp.eq.s32.totalorder %s11, 1
    %p148 = por %p146, %p147
    %p149 = scmp.ne.s32.totalorder %s141, %s144
    %p150 = scmp.eq.s32.totalorder %s11, 0
    %p151 = por %p149, %p150
    %p152 = scmp.ne.s32.totalorder %s141, %s144
    %p153 = scmp.eq.s32.totalorder %s16, 1
    %p154 = por %p152, %p153
    %p155 = scmp.ne.s32.totalorder %s144, %s145
    %p156 = scmp.eq.s32.totalorder %s16, 0
    %p157 = por %p155, %p156
    %p158 = scmp.ne.s32.totalorder %s144, %s145
    %p159 = scmp.eq.s32.totalorder %s17, 1
    %p160 = por %p158, %p159
    %p162 = scmp.ne.s32.totalorder %s145, %s161
    %p163 = scmp.eq.s32.totalorder %s17, 0
    %p164 = por %p162, %p163
    %p165 = scmp.le.s32.totalorder 1, %s11
    %p166 = scmp.lt.s32.totalorder %s11, 3
    %p167 = pnand %p165, %p166
    %p168 = pneg %p167
    // Predicated region
    $region9: #{_lambda_.8} parent=5 // pred_check
      _
    $region10: #{_lambda_.8} parent=5 // pred_check_branch
      %170 = sbr.rel (%p167) target = $region12
    $region11: #{_lambda_.8} parent=5 // pred_region
      %s171 = ssub.s32 %s11, 1
      // Predicated region
      $region13: #{_lambda_.8} parent=11 // pred_check
        %p172 = pneg %p110
      $region14: #{_lambda_.8} parent=11 // pred_check_branch
        %174 = sbr.rel (%p172) target = $region16
      $region15: #{_lambda_.8} parent=11 // pred_region
        _
      $region16: #{_lambda_.8} parent=11 // pred_fallthru
        _
      // Predicated region
      $region17: #{_lambda_.8} parent=11 // pred_check
        %p175 = pneg %p131
      $region18: #{_lambda_.8} parent=11 // pred_check_branch
        %177 = sbr.rel (%p175) target = $region20
      $region19: #{_lambda_.8} parent=11 // pred_region
        _
      $region20: #{_lambda_.8} parent=11 // pred_fallthru
        _
    $region12: #{_lambda_.8} parent=5 // pred_fallthru
      _
    %p178 = scmp.lt.s32.totalorder %s11, 2
    // Predicated region
    $region21: #{_lambda_.8} parent=5 // pred_check
      %p179 = pneg %p178
    $region22: #{_lambda_.8} parent=5 // pred_check_branch
      %181 = sbr.rel (%p179) target = $region24
    $region23: #{_lambda_.8} parent=5 // pred_region
      // Predicated region
      $region25: #{_lambda_.8} parent=23 // pred_check
        %p182 = pneg %p31
      $region26: #{_lambda_.8} parent=23 // pred_check_branch
        %184 = sbr.rel (%p182) target = $region28
      $region27: #{_lambda_.8} parent=23 // pred_region
        %p185 = scmp.lt.s32.totalorder %s11, 1
        %s186 = scalar_select %p185, %s11, 1
        %s187 = scalar_lea.vmem %s0, %s186
      $region28: #{_lambda_.8} parent=23 // pred_fallthru
        _
      // Predicated region
      $region29: #{_lambda_.8} parent=23 // pred_check
        %p188 = pneg %p57
      $region30: #{_lambda_.8} parent=23 // pred_check_branch
        %190 = sbr.rel (%p188) target = $region32
      $region31: #{_lambda_.8} parent=23 // pred_region
        %p191 = scmp.lt.s32.totalorder %s11, 1
        %s192 = scalar_select %p191, %s11, 1
        %s193 = smul.addr %s192, 4
        %s194 = scalar_lea.vmem %s1, %s193
      $region32: #{_lambda_.8} parent=23 // pred_fallthru
        _
      // Predicated region
      $region33: #{_lambda_.8} parent=23 // pred_check
        %p195 = pneg %p83
      $region34: #{_lambda_.8} parent=23 // pred_check_branch
        %197 = sbr.rel (%p195) target = $region36
      $region35: #{_lambda_.8} parent=23 // pred_region
        %p198 = scmp.lt.s32.totalorder %s11, 1
        %s199 = scalar_select %p198, %s11, 1
        %s200 = smul.addr %s199, 4
        %s201 = scalar_lea.vmem %s2, %s200
      $region36: #{_lambda_.8} parent=23 // pred_fallthru
        _
    $region24: #{_lambda_.8} parent=5 // pred_fallthru
      _
    %p202 = scmp.le.s32.totalorder 1, %s11
    %p203 = scmp.lt.s32.totalorder %s11, 3
    %p204 = pnand %p202, %p203
    %p205 = pneg %p204
    // Predicated region
    $region37: #{_lambda_.8} parent=5 // pred_check
      _
    $region38: #{_lambda_.8} parent=5 // pred_check_branch
      %207 = sbr.rel (%p204) target = $region40
    $region39: #{_lambda_.8} parent=5 // pred_region
      %s208 = ssub.s32 %s11, 1
      %p209 = scmp.lt.s32.totalorder %s16, 1
      %s210 = scalar_select %p209, %s16, 1
      %s211 = scalar_lea.vmem %s0, %s210
      %p212 = pneg %p37
      %p213 = pneg %p34
      %p214 = scmp.lt.s32.totalorder %s16, 1
      %s215 = scalar_select %p214, %s16, 1
      %s216 = smul.addr %s215, 4
      %s217 = scalar_lea.vmem %s1, %s216
      %p218 = pneg %p63
      %p219 = pneg %p60
      %p220 = scmp.lt.s32.totalorder %s16, 1
      %s221 = scalar_select %p220, %s16, 1
      %s222 = smul.addr %s221, 4
      %s223 = scalar_lea.vmem %s2, %s222
      %p224 = pneg %p89
      %p225 = pneg %p86
      %p226 = pneg %p110
      %p227 = pneg %p107
      %p228 = pneg %p131
      %p229 = pneg %p128
      %p230 = pneg %p157
      %p231 = pneg %p154
      %p232 = scmp.lt.s32.totalorder %s16, 1
      %s233 = scalar_select %p232, %s16, 1
      %s234 = smul.addr %s233, 2
      %s235 = scalar_lea.vmem %s5, %s234
      %p236 = scmp.lt.s32.totalorder %s16, 1
      %s237 = scalar_select %p236, %s16, 1
      %s238 = scalar_lea.vmem %s0, %s237
      %p239 = scmp.lt.s32.totalorder %s16, 1
      %s240 = scalar_select %p239, %s16, 1
      %s241 = smul.addr %s240, 4
      %s242 = scalar_lea.vmem %s1, %s241
      %p243 = scmp.lt.s32.totalorder %s16, 1
      %s244 = scalar_select %p243, %s16, 1
      %s245 = smul.addr %s244, 4
      %s246 = scalar_lea.vmem %s2, %s245
      %p247 = scmp.lt.s32.totalorder %s16, 1
      %s248 = scalar_select %p247, %s16, 1
      %s249 = smul.addr %s248, 2
      %s250 = scalar_lea.vmem %s5, %s249
      %v252 = vld [vmem:[%s242] sm:$0xf]
      %v253 = vld [vmem:[%s246] sm:$0xf]
      %v254 = vpack.c.bf16 %v252, %v252
      %v255 = vld [vmem:[%s3] sm:$0xf]
      %v256 = vld [vmem:[%s3 + $0x4] sm:$0xf]
      %v257 = vld [vmem:[%s3 + $0x8] sm:$0xf]
      %v258 = vld [vmem:[%s3 + $0xc] sm:$0xf]
      %v259 = vld [vmem:[%s3 + $0x10] sm:$0xf]
      %v260 = vld [vmem:[%s3 + $0x14] sm:$0xf]
      %v261 = vld [vmem:[%s3 + $0x18] sm:$0xf]
      %v262 = vld [vmem:[%s3 + $0x1c] sm:$0xf]
      %v263 = vld [vmem:[%s238] sm:$0x1]
      %v265 = vlaneseq
      %v266 = vshrl.u32 %v265, 7
      %v267 = vsub.s32 0, %v266
      %v268 = vrot.slane %v263, %v267
      %v278 = vunpack.c.l.b16 %v255
      %v279 = vunpack.c.l.b16 %v256
      %v280 = vunpack.c.l.b16 %v257
      %v281 = vunpack.c.l.b16 %v258
      %v282 = vunpack.c.l.b16 %v259
      %v283 = vunpack.c.l.b16 %v260
      %v284 = vunpack.c.l.b16 %v261
      %v285 = vunpack.c.l.b16 %v262
      %v286 = vpack.c.b16 %v279, %v278
      %v287 = vpack.c.b16 %v281, %v280
      %v288 = vpack.c.b16 %v283, %v282
      %v289 = vpack.c.b16 %v285, %v284
      %vm294 = vcmask 523264
      %v296 = vsel %vm294, %v254, 0
      %298 = vmatprep.subr.bf16.mxu0 0
      %299 = vmatpush1.bf16.msra.mxu0 0
      %300 = vmatprep.subr.bf16.mxu0 0
      %301 = vmatpush1.bf16.msra.mxu0 0
      %302 = vmatprep.subr.bf16.mxu0 0
      %303 = vmatpush1.bf16.msra.mxu0 0
      %304 = vmatprep.subr.bf16.mxu0 0
      %305 = vmatpush1.bf16.msra.mxu0 0
      %306 = vmatprep.subr.bf16.mxu0 0
      %307 = vmatpush1.bf16.msra.mxu0 %v289
      %308 = vmatprep.subr.bf16.mxu0 0
      %309 = vmatpush1.bf16.msra.mxu0 %v288
      %310 = vmatprep.subr.bf16.mxu0 0
      %311 = vmatpush1.bf16.msra.mxu0 %v287
      %312 = vmatprep.subr.bf16.mxu0 0
      %313 = vmatpush1.bf16.msra.mxu0 %v286
      %314 = vmatprep.subr.bf16.mxu0 0
      %315 = vmatpush2.bf16.msra.mxu0 0
      %316 = vmatprep.subr.bf16.mxu0 0
      %317 = vmatpush2.bf16.msra.mxu0 0
      %318 = vmatprep.subr.bf16.mxu0 0
      %319 = vmatpush2.bf16.msra.mxu0 0
      %320 = vmatprep.subr.bf16.mxu0 0
      %321 = vmatpush2.bf16.msra.mxu0 0
      %322 = vmatprep.subr.bf16.mxu0 0
      %323 = vmatpush2.bf16.msra.mxu0 0
      %324 = vmatprep.subr.bf16.mxu0 0
      %325 = vmatpush2.bf16.msra.mxu0 0
      %326 = vmatprep.subr.bf16.mxu0 0
      %327 = vmatpush2.bf16.msra.mxu0 0
      %328 = vmatprep.subr.bf16.mxu0 0
      %329 = vmatpush2.bf16.msra.mxu0 0
      %330 = vmatprep.mubr.bf16.mxu0 0
      %331 = vmatmul.mubr.bf16.gmra.mxu0 %v296
      %v332 = vpop.f32.mrf.mxu0
      %v333 = vadd.f32 %v268, %v332
      %v334 = vpop.f32.mrf.mxu0
      %v335 = vpop.f32.mrf.mxu0
      %v336 = vpop.f32.mrf.mxu0
      %337 = vdwg.mxu0
      %v338 = vtanh.pop %v333
      %v339 = vpack.c.bf16 %v338, %v338
      %v340 = vld [vmem:[%s4] sm:$0xf]
      %v341 = vld [vmem:[%s4 + $0x4] sm:$0xf]
      %v344 = vunpack.c.l.b16 %v340
      %v345 = vunpack.c.l.b16 %v341
      %v346 = vpack.c.b16 %v345, %v344
      %vm348 = vcmask 130048
      %v350 = vsel %vm348, %v339, 0
      %352 = vmatprep.subr.bf16.mxu0 0
      %353 = vmatpush1.bf16.msra.mxu0 0
      %354 = vmatprep.subr.bf16.mxu0 0
      %355 = vmatpush1.bf16.msra.mxu0 0
      %356 = vmatprep.subr.bf16.mxu0 0
      %357 = vmatpush1.bf16.msra.mxu0 0
      %358 = vmatprep.subr.bf16.mxu0 0
      %359 = vmatpush1.bf16.msra.mxu0 0
      %360 = vmatprep.subr.bf16.mxu0 0
      %361 = vmatpush1.bf16.msra.mxu0 0
      %362 = vmatprep.subr.bf16.mxu0 0
      %363 = vmatpush1.bf16.msra.mxu0 0
      %364 = vmatprep.subr.bf16.mxu0 0
      %365 = vmatpush1.bf16.msra.mxu0 0
      %366 = vmatprep.subr.bf16.mxu0 0
      %367 = vmatpush1.bf16.msra.mxu0 %v346
      %368 = vmatprep.subr.bf16.mxu0 0
      %369 = vmatpush2.bf16.msra.mxu0 0
      %370 = vmatprep.subr.bf16.mxu0 0
      %371 = vmatpush2.bf16.msra.mxu0 0
      %372 = vmatprep.subr.bf16.mxu0 0
      %373 = vmatpush2.bf16.msra.mxu0 0
      %374 = vmatprep.subr.bf16.mxu0 0
      %375 = vmatpush2.bf16.msra.mxu0 0
      %376 = vmatprep.subr.bf16.mxu0 0
      %377 = vmatpush2.bf16.msra.mxu0 0
      %378 = vmatprep.subr.bf16.mxu0 0
      %379 = vmatpush2.bf16.msra.mxu0 0
      %380 = vmatprep.subr.bf16.mxu0 0
      %381 = vmatpush2.bf16.msra.mxu0 0
      %382 = vmatprep.subr.bf16.mxu0 0
      %383 = vmatpush2.bf16.msra.mxu0 0
      %384 = vmatprep.mubr.bf16.mxu0 0
      %385 = vmatmul.mubr.bf16.gmra.mxu0 %v350
      %v386 = vpop.f32.mrf.mxu0
      %v387 = vadd.f32 0.0, %v386
      %v388 = vpop.f32.mrf.mxu0
      %v389 = vpop.f32.mrf.mxu0
      %v390 = vpop.f32.mrf.mxu0
      %391 = vdwg.mxu0
      %vm392 = vcmp.eq.f32.partialorder %v253, 0.0
      %v393 = vsel %vm392, 1, 0
      %394 = vset.pattern.permute.xlu0 0
      %395 = vperm.xlu0 %394, %v393
      %v396 = vpop.permute.xlu0 %395
      %vm397 = vcmp.eq.s32.totalorder %v396, 1
      %v398 = vsel %vm397, -1e+30, %v387
      %vm399 = vcmask 11264
      %v400 = vsel %vm399, %v398, -inf
      %v401 = vrot.slane %v400, 4
      %v402 = vmax.f32 %v400, %v401
      %v403 = vrot.slane %v402, 2
      %v404 = vmax.f32 %v402, %v403
      %v405 = vrot.slane %v404, 1
      %v406 = vmax.f32 %v404, %v405
      %v407 = vsub.f32 %v398, %v406
      %v408 = vmul.f32 %v407, 1.442695
      %v409 = vpow.pop %v408
      %v410 = vsel %vm399, %v409, 0.0
      %v411 = vrot.slane %v410, 4
      %v412 = vadd.f32 %v410, %v411
      %v413 = vrot.slane %v412, 2
      %v414 = vadd.f32 %v412, %v413
      %v415 = vrot.slane %v414, 1
      %v416 = vadd.f32 %v414, %v415
      %v417 = vrcp.pop %v416
      %v418 = vmul.f32 %v409, %v417
      %v419 = vpack.c.bf16 %v418, %v418
      %420 = vxpose.xlu0.c.b16.start [1/8] %v419, 128
      %421 = vxpose.xlu0.c.b16.cont [2/8] 0, 128
      %422 = vxpose.xlu0.c.b16.cont [3/8] 0, 128
      %423 = vxpose.xlu0.c.b16.cont [4/8] 0, 128
      %424 = vxpose.xlu0.c.b16.cont [5/8] 0, 128
      %425 = vxpose.xlu0.c.b16.cont [6/8] 0, 128
      %426 = vxpose.xlu0.c.b16.cont [7/8] 0, 128
      %427 = vxpose.xlu0.c.b16.end [8/8] 0, 128
      %v428 = vpop.trf.xlu0
      %v429 = vpop.trf.xlu0
      %v430 = vpop.trf.xlu0
      %v431 = vpop.trf.xlu0
      %v432 = vpop.trf.xlu0
      %v433 = vpop.trf.xlu0
      %v434 = vpop.trf.xlu0
      %v435 = vpop.trf.xlu0
      %vm436 = vcmask 31744
      %v438 = vsel %vm436, %v428, 0
      %vm440 = vcmask 1041408
      %v441 = vsel %vm440, %v254, 0
      %443 = vmatprep.subr.bf16.mxu0 0
      %444 = vmatpush1.bf16.msra.mxu0 0
      %445 = vmatprep.subr.bf16.mxu0 0
      %446 = vmatpush1.bf16.msra.mxu0 0
      %447 = vmatprep.subr.bf16.mxu0 0
      %448 = vmatpush1.bf16.msra.mxu0 0
      %449 = vmatprep.subr.bf16.mxu0 0
      %450 = vmatpush1.bf16.msra.mxu0 0
      %451 = vmatprep.subr.bf16.mxu0 0
      %452 = vmatpush1.bf16.msra.mxu0 0
      %453 = vmatprep.subr.bf16.mxu0 0
      %454 = vmatpush1.bf16.msra.mxu0 0
      %455 = vmatprep.subr.bf16.mxu0 0
      %456 = vmatpush1.bf16.msra.mxu0 0
      %457 = vmatprep.subr.bf16.mxu0 0
      %458 = vmatpush1.bf16.msra.mxu0 %v441
      %459 = vmatprep.subr.bf16.mxu0 0
      %460 = vmatpush2.bf16.msra.mxu0 0
      %461 = vmatprep.subr.bf16.mxu0 0
      %462 = vmatpush2.bf16.msra.mxu0 0
      %463 = vmatprep.subr.bf16.mxu0 0
      %464 = vmatpush2.bf16.msra.mxu0 0
      %465 = vmatprep.subr.bf16.mxu0 0
      %466 = vmatpush2.bf16.msra.mxu0 0
      %467 = vmatprep.subr.bf16.mxu0 0
      %468 = vmatpush2.bf16.msra.mxu0 0
      %469 = vmatprep.subr.bf16.mxu0 0
      %470 = vmatpush2.bf16.msra.mxu0 0
      %471 = vmatprep.subr.bf16.mxu0 0
      %472 = vmatpush2.bf16.msra.mxu0 0
      %473 = vmatprep.subr.bf16.mxu0 0
      %474 = vmatpush2.bf16.msra.mxu0 0
      %475 = vmatprep.mubr.bf16.mxu0 0
      %476 = vmatmul.mubr.bf16.gmra.mxu0 %v438
      %v477 = vpop.f32.mrf.mxu0
      %v478 = vadd.f32 0.0, %v477
      %v479 = vpop.f32.mrf.mxu0
      %v480 = vpop.f32.mrf.mxu0
      %v481 = vpop.f32.mrf.mxu0
      %482 = vdwg.mxu0
      %vm483 = vcmask 517120
      %484 = vst.msk [vmem:[%s250] sm:$0x3] %vm483, %v478
      %p485 = scmp.lt.s32.totalorder %s16, 1
      %s486 = scalar_select %p485, %s16, 1
      %s487 = smul.addr %s486, 2
      %s488 = scalar_lea.vmem %s5, %s487
      // Predicated region
      $region41: #{_lambda_.8} parent=39 // pred_check
        %p489 = pneg %p154
      $region42: #{_lambda_.8} parent=39 // pred_check_branch
        %491 = sbr.rel (%p489) target = $region44
      $region43: #{_lambda_.8} parent=39 // pred_region
        _
      $region44: #{_lambda_.8} parent=39 // pred_fallthru
        _
    $region40: #{_lambda_.8} parent=5 // pred_fallthru
      _
    %p492 = scmp.le.s32.totalorder 2, %s11
    // Predicated region
    $region45: #{_lambda_.8} parent=5 // pred_check
      %p493 = pneg %p492
    $region46: #{_lambda_.8} parent=5 // pred_check_branch
      %495 = sbr.rel (%p493) target = $region48
    $region47: #{_lambda_.8} parent=5 // pred_region
      %s496 = ssub.s32 %s11, 2
      // Predicated region
      $region49: #{_lambda_.8} parent=47 // pred_check
        %p497 = pneg %p160
      $region50: #{_lambda_.8} parent=47 // pred_check_branch
        %499 = sbr.rel (%p497) target = $region52
      $region51: #{_lambda_.8} parent=47 // pred_region
        %p500 = scmp.lt.s32.totalorder %s17, 1
        %s501 = scalar_select %p500, %s17, 1
        %s502 = smul.addr %s501, 2
        %s503 = scalar_lea.vmem %s5, %s502
      $region52: #{_lambda_.8} parent=47 // pred_fallthru
        _
    $region48: #{_lambda_.8} parent=5 // pred_fallthru
      _
  $region6: #{_lambda_.8} parent=0 // loop_footer
    %s15 = sadd.s32 1, %s11
  $region7: #{_lambda_.8} parent=0 // loop_footer_branch
    %10 = sbr.rel target = $region3
  $region8: #{_lambda_.8} parent=0 // loop_exit
    _

// kernel: _lambda_.7
$region0: #{_lambda_.7}
  #allocation0 [shape = 'u32[]', space=smem, size = 0x4, offset = 0x4, fixed_abs, tag = 'smem constant byte address 0x4 - core index']
  #allocation1 [shape = 'u32[144,128]{1,0:T(1,128)}', space=vmem, size = 0x12000, scoped, tag = 'internal scratch']
  %s0 = inlined_call_operand.vmem [shape: f32[6,16,16], index: 0, kind: input, shape index: {}]
  %s1 = inlined_call_operand.vmem [shape: f32[6,16,32], index: 1, kind: input, shape index: {}]
  %s2 = inlined_call_operand.vmem [shape: f32[6,16,1], index: 2, kind: input, shape index: {}]
  %s3 = inlined_call_operand.vmem [shape: f32[6,1,16], index: 3, kind: input, shape index: {}]
  %s4 = inlined_call_operand.vmem [shape: bf16[32,32], index: 4, kind: input, shape index: {}]
  %s5 = inlined_call_operand.vmem [shape: bf16[32,96], index: 5, kind: input, shape index: {}]
  %s6 = inlined_call_operand.vmem [shape: bf16[32,96], index: 6, kind: input, shape index: {}]
  %s7 = inlined_call_operand.vmem [shape: f32[1,96], index: 7, kind: input, shape index: {}]
  %s8 = inlined_call_operand.vmem [shape: bf16[32,32], index: 8, kind: input, shape index: {}]
  %s9 = inlined_call_operand.vmem [shape: bf16[32,16], index: 9, kind: input, shape index: {}]
  %s10 = inlined_call_operand.vmem [shape: bf16[16,2], index: 10, kind: input, shape index: {}]
  %s11 = inlined_call_operand.vmem [shape: f32[6,2,32], index: 11, kind: output, shape index: {}]
  %s12 = sld [smem:[#allocation0]]
  $region77: #{_lambda_.7} parent=0
    _
  %s14 = ssub.s32 1, %s12
  %s15 = scalar_select 0, %s14, %s12
  loop: start=0, step=1, limit=4
  $region2: #{_lambda_.7} parent=0 // loop_pre_header
    _
  $region3: #{_lambda_.7} parent=0 // loop_header
    %s17 = sphi 0, %s21
    %p18 = scmp.ge.s32.totalorder %s17, 4
    %s27 = sphi 0, %s29
    %s30 = sphi 0, %s27
    %s31 = sphi 0, %s30
    %s47 = sphi 0, %s31
    %s53 = sphi 0, %s55
    %s56 = sphi 0, %s53
    %s57 = sphi 0, %s56
    %s73 = sphi 0, %s57
    %s79 = sphi 0, %s81
    %s82 = sphi 0, %s79
    %s83 = sphi 0, %s82
    %s99 = sphi 0, %s83
    %s105 = sphi 0, %s107
    %s108 = sphi 0, %s105
    %s109 = sphi 0, %s108
    %s125 = sphi 0, %s109
    %s129 = sphi 0, %s129
    %s131 = sphi 0, %s129
    %s132 = sphi 0, %s131
    %s146 = sphi 0, %s132
    %s150 = sphi 0, %s150
    %s152 = sphi 0, %s150
    %s153 = sphi 0, %s152
    %s167 = sphi 0, %s153
    %s171 = sphi 0, %s171
    %s173 = sphi 0, %s171
    %s174 = sphi 0, %s173
    %s188 = sphi 0, %s174
    %s192 = sphi 0, %s192
    %s194 = sphi 0, %s192
    %s195 = sphi 0, %s194
    %s209 = sphi 0, %s195
    %s213 = sphi 0, %s213
    %s215 = sphi 0, %s213
    %s216 = sphi 0, %s215
    %s230 = sphi 0, %s216
    %s234 = sphi 0, %s234
    %s236 = sphi 0, %s234
    %s237 = sphi 0, %s236
    %s251 = sphi 0, %s237
    %s255 = sphi 0, %s255
    %s257 = sphi 0, %s255
    %s258 = sphi 0, %s257
    %s272 = sphi 0, %s258
    %s278 = sphi 0, %s280
    %s281 = sphi 0, %s278
    %s282 = sphi 0, %s281
    %s298 = sphi 0, %s282
  $region4: #{_lambda_.7} parent=0 // loop_header_branch
    %20 = sbr.rel (%p18) target = $region8
  $region5: #{_lambda_.7} parent=0 // loop_body
    %s22 = ssub.s32 %s17, 1
    %s23 = ssub.s32 %s17, 2
    %s24 = sadd.s32 %s17, 1
    %s25 = ssub.s32 %s17, %s24
    %p26 = scmp.eq.s32.totalorder %s25, 0
    %s28 = sadd.s32 %s27, 1
    %s29 = scalar_select %p26, %s27, %s28
    %p32 = pneg %p26
    %p33 = scmp.eq.s32.totalorder %s17, 1
    %p34 = por %p32, %p33
    %p35 = scmp.ne.s32.totalorder %s27, %s30
    %p36 = scmp.eq.s32.totalorder %s17, 0
    %p37 = por %p35, %p36
    %p38 = scmp.ne.s32.totalorder %s27, %s30
    %p39 = scmp.eq.s32.totalorder %s22, 1
    %p40 = por %p38, %p39
    %p41 = scmp.ne.s32.totalorder %s30, %s31
    %p42 = scmp.eq.s32.totalorder %s22, 0
    %p43 = por %p41, %p42
    %p44 = scmp.ne.s32.totalorder %s30, %s31
    %p45 = scmp.eq.s32.totalorder %s23, 1
    %p46 = por %p44, %p45
    %p48 = scmp.ne.s32.totalorder %s31, %s47
    %p49 = scmp.eq.s32.totalorder %s23, 0
    %p50 = por %p48, %p49
    %s51 = ssub.s32 %s17, %s24
    %p52 = scmp.eq.s32.totalorder %s51, 0
    %s54 = sadd.s32 %s53, 1
    %s55 = scalar_select %p52, %s53, %s54
    %p58 = pneg %p52
    %p59 = scmp.eq.s32.totalorder %s17, 1
    %p60 = por %p58, %p59
    %p61 = scmp.ne.s32.totalorder %s53, %s56
    %p62 = scmp.eq.s32.totalorder %s17, 0
    %p63 = por %p61, %p62
    %p64 = scmp.ne.s32.totalorder %s53, %s56
    %p65 = scmp.eq.s32.totalorder %s22, 1
    %p66 = por %p64, %p65
    %p67 = scmp.ne.s32.totalorder %s56, %s57
    %p68 = scmp.eq.s32.totalorder %s22, 0
    %p69 = por %p67, %p68
    %p70 = scmp.ne.s32.totalorder %s56, %s57
    %p71 = scmp.eq.s32.totalorder %s23, 1
    %p72 = por %p70, %p71
    %p74 = scmp.ne.s32.totalorder %s57, %s73
    %p75 = scmp.eq.s32.totalorder %s23, 0
    %p76 = por %p74, %p75
    %s77 = ssub.s32 %s17, %s24
    %p78 = scmp.eq.s32.totalorder %s77, 0
    %s80 = sadd.s32 %s79, 1
    %s81 = scalar_select %p78, %s79, %s80
    %p84 = pneg %p78
    %p85 = scmp.eq.s32.totalorder %s17, 1
    %p86 = por %p84, %p85
    %p87 = scmp.ne.s32.totalorder %s79, %s82
    %p88 = scmp.eq.s32.totalorder %s17, 0
    %p89 = por %p87, %p88
    %p90 = scmp.ne.s32.totalorder %s79, %s82
    %p91 = scmp.eq.s32.totalorder %s22, 1
    %p92 = por %p90, %p91
    %p93 = scmp.ne.s32.totalorder %s82, %s83
    %p94 = scmp.eq.s32.totalorder %s22, 0
    %p95 = por %p93, %p94
    %p96 = scmp.ne.s32.totalorder %s82, %s83
    %p97 = scmp.eq.s32.totalorder %s23, 1
    %p98 = por %p96, %p97
    %p100 = scmp.ne.s32.totalorder %s83, %s99
    %p101 = scmp.eq.s32.totalorder %s23, 0
    %p102 = por %p100, %p101
    %s103 = ssub.s32 %s17, %s24
    %p104 = scmp.eq.s32.totalorder %s103, 0
    %s106 = sadd.s32 %s105, 1
    %s107 = scalar_select %p104, %s105, %s106
    %p110 = pneg %p104
    %p111 = scmp.eq.s32.totalorder %s17, 1
    %p112 = por %p110, %p111
    %p113 = scmp.ne.s32.totalorder %s105, %s108
    %p114 = scmp.eq.s32.totalorder %s17, 0
    %p115 = por %p113, %p114
    %p116 = scmp.ne.s32.totalorder %s105, %s108
    %p117 = scmp.eq.s32.totalorder %s22, 1
    %p118 = por %p116, %p117
    %p119 = scmp.ne.s32.totalorder %s108, %s109
    %p120 = scmp.eq.s32.totalorder %s22, 0
    %p121 = por %p119, %p120
    %p122 = scmp.ne.s32.totalorder %s108, %s109
    %p123 = scmp.eq.s32.totalorder %s23, 1
    %p124 = por %p122, %p123
    %p126 = scmp.ne.s32.totalorder %s109, %s125
    %p127 = scmp.eq.s32.totalorder %s23, 0
    %p128 = por %p126, %p127
    %s130 = sadd.s32 %s129, 1
    %p133 = scmp.eq.s32.totalorder %s17, 1
    %p134 = scmp.ne.s32.totalorder %s129, %s131
    %p135 = scmp.eq.s32.totalorder %s17, 0
    %p136 = por %p134, %p135
    %p137 = scmp.ne.s32.totalorder %s129, %s131
    %p138 = scmp.eq.s32.totalorder %s22, 1
    %p139 = por %p137, %p138
    %p140 = scmp.ne.s32.totalorder %s131, %s132
    %p141 = scmp.eq.s32.totalorder %s22, 0
    %p142 = por %p140, %p141
    %p143 = scmp.ne.s32.totalorder %s131, %s132
    %p144 = scmp.eq.s32.totalorder %s23, 1
    %p145 = por %p143, %p144
    %p147 = scmp.ne.s32.totalorder %s132, %s146
    %p148 = scmp.eq.s32.totalorder %s23, 0
    %p149 = por %p147, %p148
    %s151 = sadd.s32 %s150, 1
    %p154 = scmp.eq.s32.totalorder %s17, 1
    %p155 = scmp.ne.s32.totalorder %s150, %s152
    %p156 = scmp.eq.s32.totalorder %s17, 0
    %p157 = por %p155, %p156
    %p158 = scmp.ne.s32.totalorder %s150, %s152
    %p159 = scmp.eq.s32.totalorder %s22, 1
    %p160 = por %p158, %p159
    %p161 = scmp.ne.s32.totalorder %s152, %s153
    %p162 = scmp.eq.s32.totalorder %s22, 0
    %p163 = por %p161, %p162
    %p164 = scmp.ne.s32.totalorder %s152, %s153
    %p165 = scmp.eq.s32.totalorder %s23, 1
    %p166 = por %p164, %p165
    %p168 = scmp.ne.s32.totalorder %s153, %s167
    %p169 = scmp.eq.s32.totalorder %s23, 0
    %p170 = por %p168, %p169
    %s172 = sadd.s32 %s171, 1
    %p175 = scmp.eq.s32.totalorder %s17, 1
    %p176 = scmp.ne.s32.totalorder %s171, %s173
    %p177 = scmp.eq.s32.totalorder %s17, 0
    %p178 = por %p176, %p177
    %p179 = scmp.ne.s32.totalorder %s171, %s173
    %p180 = scmp.eq.s32.totalorder %s22, 1
    %p181 = por %p179, %p180
    %p182 = scmp.ne.s32.totalorder %s173, %s174
    %p183 = scmp.eq.s32.totalorder %s22, 0
    %p184 = por %p182, %p183
    %p185 = scmp.ne.s32.totalorder %s173, %s174
    %p186 = scmp.eq.s32.totalorder %s23, 1
    %p187 = por %p185, %p186
    %p189 = scmp.ne.s32.totalorder %s174, %s188
    %p190 = scmp.eq.s32.totalorder %s23, 0
    %p191 = por %p189, %p190
    %s193 = sadd.s32 %s192, 1
    %p196 = scmp.eq.s32.totalorder %s17, 1
    %p197 = scmp.ne.s32.totalorder %s192, %s194
    %p198 = scmp.eq.s32.totalorder %s17, 0
    %p199 = por %p197, %p198
    %p200 = scmp.ne.s32.totalorder %s192, %s194
    %p201 = scmp.eq.s32.totalorder %s22, 1
    %p202 = por %p200, %p201
    %p203 = scmp.ne.s32.totalorder %s194, %s195
    %p204 = scmp.eq.s32.totalorder %s22, 0
    %p205 = por %p203, %p204
    %p206 = scmp.ne.s32.totalorder %s194, %s195
    %p207 = scmp.eq.s32.totalorder %s23, 1
    %p208 = por %p206, %p207
    %p210 = scmp.ne.s32.totalorder %s195, %s209
    %p211 = scmp.eq.s32.totalorder %s23, 0
    %p212 = por %p210, %p211
    %s214 = sadd.s32 %s213, 1
    %p217 = scmp.eq.s32.totalorder %s17, 1
    %p218 = scmp.ne.s32.totalorder %s213, %s215
    %p219 = scmp.eq.s32.totalorder %s17, 0
    %p220 = por %p218, %p219
    %p221 = scmp.ne.s32.totalorder %s213, %s215
    %p222 = scmp.eq.s32.totalorder %s22, 1
    %p223 = por %p221, %p222
    %p224 = scmp.ne.s32.totalorder %s215, %s216
    %p225 = scmp.eq.s32.totalorder %s22, 0
    %p226 = por %p224, %p225
    %p227 = scmp.ne.s32.totalorder %s215, %s216
    %p228 = scmp.eq.s32.totalorder %s23, 1
    %p229 = por %p227, %p228
    %p231 = scmp.ne.s32.totalorder %s216, %s230
    %p232 = scmp.eq.s32.totalorder %s23, 0
    %p233 = por %p231, %p232
    %s235 = sadd.s32 %s234, 1
    %p238 = scmp.eq.s32.totalorder %s17, 1
    %p239 = scmp.ne.s32.totalorder %s234, %s236
    %p240 = scmp.eq.s32.totalorder %s17, 0
    %p241 = por %p239, %p240
    %p242 = scmp.ne.s32.totalorder %s234, %s236
    %p243 = scmp.eq.s32.totalorder %s22, 1
    %p244 = por %p242, %p243
    %p245 = scmp.ne.s32.totalorder %s236, %s237
    %p246 = scmp.eq.s32.totalorder %s22, 0
    %p247 = por %p245, %p246
    %p248 = scmp.ne.s32.totalorder %s236, %s237
    %p249 = scmp.eq.s32.totalorder %s23, 1
    %p250 = por %p248, %p249
    %p252 = scmp.ne.s32.totalorder %s237, %s251
    %p253 = scmp.eq.s32.totalorder %s23, 0
    %p254 = por %p252, %p253
    %s256 = sadd.s32 %s255, 1
    %p259 = scmp.eq.s32.totalorder %s17, 1
    %p260 = scmp.ne.s32.totalorder %s255, %s257
    %p261 = scmp.eq.s32.totalorder %s17, 0
    %p262 = por %p260, %p261
    %p263 = scmp.ne.s32.totalorder %s255, %s257
    %p264 = scmp.eq.s32.totalorder %s22, 1
    %p265 = por %p263, %p264
    %p266 = scmp.ne.s32.totalorder %s257, %s258
    %p267 = scmp.eq.s32.totalorder %s22, 0
    %p268 = por %p266, %p267
    %p269 = scmp.ne.s32.totalorder %s257, %s258
    %p270 = scmp.eq.s32.totalorder %s23, 1
    %p271 = por %p269, %p270
    %p273 = scmp.ne.s32.totalorder %s258, %s272
    %p274 = scmp.eq.s32.totalorder %s23, 0
    %p275 = por %p273, %p274
    %s276 = ssub.s32 %s17, %s24
    %p277 = scmp.eq.s32.totalorder %s276, 0
    %s279 = sadd.s32 %s278, 1
    %s280 = scalar_select %p277, %s278, %s279
    %p283 = pneg %p277
    %p284 = scmp.eq.s32.totalorder %s17, 1
    %p285 = por %p283, %p284
    %p286 = scmp.ne.s32.totalorder %s278, %s281
    %p287 = scmp.eq.s32.totalorder %s17, 0
    %p288 = por %p286, %p287
    %p289 = scmp.ne.s32.totalorder %s278, %s281
    %p290 = scmp.eq.s32.totalorder %s22, 1
    %p291 = por %p289, %p290
    %p292 = scmp.ne.s32.totalorder %s281, %s282
    %p293 = scmp.eq.s32.totalorder %s22, 0
    %p294 = por %p292, %p293
    %p295 = scmp.ne.s32.totalorder %s281, %s282
    %p296 = scmp.eq.s32.totalorder %s23, 1
    %p297 = por %p295, %p296
    %p299 = scmp.ne.s32.totalorder %s282, %s298
    %p300 = scmp.eq.s32.totalorder %s23, 0
    %p301 = por %p299, %p300
    %p302 = scmp.le.s32.totalorder 1, %s17
    %p303 = scmp.lt.s32.totalorder %s17, 3
    %p304 = pnand %p302, %p303
    %p305 = pneg %p304
    // Predicated region
    $region9: #{_lambda_.7} parent=5 // pred_check
      _
    $region10: #{_lambda_.7} parent=5 // pred_check_branch
      %307 = sbr.rel (%p304) target = $region12
    $region11: #{_lambda_.7} parent=5 // pred_region
      %s308 = ssub.s32 %s17, 1
      // Predicated region
      $region13: #{_lambda_.7} parent=11 // pred_check
        %p309 = pneg %p142
      $region14: #{_lambda_.7} parent=11 // pred_check_branch
        %311 = sbr.rel (%p309) target = $region16
      $region15: #{_lambda_.7} parent=11 // pred_region
        _
      $region16: #{_lambda_.7} parent=11 // pred_fallthru
        _
      // Predicated region
      $region17: #{_lambda_.7} parent=11 // pred_check
        %p312 = pneg %p163
      $region18: #{_lambda_.7} parent=11 // pred_check_branch
        %314 = sbr.rel (%p312) target = $region20
      $region19: #{_lambda_.7} parent=11 // pred_region
        _
      $region20: #{_lambda_.7} parent=11 // pred_fallthru
        _
      // Predicated region
      $region21: #{_lambda_.7} parent=11 // pred_check
        %p315 = pneg %p184
      $region22: #{_lambda_.7} parent=11 // pred_check_branch
        %317 = sbr.rel (%p315) target = $region24
      $region23: #{_lambda_.7} parent=11 // pred_region
        _
      $region24: #{_lambda_.7} parent=11 // pred_fallthru
        _
      // Predicated region
      $region25: #{_lambda_.7} parent=11 // pred_check
        %p318 = pneg %p205
      $region26: #{_lambda_.7} parent=11 // pred_check_branch
        %320 = sbr.rel (%p318) target = $region28
      $region27: #{_lambda_.7} parent=11 // pred_region
        _
      $region28: #{_lambda_.7} parent=11 // pred_fallthru
        _
      // Predicated region
      $region29: #{_lambda_.7} parent=11 // pred_check
        %p321 = pneg %p226
      $region30: #{_lambda_.7} parent=11 // pred_check_branch
        %323 = sbr.rel (%p321) target = $region32
      $region31: #{_lambda_.7} parent=11 // pred_region
        _
      $region32: #{_lambda_.7} parent=11 // pred_fallthru
        _
      // Predicated region
      $region33: #{_lambda_.7} parent=11 // pred_check
        %p324 = pneg %p247
      $region34: #{_lambda_.7} parent=11 // pred_check_branch
        %326 = sbr.rel (%p324) target = $region36
      $region35: #{_lambda_.7} parent=11 // pred_region
        _
      $region36: #{_lambda_.7} parent=11 // pred_fallthru
        _
      // Predicated region
      $region37: #{_lambda_.7} parent=11 // pred_check
        %p327 = pneg %p268
      $region38: #{_lambda_.7} parent=11 // pred_check_branch
        %329 = sbr.rel (%p327) target = $region40
      $region39: #{_lambda_.7} parent=11 // pred_region
        _
      $region40: #{_lambda_.7} parent=11 // pred_fallthru
        _
    $region12: #{_lambda_.7} parent=5 // pred_fallthru
      _
    %p330 = scmp.lt.s32.totalorder %s17, 2
    // Predicated region
    $region41: #{_lambda_.7} parent=5 // pred_check
      %p331 = pneg %p330
    $region42: #{_lambda_.7} parent=5 // pred_check_branch
      %333 = sbr.rel (%p331) target = $region44
    $region43: #{_lambda_.7} parent=5 // pred_region
      // Predicated region
      $region45: #{_lambda_.7} parent=43 // pred_check
        %p334 = pneg %p37
      $region46: #{_lambda_.7} parent=43 // pred_check_branch
        %336 = sbr.rel (%p334) target = $region48
      $region47: #{_lambda_.7} parent=43 // pred_region
        %s337 = smul.u32 3, %s17
        %p338 = scmp.lt.s32.totalorder %s337, 5
        %s339 = scalar_select %p338, %s337, 5
        %s340 = smul.addr %s339, 2
        %s341 = smul.addr %s340, 8
        %s342 = scalar_lea.vmem %s0, %s341
        %s343 = smul.u32 3, %s17
      $region48: #{_lambda_.7} parent=43 // pred_fallthru
        _
      // Predicated region
      $region49: #{_lambda_.7} parent=43 // pred_check
        %p344 = pneg %p63
      $region50: #{_lambda_.7} parent=43 // pred_check_branch
        %346 = sbr.rel (%p344) target = $region52
      $region51: #{_lambda_.7} parent=43 // pred_region
        %s347 = smul.u32 3, %s17
        %p348 = scmp.lt.s32.totalorder %s347, 5
        %s349 = scalar_select %p348, %s347, 5
        %s350 = smul.addr %s349, 2
        %s351 = smul.addr %s350, 8
        %s352 = scalar_lea.vmem %s1, %s351
        %s353 = smul.u32 3, %s17
      $region52: #{_lambda_.7} parent=43 // pred_fallthru
        _
      // Predicated region
      $region53: #{_lambda_.7} parent=43 // pred_check
        %p354 = pneg %p89
      $region54: #{_lambda_.7} parent=43 // pred_check_branch
        %356 = sbr.rel (%p354) target = $region56
      $region55: #{_lambda_.7} parent=43 // pred_region
        %s357 = smul.u32 3, %s17
        %p358 = scmp.lt.s32.totalorder %s357, 5
        %s359 = scalar_select %p358, %s357, 5
        %s360 = smul.addr %s359, 2
        %s361 = smul.addr %s360, 8
        %s362 = scalar_lea.vmem %s2, %s361
        %s363 = smul.u32 3, %s17
      $region56: #{_lambda_.7} parent=43 // pred_fallthru
        _
      // Predicated region
      $region57: #{_lambda_.7} parent=43 // pred_check
        %p364 = pneg %p115
      $region58: #{_lambda_.7} parent=43 // pred_check_branch
        %366 = sbr.rel (%p364) target = $region60
      $region59: #{_lambda_.7} parent=43 // pred_region
        %s367 = smul.u32 3, %s17
        %p368 = scmp.lt.s32.totalorder %s367, 5
        %s369 = scalar_select %p368, %s367, 5
        %s370 = scalar_lea.vmem %s3, %s369
        %s371 = smul.u32 3, %s17
      $region60: #{_lambda_.7} parent=43 // pred_fallthru
        _
    $region44: #{_lambda_.7} parent=5 // pred_fallthru
      _
    %p372 = scmp.le.s32.totalorder 1, %s17
    %p373 = scmp.lt.s32.totalorder %s17, 3
    %p374 = pnand %p372, %p373
    %p375 = pneg %p374
    // Predicated region
    $region61: #{_lambda_.7} parent=5 // pred_check
      _
    $region62: #{_lambda_.7} parent=5 // pred_check_branch
      %377 = sbr.rel (%p374) target = $region64
    $region63: #{_lambda_.7} parent=5 // pred_region
      %s378 = ssub.s32 %s17, 1
      %s379 = smul.u32 3, %s22
      %p380 = scmp.lt.s32.totalorder %s379, 5
      %s381 = scalar_select %p380, %s379, 5
      %s382 = smul.addr %s381, 2
      %s383 = smul.addr %s382, 8
      %s384 = scalar_lea.vmem %s0, %s383
      %p385 = pneg %p43
      %p386 = pneg %p40
      %s387 = smul.u32 3, %s22
      %p388 = scmp.lt.s32.totalorder %s387, 5
      %s389 = scalar_select %p388, %s387, 5
      %s390 = smul.addr %s389, 2
      %s391 = smul.addr %s390, 8
      %s392 = scalar_lea.vmem %s1, %s391
      %p393 = pneg %p69
      %p394 = pneg %p66
      %s395 = smul.u32 3, %s22
      %p396 = scmp.lt.s32.totalorder %s395, 5
      %s397 = scalar_select %p396, %s395, 5
      %s398 = smul.addr %s397, 2
      %s399 = smul.addr %s398, 8
      %s400 = scalar_lea.vmem %s2, %s399
      %p401 = pneg %p95
      %p402 = pneg %p92
      %s403 = smul.u32 3, %s22
      %p404 = scmp.lt.s32.totalorder %s403, 5
      %s405 = scalar_select %p404, %s403, 5
      %s406 = scalar_lea.vmem %s3, %s405
      %p407 = pneg %p121
      %p408 = pneg %p118
      %p409 = pneg %p142
      %p410 = pneg %p139
      %p411 = pneg %p163
      %p412 = pneg %p160
      %p413 = pneg %p184
      %p414 = pneg %p181
      %p415 = pneg %p205
      %p416 = pneg %p202
      %p417 = pneg %p226
      %p418 = pneg %p223
      %p419 = pneg %p247
      %p420 = pneg %p244
      %p421 = pneg %p268
      %p422 = pneg %p265
      %p423 = pneg %p294
      %p424 = pneg %p291
      %s425 = smul.u32 3, %s22
      %p426 = scmp.lt.s32.totalorder %s425, 5
      %s427 = scalar_select %p426, %s425, 5
      %s428 = smul.addr %s427, 2
      %s429 = scalar_lea.vmem %s11, %s428
      %s430 = smul.u32 3, %s22
      %p431 = scmp.lt.s32.totalorder %s430, 5
      %s432 = scalar_select %p431, %s430, 5
      %s433 = smul.addr %s432, 2
      %s434 = smul.addr %s433, 8
      %s435 = scalar_lea.vmem %s0, %s434
      %s436 = smul.u32 3, %s22
      %s437 = smul.u32 3, %s22
      %p438 = scmp.lt.s32.totalorder %s437, 5
      %s439 = scalar_select %p438, %s437, 5
      %s440 = smul.addr %s439, 2
      %s441 = smul.addr %s440, 8
      %s442 = scalar_lea.vmem %s1, %s441
      %s443 = smul.u32 3, %s22
      %s444 = smul.u32 3, %s22
      %p445 = scmp.lt.s32.totalorder %s444, 5
      %s446 = scalar_select %p445, %s444, 5
      %s447 = smul.addr %s446, 2
      %s448 = smul.addr %s447, 8
      %s449 = scalar_lea.vmem %s2, %s448
      %s450 = smul.u32 3, %s22
      %s451 = smul.u32 3, %s22
      %p452 = scmp.lt.s32.totalorder %s451, 5
      %s453 = scalar_select %p452, %s451, 5
      %s454 = scalar_lea.vmem %s3, %s453
      %s455 = smul.u32 3, %s22
      %s456 = smul.u32 3, %s22
      %p457 = scmp.lt.s32.totalorder %s456, 5
      %s458 = scalar_select %p457, %s456, 5
      %s459 = smul.addr %s458, 2
      %s460 = scalar_lea.vmem %s11, %s459
      %s461 = smul.u32 3, %s22
      %v463 = vld [vmem:[%s435] sm:$0xff]
      %v464 = vld [vmem:[%s435 + $0x8] sm:$0xff]
      %v465 = vld [vmem:[%s435 + $0x10] sm:$0xff]
      %v466 = vld [vmem:[%s435 + $0x18] sm:$0xff]
      %v467 = vld [vmem:[%s435 + $0x20] sm:$0xff]
      %v468 = vld [vmem:[%s435 + $0x28] sm:$0xff]
      %v469 = vld [vmem:[%s442] sm:$0xff]
      %v470 = vld [vmem:[%s442 + $0x8] sm:$0xff]
      %v471 = vld [vmem:[%s442 + $0x10] sm:$0xff]
      %v472 = vld [vmem:[%s442 + $0x18] sm:$0xff]
      %v473 = vld [vmem:[%s442 + $0x20] sm:$0xff]
      %v474 = vld [vmem:[%s442 + $0x28] sm:$0xff]
      %v475 = vpack.c.bf16 %v470, %v469
      %v476 = vpack.c.bf16 %v472, %v471
      %v477 = vpack.c.bf16 %v474, %v473
      %v478 = vld [vmem:[%s4] sm:$0xf]
      %v479 = vld [vmem:[%s4 + $0x4] sm:$0xf]
      %v480 = vld [vmem:[%s4 + $0x8] sm:$0xf]
      %v481 = vld [vmem:[%s4 + $0xc] sm:$0xf]
      %v486 = vunpack.c.l.b16 %v478
      %v487 = vunpack.c.l.b16 %v479
      %v488 = vunpack.c.l.b16 %v480
      %v489 = vunpack.c.l.b16 %v481
      %v490 = vpack.c.b16 %v487, %v486
      %v491 = vpack.c.b16 %v489, %v488
      %vm494 = vcmask 261120
      %v496 = vsel %vm494, %v475, 0
      %v499 = vsel %vm494, %v476, 0
      %v502 = vsel %vm494, %v477, 0
      %504 = vmatprep.subr.bf16.mxu0 0
      %505 = vmatpush1.bf16.msra.mxu0 0
      %506 = vmatprep.subr.bf16.mxu0 0
      %507 = vmatpush1.bf16.msra.mxu0 0
      %508 = vmatprep.subr.bf16.mxu0 0
      %509 = vmatpush1.bf16.msra.mxu0 0
      %510 = vmatprep.subr.bf16.mxu0 0
      %511 = vmatpush1.bf16.msra.mxu0 0
      %512 = vmatprep.subr.bf16.mxu0 0
      %513 = vmatpush1.bf16.msra.mxu0 0
      %514 = vmatprep.subr.bf16.mxu0 0
      %515 = vmatpush1.bf16.msra.mxu0 0
      %516 = vmatprep.subr.bf16.mxu0 0
      %517 = vmatpush1.bf16.msra.mxu0 %v491
      %518 = vmatprep.subr.bf16.mxu0 0
      %519 = vmatpush1.bf16.msra.mxu0 %v490
      %520 = vmatprep.subr.bf16.mxu0 0
      %521 = vmatpush2.bf16.msra.mxu0 0
      %522 = vmatprep.subr.bf16.mxu0 0
      %523 = vmatpush2.bf16.msra.mxu0 0
      %524 = vmatprep.subr.bf16.mxu0 0
      %525 = vmatpush2.bf16.msra.mxu0 0
      %526 = vmatprep.subr.bf16.mxu0 0
      %527 = vmatpush2.bf16.msra.mxu0 0
      %528 = vmatprep.subr.bf16.mxu0 0
      %529 = vmatpush2.bf16.msra.mxu0 0
      %530 = vmatprep.subr.bf16.mxu0 0
      %531 = vmatpush2.bf16.msra.mxu0 0
      %532 = vmatprep.subr.bf16.mxu0 0
      %533 = vmatpush2.bf16.msra.mxu0 0
      %534 = vmatprep.subr.bf16.mxu0 0
      %535 = vmatpush2.bf16.msra.mxu0 0
      %536 = vmatprep.mubr.bf16.mxu0 0
      %537 = vmatmul.mubr.bf16.gmra.mxu0 %v496
      %v538 = vpop.f32.mrf.mxu0
      %v539 = vadd.f32 0.0, %v538
      %v540 = vpop.f32.mrf.mxu0
      %v541 = vpop.f32.mrf.mxu0
      %v542 = vadd.f32 0.0, %v541
      %v543 = vpop.f32.mrf.mxu0
      %544 = vmatprep.mubr.bf16.mxu0 0
      %545 = vmatmul.mubr.bf16.gmra.mxu0 %v499
      %v546 = vpop.f32.mrf.mxu0
      %v547 = vadd.f32 0.0, %v546
      %v548 = vpop.f32.mrf.mxu0
      %v549 = vpop.f32.mrf.mxu0
      %v550 = vadd.f32 0.0, %v549
      %v551 = vpop.f32.mrf.mxu0
      %552 = vmatprep.mubr.bf16.mxu0 0
      %553 = vmatmul.mubr.bf16.gmra.mxu0 %v502
      %v554 = vpop.f32.mrf.mxu0
      %v555 = vadd.f32 0.0, %v554
      %v556 = vpop.f32.mrf.mxu0
      %v557 = vpop.f32.mrf.mxu0
      %v558 = vadd.f32 0.0, %v557
      %v559 = vpop.f32.mrf.mxu0
      %560 = vdwg.mxu0
      %v561 = vpack.c.bf16 %v464, %v463
      %v562 = vpack.c.bf16 %v466, %v465
      %v563 = vpack.c.bf16 %v468, %v467
      %v564 = vpack.c.bf16 %v542, %v539
      %v565 = vpack.c.bf16 %v550, %v547
      %v566 = vpack.c.bf16 %v558, %v555
      %vm567 = vcmask 130048
      %v569 = vsel %vm567, %v561, 0
      %571 = vmatprep.subr.bf16.mxu0 0
      %572 = vmatpush1.bf16.msra.mxu0 0
      %573 = vmatprep.subr.bf16.mxu0 0
      %574 = vmatpush1.bf16.msra.mxu0 0
      %575 = vmatprep.subr.bf16.mxu0 0
      %576 = vmatpush1.bf16.msra.mxu0 0
      %577 = vmatprep.subr.bf16.mxu0 0
      %578 = vmatpush1.bf16.msra.mxu0 0
      %579 = vmatprep.subr.bf16.mxu0 0
      %580 = vmatpush1.bf16.msra.mxu0 0
      %581 = vmatprep.subr.bf16.mxu0 0
      %582 = vmatpush1.bf16.msra.mxu0 0
      %583 = vmatprep.subr.bf16.mxu0 0
      %584 = vmatpush1.bf16.msra.mxu0 0
      %585 = vmatprep.subr.bf16.mxu0 0
      %586 = vmatpush1.bf16.msra.mxu0 %v564
      %587 = vmatprep.subr.bf16.mxu0 0
      %588 = vmatpush2.bf16.msra.mxu0 0
      %589 = vmatprep.subr.bf16.mxu0 0
      %590 = vmatpush2.bf16.msra.mxu0 0
      %591 = vmatprep.subr.bf16.mxu0 0
      %592 = vmatpush2.bf16.msra.mxu0 0
      %593 = vmatprep.subr.bf16.mxu0 0
      %594 = vmatpush2.bf16.msra.mxu0 0
      %595 = vmatprep.subr.bf16.mxu0 0
      %596 = vmatpush2.bf16.msra.mxu0 0
      %597 = vmatprep.subr.bf16.mxu0 0
      %598 = vmatpush2.bf16.msra.mxu0 0
      %599 = vmatprep.subr.bf16.mxu0 0
      %600 = vmatpush2.bf16.msra.mxu0 0
      %601 = vmatprep.subr.bf16.mxu0 0
      %602 = vmatpush2.bf16.msra.mxu0 0
      %603 = vmatprep.mubr.bf16.mxu0 0
      %604 = vmatmul.mubr.bf16.gmra.mxu0 %v569
      %v605 = vpop.f32.mrf.mxu0
      %v606 = vadd.f32 0.0, %v605
      %v607 = vpop.f32.mrf.mxu0
      %v608 = vpop.f32.mrf.mxu0
      %v609 = vadd.f32 0.0, %v608
      %v610 = vpop.f32.mrf.mxu0
      %611 = vdwg.mxu0
      %v613 = vsel %vm567, %v562, 0
      %615 = vmatprep.subr.bf16.mxu0 0
      %616 = vmatpush1.bf16.msra.mxu0 0
      %617 = vmatprep.subr.bf16.mxu0 0
      %618 = vmatpush1.bf16.msra.mxu0 0
      %619 = vmatprep.subr.bf16.mxu0 0
      %620 = vmatpush1.bf16.msra.mxu0 0
      %621 = vmatprep.subr.bf16.mxu0 0
      %622 = vmatpush1.bf16.msra.mxu0 0
      %623 = vmatprep.subr.bf16.mxu0 0
      %624 = vmatpush1.bf16.msra.mxu0 0
      %625 = vmatprep.subr.bf16.mxu0 0
      %626 = vmatpush1.bf16.msra.mxu0 0
      %627 = vmatprep.subr.bf16.mxu0 0
      %628 = vmatpush1.bf16.msra.mxu0 0
      %629 = vmatprep.subr.bf16.mxu0 0
      %630 = vmatpush1.bf16.msra.mxu0 %v565
      %631 = vmatprep.subr.bf16.mxu0 0
      %632 = vmatpush2.bf16.msra.mxu0 0
      %633 = vmatprep.subr.bf16.mxu0 0
      %634 = vmatpush2.bf16.msra.mxu0 0
      %635 = vmatprep.subr.bf16.mxu0 0
      %636 = vmatpush2.bf16.msra.mxu0 0
      %637 = vmatprep.subr.bf16.mxu0 0
      %638 = vmatpush2.bf16.msra.mxu0 0
      %639 = vmatprep.subr.bf16.mxu0 0
      %640 = vmatpush2.bf16.msra.mxu0 0
      %641 = vmatprep.subr.bf16.mxu0 0
      %642 = vmatpush2.bf16.msra.mxu0 0
      %643 = vmatprep.subr.bf16.mxu0 0
      %644 = vmatpush2.bf16.msra.mxu0 0
      %645 = vmatprep.subr.bf16.mxu0 0
      %646 = vmatpush2.bf16.msra.mxu0 0
      %647 = vmatprep.mubr.bf16.mxu0 0
      %648 = vmatmul.mubr.bf16.gmra.mxu0 %v613
      %v649 = vpop.f32.mrf.mxu0
      %v650 = vadd.f32 0.0, %v649
      %v651 = vpop.f32.mrf.mxu0
      %v652 = vpop.f32.mrf.mxu0
      %v653 = vadd.f32 0.0, %v652
      %v654 = vpop.f32.mrf.mxu0
      %655 = vdwg.mxu0
      %v657 = vsel %vm567, %v563, 0
      %659 = vmatprep.subr.bf16.mxu0 0
      %660 = vmatpush1.bf16.msra.mxu0 0
      %661 = vmatprep.subr.bf16.mxu0 0
      %662 = vmatpush1.bf16.msra.mxu0 0
      %663 = vmatprep.subr.bf16.mxu0 0
      %664 = vmatpush1.bf16.msra.mxu0 0
      %665 = vmatprep.subr.bf16.mxu0 0
      %666 = vmatpush1.bf16.msra.mxu0 0
      %667 = vmatprep.subr.bf16.mxu0 0
      %668 = vmatpush1.bf16.msra.mxu0 0
      %669 = vmatprep.subr.bf16.mxu0 0
      %670 = vmatpush1.bf16.msra.mxu0 0
      %671 = vmatprep.subr.bf16.mxu0 0
      %672 = vmatpush1.bf16.msra.mxu0 0
      %673 = vmatprep.subr.bf16.mxu0 0
      %674 = vmatpush1.bf16.msra.mxu0 %v566
      %675 = vmatprep.subr.bf16.mxu0 0
      %676 = vmatpush2.bf16.msra.mxu0 0
      %677 = vmatprep.subr.bf16.mxu0 0
      %678 = vmatpush2.bf16.msra.mxu0 0
      %679 = vmatprep.subr.bf16.mxu0 0
      %680 = vmatpush2.bf16.msra.mxu0 0
      %681 = vmatprep.subr.bf16.mxu0 0
      %682 = vmatpush2.bf16.msra.mxu0 0
      %683 = vmatprep.subr.bf16.mxu0 0
      %684 = vmatpush2.bf16.msra.mxu0 0
      %685 = vmatprep.subr.bf16.mxu0 0
      %686 = vmatpush2.bf16.msra.mxu0 0
      %687 = vmatprep.subr.bf16.mxu0 0
      %688 = vmatpush2.bf16.msra.mxu0 0
      %689 = vmatprep.subr.bf16.mxu0 0
      %690 = vmatpush2.bf16.msra.mxu0 0
      %691 = vmatprep.mubr.bf16.mxu0 0
      %692 = vmatmul.mubr.bf16.gmra.mxu0 %v657
      %v693 = vpop.f32.mrf.mxu0
      %v694 = vadd.f32 0.0, %v693
      %v695 = vpop.f32.mrf.mxu0
      %v696 = vpop.f32.mrf.mxu0
      %v697 = vadd.f32 0.0, %v696
      %v698 = vpop.f32.mrf.mxu0
      %699 = vdwg.mxu0
      %v700 = vpack.c.bf16 %v609, %v606
      %v701 = vpack.c.bf16 %v653, %v650
      %v702 = vpack.c.bf16 %v697, %v694
      %v703 = vld [vmem:[%s5] sm:$0xf]
      %v704 = vld [vmem:[%s5 + $0x4] sm:$0xf]
      %v705 = vld [vmem:[%s5 + $0x8] sm:$0xf]
      %v706 = vld [vmem:[%s5 + $0xc] sm:$0xf]
      %v707 = vld [vmem:[%s6] sm:$0xf]
      %v708 = vld [vmem:[%s6 + $0x4] sm:$0xf]
      %v709 = vld [vmem:[%s6 + $0x8] sm:$0xf]
      %v710 = vld [vmem:[%s6 + $0xc] sm:$0xf]
      %v715 = vunpack.c.l.b16 %v707
      %v716 = vunpack.c.l.b16 %v708
      %v717 = vunpack.c.l.b16 %v709
      %v718 = vunpack.c.l.b16 %v710
      %v719 = vpack.c.b16 %v716, %v715
      %v720 = vpack.c.b16 %v718, %v717
      %v724 = vsel %vm494, %v564, 0
      %v727 = vsel %vm494, %v565, 0
      %v730 = vsel %vm494, %v566, 0
      %732 = vmatprep.subr.bf16.mxu0 0
      %733 = vmatpush1.bf16.msra.mxu0 0
      %734 = vmatprep.subr.bf16.mxu0 0
      %735 = vmatpush1.bf16.msra.mxu0 0
      %736 = vmatprep.subr.bf16.mxu0 0
      %737 = vmatpush1.bf16.msra.mxu0 0
      %738 = vmatprep.subr.bf16.mxu0 0
      %739 = vmatpush1.bf16.msra.mxu0 0
      %740 = vmatprep.subr.bf16.mxu0 0
      %741 = vmatpush1.bf16.msra.mxu0 0
      %742 = vmatprep.subr.bf16.mxu0 0
      %743 = vmatpush1.bf16.msra.mxu0 0
      %744 = vmatprep.subr.bf16.mxu0 0
      %745 = vmatpush1.bf16.msra.mxu0 %v720
      %746 = vmatprep.subr.bf16.mxu0 0
      %747 = vmatpush1.bf16.msra.mxu0 %v719
      %748 = vmatprep.subr.bf16.mxu0 0
      %749 = vmatpush2.bf16.msra.mxu0 0
      %750 = vmatprep.subr.bf16.mxu0 0
      %751 = vmatpush2.bf16.msra.mxu0 0
      %752 = vmatprep.subr.bf16.mxu0 0
      %753 = vmatpush2.bf16.msra.mxu0 0
      %754 = vmatprep.subr.bf16.mxu0 0
      %755 = vmatpush2.bf16.msra.mxu0 0
      %756 = vmatprep.subr.bf16.mxu0 0
      %757 = vmatpush2.bf16.msra.mxu0 0
      %758 = vmatprep.subr.bf16.mxu0 0
      %759 = vmatpush2.bf16.msra.mxu0 0
      %760 = vmatprep.subr.bf16.mxu0 0
      %761 = vmatpush2.bf16.msra.mxu0 0
      %762 = vmatprep.subr.bf16.mxu0 0
      %763 = vmatpush2.bf16.msra.mxu0 0
      %764 = vmatprep.mubr.bf16.mxu0 0
      %765 = vmatmul.mubr.bf16.gmra.mxu0 %v724
      %v766 = vpop.f32.mrf.mxu0
      %v767 = vadd.f32 0.0, %v766
      %v768 = vpop.f32.mrf.mxu0
      %v769 = vpop.f32.mrf.mxu0
      %v770 = vadd.f32 0.0, %v769
      %v771 = vpop.f32.mrf.mxu0
      %772 = vmatprep.mubr.bf16.mxu0 0
      %773 = vmatmul.mubr.bf16.gmra.mxu0 %v727
      %v774 = vpop.f32.mrf.mxu0
      %v775 = vadd.f32 0.0, %v774
      %v776 = vpop.f32.mrf.mxu0
      %v777 = vpop.f32.mrf.mxu0
      %v778 = vadd.f32 0.0, %v777
      %v779 = vpop.f32.mrf.mxu0
      %780 = vmatprep.mubr.bf16.mxu0 0
      %781 = vmatmul.mubr.bf16.gmra.mxu0 %v730
      %v782 = vpop.f32.mrf.mxu0
      %v783 = vadd.f32 0.0, %v782
      %v784 = vpop.f32.mrf.mxu0
      %v785 = vpop.f32.mrf.mxu0
      %v786 = vadd.f32 0.0, %v785
      %v787 = vpop.f32.mrf.mxu0
      %788 = vdwg.mxu0
      %v793 = vunpack.c.l.b16 %v703
      %v794 = vunpack.c.l.b16 %v704
      %v795 = vunpack.c.l.b16 %v705
      %v796 = vunpack.c.l.b16 %v706
      %v797 = vpack.c.b16 %v794, %v793
      %v798 = vpack.c.b16 %v796, %v795
      %v802 = vsel %vm494, %v700, 0
      %v805 = vsel %vm494, %v701, 0
      %v808 = vsel %vm494, %v702, 0
      %810 = vmatprep.subr.bf16.mxu0 0
      %811 = vmatpush1.bf16.msra.mxu0 0
      %812 = vmatprep.subr.bf16.mxu0 0
      %813 = vmatpush1.bf16.msra.mxu0 0
      %814 = vmatprep.subr.bf16.mxu0 0
      %815 = vmatpush1.bf16.msra.mxu0 0
      %816 = vmatprep.subr.bf16.mxu0 0
      %817 = vmatpush1.bf16.msra.mxu0 0
      %818 = vmatprep.subr.bf16.mxu0 0
      %819 = vmatpush1.bf16.msra.mxu0 0
      %820 = vmatprep.subr.bf16.mxu0 0
      %821 = vmatpush1.bf16.msra.mxu0 0
      %822 = vmatprep.subr.bf16.mxu0 0
      %823 = vmatpush1.bf16.msra.mxu0 %v798
      %824 = vmatprep.subr.bf16.mxu0 0
      %825 = vmatpush1.bf16.msra.mxu0 %v797
      %826 = vmatprep.subr.bf16.mxu0 0
      %827 = vmatpush2.bf16.msra.mxu0 0
      %828 = vmatprep.subr.bf16.mxu0 0
      %829 = vmatpush2.bf16.msra.mxu0 0
      %830 = vmatprep.subr.bf16.mxu0 0
      %831 = vmatpush2.bf16.msra.mxu0 0
      %832 = vmatprep.subr.bf16.mxu0 0
      %833 = vmatpush2.bf16.msra.mxu0 0
      %834 = vmatprep.subr.bf16.mxu0 0
      %835 = vmatpush2.bf16.msra.mxu0 0
      %836 = vmatprep.subr.bf16.mxu0 0
      %837 = vmatpush2.bf16.msra.mxu0 0
      %838 = vmatprep.subr.bf16.mxu0 0
      %839 = vmatpush2.bf16.msra.mxu0 0
      %840 = vmatprep.subr.bf16.mxu0 0
      %841 = vmatpush2.bf16.msra.mxu0 0
      %842 = vmatprep.mubr.bf16.mxu0 0
      %843 = vmatmul.mubr.bf16.gmra.mxu0 %v802
      %v844 = vpop.f32.mrf.mxu0
      %v845 = vadd.f32 %v767, %v844
      %v846 = vpop.f32.mrf.mxu0
      %v847 = vpop.f32.mrf.mxu0
      %v848 = vadd.f32 %v770, %v847
      %v849 = vpop.f32.mrf.mxu0
      %850 = vmatprep.mubr.bf16.mxu0 0
      %851 = vmatmul.mubr.bf16.gmra.mxu0 %v805
      %v852 = vpop.f32.mrf.mxu0
      %v853 = vadd.f32 %v775, %v852
      %v854 = vpop.f32.mrf.mxu0
      %v855 = vpop.f32.mrf.mxu0
      %v856 = vadd.f32 %v778, %v855
      %v857 = vpop.f32.mrf.mxu0
      %858 = vmatprep.mubr.bf16.mxu0 0
      %859 = vmatmul.mubr.bf16.gmra.mxu0 %v808
      %v860 = vpop.f32.mrf.mxu0
      %v861 = vadd.f32 %v783, %v860
      %v862 = vpop.f32.mrf.mxu0
      %v863 = vpop.f32.mrf.mxu0
      %v864 = vadd.f32 %v786, %v863
      %v865 = vpop.f32.mrf.mxu0
      %866 = vdwg.mxu0
      %v867 = vld [vmem:[%s7] sm:$0x1]
      %v869 = vlaneseq
      %v870 = vshrl.u32 %v869, 7
      %v871 = vsub.s32 0, %v870
      %v872 = vrot.slane %v867, %v871
      %v874 = vadd.f32 %v845, %v872
      %v875 = vadd.f32 %v848, %v872
      %v876 = vadd.f32 %v853, %v872
      %v877 = vadd.f32 %v856, %v872
      %v878 = vadd.f32 %v861, %v872
      %v879 = vadd.f32 %v864, %v872
      %v880 = vxor.u32 %v874, 2147483648
      %v881 = vxor.u32 %v875, 2147483648
      %v882 = vxor.u32 %v876, 2147483648
      %v883 = vxor.u32 %v877, 2147483648
      %v884 = vxor.u32 %v878, 2147483648
      %v885 = vxor.u32 %v879, 2147483648
      %v886 = vmul.f32 %v880, 1.442695
      %v887 = vpow.pop %v886
      %v888 = vmul.f32 %v881, 1.442695
      %v889 = vpow.pop %v888
      %v890 = vmul.f32 %v882, 1.442695
      %v891 = vpow.pop %v890
      %v892 = vmul.f32 %v883, 1.442695
      %v893 = vpow.pop %v892
      %v894 = vmul.f32 %v884, 1.442695
      %v895 = vpow.pop %v894
      %v896 = vmul.f32 %v885, 1.442695
      %v897 = vpow.pop %v896
      %v898 = vadd.f32 %v887, 1.0
      %v899 = vadd.f32 %v889, 1.0
      %v900 = vadd.f32 %v891, 1.0
      %v901 = vadd.f32 %v893, 1.0
      %v902 = vadd.f32 %v895, 1.0
      %v903 = vadd.f32 %v897, 1.0
      %v904 = vrcp.pop %v898
      %v905 = vmul.f32 1.0, %v904
      %v906 = vrcp.pop %v899
      %v907 = vmul.f32 1.0, %v906
      %v908 = vrcp.pop %v900
      %v909 = vmul.f32 1.0, %v908
      %v910 = vrcp.pop %v901
      %v911 = vmul.f32 1.0, %v910
      %v912 = vrcp.pop %v902
      %v913 = vmul.f32 1.0, %v912
      %v914 = vrcp.pop %v903
      %v915 = vmul.f32 1.0, %v914
      %922 = vrot.lane.b32.xlu0 %v539, 32
      %v923 = vpop.permute.xlu0 %922
      %924 = vrot.lane.b32.xlu0 %v542, 32
      %v925 = vpop.permute.xlu0 %924
      %926 = vrot.lane.b32.xlu0 %v547, 32
      %v927 = vpop.permute.xlu0 %926
      %928 = vrot.lane.b32.xlu0 %v550, 32
      %v929 = vpop.permute.xlu0 %928
      %930 = vrot.lane.b32.xlu0 %v555, 32
      %v931 = vpop.permute.xlu0 %930
      %932 = vrot.lane.b32.xlu0 %v558, 32
      %v933 = vpop.permute.xlu0 %932
      %v940 = vmul.f32 %v905, %v923
      %v941 = vmul.f32 %v907, %v925
      %v942 = vmul.f32 %v909, %v927
      %v943 = vmul.f32 %v911, %v929
      %v944 = vmul.f32 %v913, %v931
      %v945 = vmul.f32 %v915, %v933
      %v946 = vpack.c.bf16 %v941, %v940
      %v947 = vpack.c.bf16 %v943, %v942
      %v948 = vpack.c.bf16 %v945, %v944
      %v949 = vld [vmem:[%s8] sm:$0xf]
      %v950 = vld [vmem:[%s8 + $0x4] sm:$0xf]
      %v951 = vld [vmem:[%s8 + $0x8] sm:$0xf]
      %v952 = vld [vmem:[%s8 + $0xc] sm:$0xf]
      %956 = vrot.lane.b32.xlu0 %v946, 96
      %v957 = vpop.permute.xlu0 %956
      %958 = vrot.lane.b32.xlu0 %v947, 96
      %v959 = vpop.permute.xlu0 %958
      %960 = vrot.lane.b32.xlu0 %v948, 96
      %v961 = vpop.permute.xlu0 %960
      %v966 = vunpack.c.l.b16 %v949
      %v967 = vunpack.c.l.b16 %v950
      %v968 = vunpack.c.l.b16 %v951
      %v969 = vunpack.c.l.b16 %v952
      %v970 = vpack.c.b16 %v967, %v966
      %v971 = vpack.c.b16 %v969, %v968
      %v975 = vsel %vm494, %v957, 0
      %v978 = vsel %vm494, %v959, 0
      %v981 = vsel %vm494, %v961, 0
      %983 = vmatprep.subr.bf16.mxu0 0
      %984 = vmatpush1.bf16.msra.mxu0 0
      %985 = vmatprep.subr.bf16.mxu0 0
      %986 = vmatpush1.bf16.msra.mxu0 0
      %987 = vmatprep.subr.bf16.mxu0 0
      %988 = vmatpush1.bf16.msra.mxu0 0
      %989 = vmatprep.subr.bf16.mxu0 0
      %990 = vmatpush1.bf16.msra.mxu0 0
      %991 = vmatprep.subr.bf16.mxu0 0
      %992 = vmatpush1.bf16.msra.mxu0 0
      %993 = vmatprep.subr.bf16.mxu0 0
      %994 = vmatpush1.bf16.msra.mxu0 0
      %995 = vmatprep.subr.bf16.mxu0 0
      %996 = vmatpush1.bf16.msra.mxu0 %v971
      %997 = vmatprep.subr.bf16.mxu0 0
      %998 = vmatpush1.bf16.msra.mxu0 %v970
      %999 = vmatprep.subr.bf16.mxu0 0
      %1000 = vmatpush2.bf16.msra.mxu0 0
      %1001 = vmatprep.subr.bf16.mxu0 0
      %1002 = vmatpush2.bf16.msra.mxu0 0
      %1003 = vmatprep.subr.bf16.mxu0 0
      %1004 = vmatpush2.bf16.msra.mxu0 0
      %1005 = vmatprep.subr.bf16.mxu0 0
      %1006 = vmatpush2.bf16.msra.mxu0 0
      %1007 = vmatprep.subr.bf16.mxu0 0
      %1008 = vmatpush2.bf16.msra.mxu0 0
      %1009 = vmatprep.subr.bf16.mxu0 0
      %1010 = vmatpush2.bf16.msra.mxu0 0
      %1011 = vmatprep.subr.bf16.mxu0 0
      %1012 = vmatpush2.bf16.msra.mxu0 0
      %1013 = vmatprep.subr.bf16.mxu0 0
      %1014 = vmatpush2.bf16.msra.mxu0 0
      %1015 = vmatprep.mubr.bf16.mxu0 0
      %1016 = vmatmul.mubr.bf16.gmra.mxu0 %v975
      %v1017 = vpop.f32.mrf.mxu0
      %v1018 = vadd.f32 0.0, %v1017
      %v1019 = vpop.f32.mrf.mxu0
      %v1020 = vpop.f32.mrf.mxu0
      %v1021 = vadd.f32 0.0, %v1020
      %v1022 = vpop.f32.mrf.mxu0
      %1023 = vmatprep.mubr.bf16.mxu0 0
      %1024 = vmatmul.mubr.bf16.gmra.mxu0 %v978
      %v1025 = vpop.f32.mrf.mxu0
      %v1026 = vadd.f32 0.0, %v1025
      %v1027 = vpop.f32.mrf.mxu0
      %v1028 = vpop.f32.mrf.mxu0
      %v1029 = vadd.f32 0.0, %v1028
      %v1030 = vpop.f32.mrf.mxu0
      %1031 = vmatprep.mubr.bf16.mxu0 0
      %1032 = vmatmul.mubr.bf16.gmra.mxu0 %v981
      %v1033 = vpop.f32.mrf.mxu0
      %v1034 = vadd.f32 0.0, %v1033
      %v1035 = vpop.f32.mrf.mxu0
      %v1036 = vpop.f32.mrf.mxu0
      %v1037 = vadd.f32 0.0, %v1036
      %v1038 = vpop.f32.mrf.mxu0
      %1039 = vdwg.mxu0
      %1046 = vrot.lane.b32.xlu0 %v1018, 64
      %v1047 = vpop.permute.xlu0 %1046
      %1048 = vrot.lane.b32.xlu0 %v1021, 64
      %v1049 = vpop.permute.xlu0 %1048
      %1050 = vrot.lane.b32.xlu0 %v1026, 64
      %v1051 = vpop.permute.xlu0 %1050
      %1052 = vrot.lane.b32.xlu0 %v1029, 64
      %v1053 = vpop.permute.xlu0 %1052
      %1054 = vrot.lane.b32.xlu0 %v1034, 64
      %v1055 = vpop.permute.xlu0 %1054
      %1056 = vrot.lane.b32.xlu0 %v1037, 64
      %v1057 = vpop.permute.xlu0 %1056
      %v1064 = vadd.f32 %v874, %v1047
      %v1065 = vadd.f32 %v875, %v1049
      %v1066 = vadd.f32 %v876, %v1051
      %v1067 = vadd.f32 %v877, %v1053
      %v1068 = vadd.f32 %v878, %v1055
      %v1069 = vadd.f32 %v879, %v1057
      %v1070 = vtanh.pop %v1064
      %v1071 = vtanh.pop %v1065
      %v1072 = vtanh.pop %v1066
      %v1073 = vtanh.pop %v1067
      %v1074 = vtanh.pop %v1068
      %v1075 = vtanh.pop %v1069
      %1082 = vrot.lane.b32.xlu0 %v905, 64
      %v1083 = vpop.permute.xlu0 %1082
      %1084 = vrot.lane.b32.xlu0 %v907, 64
      %v1085 = vpop.permute.xlu0 %1084
      %1086 = vrot.lane.b32.xlu0 %v909, 64
      %v1087 = vpop.permute.xlu0 %1086
      %1088 = vrot.lane.b32.xlu0 %v911, 64
      %v1089 = vpop.permute.xlu0 %1088
      %1090 = vrot.lane.b32.xlu0 %v913, 64
      %v1091 = vpop.permute.xlu0 %1090
      %1092 = vrot.lane.b32.xlu0 %v915, 64
      %v1093 = vpop.permute.xlu0 %1092
      %v1100 = vmul.f32 %v1070, %v1083
      %v1101 = vmul.f32 %v1071, %v1085
      %v1102 = vmul.f32 %v1072, %v1087
      %v1103 = vmul.f32 %v1073, %v1089
      %v1104 = vmul.f32 %v1074, %v1091
      %v1105 = vmul.f32 %v1075, %v1093
      %v1106 = vsub.f32 1.0, %v905
      %v1107 = vsub.f32 1.0, %v907
      %v1108 = vsub.f32 1.0, %v909
      %v1109 = vsub.f32 1.0, %v911
      %v1110 = vsub.f32 1.0, %v913
      %v1111 = vsub.f32 1.0, %v915
      %v1112 = vmul.f32 %v539, %v1106
      %v1113 = vmul.f32 %v542, %v1107
      %v1114 = vmul.f32 %v547, %v1108
      %v1115 = vmul.f32 %v550, %v1109
      %v1116 = vmul.f32 %v555, %v1110
      %v1117 = vmul.f32 %v558, %v1111
      %1124 = vrot.lane.b32.xlu0 %v1112, 64
      %v1125 = vpop.permute.xlu0 %1124
      %1126 = vrot.lane.b32.xlu0 %v1113, 64
      %v1127 = vpop.permute.xlu0 %1126
      %1128 = vrot.lane.b32.xlu0 %v1114, 64
      %v1129 = vpop.permute.xlu0 %1128
      %1130 = vrot.lane.b32.xlu0 %v1115, 64
      %v1131 = vpop.permute.xlu0 %1130
      %1132 = vrot.lane.b32.xlu0 %v1116, 64
      %v1133 = vpop.permute.xlu0 %1132
      %1134 = vrot.lane.b32.xlu0 %v1117, 64
      %v1135 = vpop.permute.xlu0 %1134
      %v1142 = vadd.f32 %v1100, %v1125
      %v1143 = vadd.f32 %v1101, %v1127
      %v1144 = vadd.f32 %v1102, %v1129
      %v1145 = vadd.f32 %v1103, %v1131
      %v1146 = vadd.f32 %v1104, %v1133
      %v1147 = vadd.f32 %v1105, %v1135
      %v1148 = vpack.c.bf16 %v1143, %v1142
      %v1149 = vpack.c.bf16 %v1145, %v1144
      %v1150 = vpack.c.bf16 %v1147, %v1146
      %v1151 = vld [vmem:[%s9] sm:$0xf]
      %v1152 = vld [vmem:[%s9 + $0x4] sm:$0xf]
      %v1153 = vld [vmem:[%s9 + $0x8] sm:$0xf]
      %v1154 = vld [vmem:[%s9 + $0xc] sm:$0xf]
      %1158 = vrot.lane.b32.xlu0 %v1148, 64
      %v1159 = vpop.permute.xlu0 %1158
      %1160 = vrot.lane.b32.xlu0 %v1149, 64
      %v1161 = vpop.permute.xlu0 %1160
      %1162 = vrot.lane.b32.xlu0 %v1150, 64
      %v1163 = vpop.permute.xlu0 %1162
      %v1168 = vunpack.c.l.b16 %v1151
      %v1169 = vunpack.c.l.b16 %v1152
      %v1170 = vunpack.c.l.b16 %v1153
      %v1171 = vunpack.c.l.b16 %v1154
      %v1172 = vpack.c.b16 %v1169, %v1168
      %v1173 = vpack.c.b16 %v1171, %v1170
      %v1177 = vsel %vm494, %v1159, 0
      %v1180 = vsel %vm494, %v1161, 0
      %v1183 = vsel %vm494, %v1163, 0
      %1185 = vmatprep.subr.bf16.mxu0 0
      %1186 = vmatpush1.bf16.msra.mxu0 0
      %1187 = vmatprep.subr.bf16.mxu0 0
      %1188 = vmatpush1.bf16.msra.mxu0 0
      %1189 = vmatprep.subr.bf16.mxu0 0
      %1190 = vmatpush1.bf16.msra.mxu0 0
      %1191 = vmatprep.subr.bf16.mxu0 0
      %1192 = vmatpush1.bf16.msra.mxu0 0
      %1193 = vmatprep.subr.bf16.mxu0 0
      %1194 = vmatpush1.bf16.msra.mxu0 0
      %1195 = vmatprep.subr.bf16.mxu0 0
      %1196 = vmatpush1.bf16.msra.mxu0 0
      %1197 = vmatprep.subr.bf16.mxu0 0
      %1198 = vmatpush1.bf16.msra.mxu0 %v1173
      %1199 = vmatprep.subr.bf16.mxu0 0
      %1200 = vmatpush1.bf16.msra.mxu0 %v1172
      %1201 = vmatprep.subr.bf16.mxu0 0
      %1202 = vmatpush2.bf16.msra.mxu0 0
      %1203 = vmatprep.subr.bf16.mxu0 0
      %1204 = vmatpush2.bf16.msra.mxu0 0
      %1205 = vmatprep.subr.bf16.mxu0 0
      %1206 = vmatpush2.bf16.msra.mxu0 0
      %1207 = vmatprep.subr.bf16.mxu0 0
      %1208 = vmatpush2.bf16.msra.mxu0 0
      %1209 = vmatprep.subr.bf16.mxu0 0
      %1210 = vmatpush2.bf16.msra.mxu0 0
      %1211 = vmatprep.subr.bf16.mxu0 0
      %1212 = vmatpush2.bf16.msra.mxu0 0
      %1213 = vmatprep.subr.bf16.mxu0 0
      %1214 = vmatpush2.bf16.msra.mxu0 0
      %1215 = vmatprep.subr.bf16.mxu0 0
      %1216 = vmatpush2.bf16.msra.mxu0 0
      %1217 = vmatprep.mubr.bf16.mxu0 0
      %1218 = vmatmul.mubr.bf16.gmra.mxu0 %v1177
      %v1219 = vpop.f32.mrf.mxu0
      %v1220 = vadd.f32 0.0, %v1219
      %v1221 = vpop.f32.mrf.mxu0
      %v1222 = vpop.f32.mrf.mxu0
      %v1223 = vadd.f32 0.0, %v1222
      %v1224 = vpop.f32.mrf.mxu0
      %1225 = vmatprep.mubr.bf16.mxu0 0
      %1226 = vmatmul.mubr.bf16.gmra.mxu0 %v1180
      %v1227 = vpop.f32.mrf.mxu0
      %v1228 = vadd.f32 0.0, %v1227
      %v1229 = vpop.f32.mrf.mxu0
      %v1230 = vpop.f32.mrf.mxu0
      %v1231 = vadd.f32 0.0, %v1230
      %v1232 = vpop.f32.mrf.mxu0
      %1233 = vmatprep.mubr.bf16.mxu0 0
      %1234 = vmatmul.mubr.bf16.gmra.mxu0 %v1183
      %v1235 = vpop.f32.mrf.mxu0
      %v1236 = vadd.f32 0.0, %v1235
      %v1237 = vpop.f32.mrf.mxu0
      %v1238 = vpop.f32.mrf.mxu0
      %v1239 = vadd.f32 0.0, %v1238
      %v1240 = vpop.f32.mrf.mxu0
      %1241 = vdwg.mxu0
      %v1242 = vld [vmem:[%s454] sm:$0x1]
      %v1243 = vld [vmem:[%s454 + $0x1] sm:$0x1]
      %v1244 = vld [vmem:[%s454 + $0x2] sm:$0x1]
      %v1248 = vlaneseq
      %v1249 = vshrl.u32 %v1248, 7
      %v1250 = vsub.s32 0, %v1249
      %v1251 = vrot.slane %v1242, %v1250
      %v1252 = vlaneseq
      %v1253 = vshrl.u32 %v1252, 7
      %v1254 = vsub.s32 0, %v1253
      %v1255 = vrot.slane %v1243, %v1254
      %v1256 = vlaneseq
      %v1257 = vshrl.u32 %v1256, 7
      %v1258 = vsub.s32 0, %v1257
      %v1259 = vrot.slane %v1244, %v1258
      %v1263 = vadd.f32 %v1220, %v1251
      %v1264 = vadd.f32 %v1223, %v1251
      %v1265 = vadd.f32 %v1228, %v1255
      %v1266 = vadd.f32 %v1231, %v1255
      %v1267 = vadd.f32 %v1236, %v1259
      %v1268 = vadd.f32 %v1239, %v1259
      %v1269 = vtanh.pop %v1263
      %v1270 = vtanh.pop %v1264
      %v1271 = vtanh.pop %v1265
      %v1272 = vtanh.pop %v1266
      %v1273 = vtanh.pop %v1267
      %v1274 = vtanh.pop %v1268
      %v1275 = vpack.c.bf16 %v1270, %v1269
      %v1276 = vpack.c.bf16 %v1272, %v1271
      %v1277 = vpack.c.bf16 %v1274, %v1273
      %v1278 = vld [vmem:[%s10] sm:$0xf]
      %v1279 = vld [vmem:[%s10 + $0x4] sm:$0xf]
      %v1282 = vunpack.c.l.b16 %v1278
      %v1283 = vunpack.c.l.b16 %v1279
      %v1284 = vpack.c.b16 %v1283, %v1282
      %v1287 = vsel %vm567, %v1275, 0
      %v1290 = vsel %vm567, %v1276, 0
      %v1293 = vsel %vm567, %v1277, 0
      %1295 = vmatprep.subr.bf16.mxu0 0
      %1296 = vmatpush1.bf16.msra.mxu0 0
      %1297 = vmatprep.subr.bf16.mxu0 0
      %1298 = vmatpush1.bf16.msra.mxu0 0
      %1299 = vmatprep.subr.bf16.mxu0 0
      %1300 = vmatpush1.bf16.msra.mxu0 0
      %1301 = vmatprep.subr.bf16.mxu0 0
      %1302 = vmatpush1.bf16.msra.mxu0 0
      %1303 = vmatprep.subr.bf16.mxu0 0
      %1304 = vmatpush1.bf16.msra.mxu0 0
      %1305 = vmatprep.subr.bf16.mxu0 0
      %1306 = vmatpush1.bf16.msra.mxu0 0
      %1307 = vmatprep.subr.bf16.mxu0 0
      %1308 = vmatpush1.bf16.msra.mxu0 0
      %1309 = vmatprep.subr.bf16.mxu0 0
      %1310 = vmatpush1.bf16.msra.mxu0 %v1284
      %1311 = vmatprep.subr.bf16.mxu0 0
      %1312 = vmatpush2.bf16.msra.mxu0 0
      %1313 = vmatprep.subr.bf16.mxu0 0
      %1314 = vmatpush2.bf16.msra.mxu0 0
      %1315 = vmatprep.subr.bf16.mxu0 0
      %1316 = vmatpush2.bf16.msra.mxu0 0
      %1317 = vmatprep.subr.bf16.mxu0 0
      %1318 = vmatpush2.bf16.msra.mxu0 0
      %1319 = vmatprep.subr.bf16.mxu0 0
      %1320 = vmatpush2.bf16.msra.mxu0 0
      %1321 = vmatprep.subr.bf16.mxu0 0
      %1322 = vmatpush2.bf16.msra.mxu0 0
      %1323 = vmatprep.subr.bf16.mxu0 0
      %1324 = vmatpush2.bf16.msra.mxu0 0
      %1325 = vmatprep.subr.bf16.mxu0 0
      %1326 = vmatpush2.bf16.msra.mxu0 0
      %1327 = vmatprep.mubr.bf16.mxu0 0
      %1328 = vmatmul.mubr.bf16.gmra.mxu0 %v1287
      %v1329 = vpop.f32.mrf.mxu0
      %v1330 = vadd.f32 0.0, %v1329
      %v1331 = vpop.f32.mrf.mxu0
      %v1332 = vpop.f32.mrf.mxu0
      %v1333 = vadd.f32 0.0, %v1332
      %v1334 = vpop.f32.mrf.mxu0
      %1335 = vmatprep.mubr.bf16.mxu0 0
      %1336 = vmatmul.mubr.bf16.gmra.mxu0 %v1290
      %v1337 = vpop.f32.mrf.mxu0
      %v1338 = vadd.f32 0.0, %v1337
      %v1339 = vpop.f32.mrf.mxu0
      %v1340 = vpop.f32.mrf.mxu0
      %v1341 = vadd.f32 0.0, %v1340
      %v1342 = vpop.f32.mrf.mxu0
      %1343 = vmatprep.mubr.bf16.mxu0 0
      %1344 = vmatmul.mubr.bf16.gmra.mxu0 %v1293
      %v1345 = vpop.f32.mrf.mxu0
      %v1346 = vadd.f32 0.0, %v1345
      %v1347 = vpop.f32.mrf.mxu0
      %v1348 = vpop.f32.mrf.mxu0
      %v1349 = vadd.f32 0.0, %v1348
      %v1350 = vpop.f32.mrf.mxu0
      %1351 = vdwg.mxu0
      %v1352 = vld [vmem:[%s449] sm:$0xff]
      %v1353 = vld [vmem:[%s449 + $0x8] sm:$0xff]
      %v1354 = vld [vmem:[%s449 + $0x10] sm:$0xff]
      %v1355 = vld [vmem:[%s449 + $0x18] sm:$0xff]
      %v1356 = vld [vmem:[%s449 + $0x20] sm:$0xff]
      %v1357 = vld [vmem:[%s449 + $0x28] sm:$0xff]
      %vm1358 = vcmp.eq.f32.partialorder %v1352, 0.0
      %vm1359 = vcmp.eq.f32.partialorder %v1353, 0.0
      %vm1360 = vcmp.eq.f32.partialorder %v1354, 0.0
      %vm1361 = vcmp.eq.f32.partialorder %v1355, 0.0
      %vm1362 = vcmp.eq.f32.partialorder %v1356, 0.0
      %vm1363 = vcmp.eq.f32.partialorder %v1357, 0.0
      %v1364 = vsel %vm1358, 1, 0
      %v1365 = vsel %vm1359, 1, 0
      %v1366 = vsel %vm1360, 1, 0
      %v1367 = vsel %vm1361, 1, 0
      %v1368 = vsel %vm1362, 1, 0
      %v1369 = vsel %vm1363, 1, 0
      %1370 = vset.pattern.permute.xlu0 0
      %1371 = vperm.xlu0 %1370, %v1364
      %v1372 = vpop.permute.xlu0 %1371
      %1373 = vset.pattern.permute.xlu0 0
      %1374 = vperm.xlu0 %1373, %v1365
      %v1375 = vpop.permute.xlu0 %1374
      %1376 = vset.pattern.permute.xlu0 0
      %1377 = vperm.xlu0 %1376, %v1366
      %v1378 = vpop.permute.xlu0 %1377
      %1379 = vset.pattern.permute.xlu0 0
      %1380 = vperm.xlu0 %1379, %v1367
      %v1381 = vpop.permute.xlu0 %1380
      %1382 = vset.pattern.permute.xlu0 0
      %1383 = vperm.xlu0 %1382, %v1368
      %v1384 = vpop.permute.xlu0 %1383
      %1385 = vset.pattern.permute.xlu0 0
      %1386 = vperm.xlu0 %1385, %v1369
      %v1387 = vpop.permute.xlu0 %1386
      %vm1388 = vcmp.eq.s32.totalorder %v1372, 1
      %vm1389 = vcmp.eq.s32.totalorder %v1375, 1
      %vm1390 = vcmp.eq.s32.totalorder %v1378, 1
      %vm1391 = vcmp.eq.s32.totalorder %v1381, 1
      %vm1392 = vcmp.eq.s32.totalorder %v1384, 1
      %vm1393 = vcmp.eq.s32.totalorder %v1387, 1
      %v1394 = vsel %vm1388, -1e+30, %v1330
      %v1395 = vsel %vm1389, -1e+30, %v1333
      %v1396 = vsel %vm1390, -1e+30, %v1338
      %v1397 = vsel %vm1391, -1e+30, %v1341
      %v1398 = vsel %vm1392, -1e+30, %v1346
      %v1399 = vsel %vm1393, -1e+30, %v1349
      %vm1400 = vcmask 15360
      %v1401 = vsel %vm1400, %v1394, -inf
      %v1402 = vsel %vm1400, %v1395, -inf
      %v1403 = vmax.f32 %v1401, %v1402
      %v1404 = vrot.slane %v1403, 4
      %v1405 = vmax.f32 %v1403, %v1404
      %v1406 = vrot.slane %v1405, 2
      %v1407 = vmax.f32 %v1405, %v1406
      %v1408 = vrot.slane %v1407, 1
      %v1409 = vmax.f32 %v1407, %v1408
      %v1410 = vsel %vm1400, %v1396, -inf
      %v1411 = vsel %vm1400, %v1397, -inf
      %v1412 = vmax.f32 %v1410, %v1411
      %v1413 = vrot.slane %v1412, 4
      %v1414 = vmax.f32 %v1412, %v1413
      %v1415 = vrot.slane %v1414, 2
      %v1416 = vmax.f32 %v1414, %v1415
      %v1417 = vrot.slane %v1416, 1
      %v1418 = vmax.f32 %v1416, %v1417
      %v1419 = vsel %vm1400, %v1398, -inf
      %v1420 = vsel %vm1400, %v1399, -inf
      %v1421 = vmax.f32 %v1419, %v1420
      %v1422 = vrot.slane %v1421, 4
      %v1423 = vmax.f32 %v1421, %v1422
      %v1424 = vrot.slane %v1423, 2
      %v1425 = vmax.f32 %v1423, %v1424
      %v1426 = vrot.slane %v1425, 1
      %v1427 = vmax.f32 %v1425, %v1426
      %v1428 = vsub.f32 %v1394, %v1409
      %v1429 = vsub.f32 %v1395, %v1409
      %v1430 = vsub.f32 %v1396, %v1418
      %v1431 = vsub.f32 %v1397, %v1418
      %v1432 = vsub.f32 %v1398, %v1427
      %v1433 = vsub.f32 %v1399, %v1427
      %v1434 = vmul.f32 %v1428, 1.442695
      %v1435 = vpow.pop %v1434
      %v1436 = vmul.f32 %v1429, 1.442695
      %v1437 = vpow.pop %v1436
      %v1438 = vmul.f32 %v1430, 1.442695
      %v1439 = vpow.pop %v1438
      %v1440 = vmul.f32 %v1431, 1.442695
      %v1441 = vpow.pop %v1440
      %v1442 = vmul.f32 %v1432, 1.442695
      %v1443 = vpow.pop %v1442
      %v1444 = vmul.f32 %v1433, 1.442695
      %v1445 = vpow.pop %v1444
      %v1446 = vsel %vm1400, %v1435, 0.0
      %v1447 = vsel %vm1400, %v1437, 0.0
      %v1448 = vadd.f32 %v1446, %v1447
      %v1449 = vrot.slane %v1448, 4
      %v1450 = vadd.f32 %v1448, %v1449
      %v1451 = vrot.slane %v1450, 2
      %v1452 = vadd.f32 %v1450, %v1451
      %v1453 = vrot.slane %v1452, 1
      %v1454 = vadd.f32 %v1452, %v1453
      %v1455 = vsel %vm1400, %v1439, 0.0
      %v1456 = vsel %vm1400, %v1441, 0.0
      %v1457 = vadd.f32 %v1455, %v1456
      %v1458 = vrot.slane %v1457, 4
      %v1459 = vadd.f32 %v1457, %v1458
      %v1460 = vrot.slane %v1459, 2
      %v1461 = vadd.f32 %v1459, %v1460
      %v1462 = vrot.slane %v1461, 1
      %v1463 = vadd.f32 %v1461, %v1462
      %v1464 = vsel %vm1400, %v1443, 0.0
      %v1465 = vsel %vm1400, %v1445, 0.0
      %v1466 = vadd.f32 %v1464, %v1465
      %v1467 = vrot.slane %v1466, 4
      %v1468 = vadd.f32 %v1466, %v1467
      %v1469 = vrot.slane %v1468, 2
      %v1470 = vadd.f32 %v1468, %v1469
      %v1471 = vrot.slane %v1470, 1
      %v1472 = vadd.f32 %v1470, %v1471
      %v1473 = vrcp.pop %v1454
      %v1474 = vmul.f32 %v1435, %v1473
      %v1475 = vmul.f32 %v1437, %v1473
      %v1476 = vrcp.pop %v1463
      %v1477 = vmul.f32 %v1439, %v1476
      %v1478 = vmul.f32 %v1441, %v1476
      %v1479 = vrcp.pop %v1472
      %v1480 = vmul.f32 %v1443, %v1479
      %v1481 = vmul.f32 %v1445, %v1479
      %v1482 = vpack.c.bf16 %v1475, %v1474
      %1483 = vxpose.xlu0.c.b16.start [1/8] %v1482, 128
      %1484 = vxpose.xlu0.c.b16.cont [2/8] 0, 128
      %1485 = vxpose.xlu0.c.b16.cont [3/8] 0, 128
      %1486 = vxpose.xlu0.c.b16.cont [4/8] 0, 128
      %1487 = vxpose.xlu0.c.b16.cont [5/8] 0, 128
      %1488 = vxpose.xlu0.c.b16.cont [6/8] 0, 128
      %1489 = vxpose.xlu0.c.b16.cont [7/8] 0, 128
      %1490 = vxpose.xlu0.c.b16.end [8/8] 0, 128
      %v1491 = vpop.trf.xlu0
      %v1492 = vpop.trf.xlu0
      %v1493 = vpop.trf.xlu0
      %v1494 = vpop.trf.xlu0
      %v1495 = vpop.trf.xlu0
      %v1496 = vpop.trf.xlu0
      %v1497 = vpop.trf.xlu0
      %v1498 = vpop.trf.xlu0
      %v1501 = vsel %vm567, %v1491, 0
      %1503 = vmatprep.subr.bf16.mxu0 0
      %1504 = vmatpush1.bf16.msra.mxu0 0
      %1505 = vmatprep.subr.bf16.mxu0 0
      %1506 = vmatpush1.bf16.msra.mxu0 0
      %1507 = vmatprep.subr.bf16.mxu0 0
      %1508 = vmatpush1.bf16.msra.mxu0 0
      %1509 = vmatprep.subr.bf16.mxu0 0
      %1510 = vmatpush1.bf16.msra.mxu0 0
      %1511 = vmatprep.subr.bf16.mxu0 0
      %1512 = vmatpush1.bf16.msra.mxu0 0
      %1513 = vmatprep.subr.bf16.mxu0 0
      %1514 = vmatpush1.bf16.msra.mxu0 0
      %1515 = vmatprep.subr.bf16.mxu0 0
      %1516 = vmatpush1.bf16.msra.mxu0 0
      %1517 = vmatprep.subr.bf16.mxu0 0
      %1518 = vmatpush1.bf16.msra.mxu0 %v1159
      %1519 = vmatprep.subr.bf16.mxu0 0
      %1520 = vmatpush2.bf16.msra.mxu0 0
      %1521 = vmatprep.subr.bf16.mxu0 0
      %1522 = vmatpush2.bf16.msra.mxu0 0
      %1523 = vmatprep.subr.bf16.mxu0 0
      %1524 = vmatpush2.bf16.msra.mxu0 0
      %1525 = vmatprep.subr.bf16.mxu0 0
      %1526 = vmatpush2.bf16.msra.mxu0 0
      %1527 = vmatprep.subr.bf16.mxu0 0
      %1528 = vmatpush2.bf16.msra.mxu0 0
      %1529 = vmatprep.subr.bf16.mxu0 0
      %1530 = vmatpush2.bf16.msra.mxu0 0
      %1531 = vmatprep.subr.bf16.mxu0 0
      %1532 = vmatpush2.bf16.msra.mxu0 0
      %1533 = vmatprep.subr.bf16.mxu0 0
      %1534 = vmatpush2.bf16.msra.mxu0 0
      %1535 = vmatprep.mubr.bf16.mxu0 0
      %1536 = vmatmul.mubr.bf16.gmra.mxu0 %v1501
      %v1537 = vpop.f32.mrf.mxu0
      %v1538 = vadd.f32 0.0, %v1537
      %v1539 = vpop.f32.mrf.mxu0
      %v1540 = vpop.f32.mrf.mxu0
      %v1541 = vpop.f32.mrf.mxu0
      %1542 = vdwg.mxu0
      %vm1543 = vcmask 254976
      %1544 = vst.msk [vmem:[%s460] sm:$0x3] %vm1543, %v1538
      %v1545 = vpack.c.bf16 %v1478, %v1477
      %1546 = vxpose.xlu0.c.b16.start [1/8] %v1545, 128
      %1547 = vxpose.xlu0.c.b16.cont [2/8] 0, 128
      %1548 = vxpose.xlu0.c.b16.cont [3/8] 0, 128
      %1549 = vxpose.xlu0.c.b16.cont [4/8] 0, 128
      %1550 = vxpose.xlu0.c.b16.cont [5/8] 0, 128
      %1551 = vxpose.xlu0.c.b16.cont [6/8] 0, 128
      %1552 = vxpose.xlu0.c.b16.cont [7/8] 0, 128
      %1553 = vxpose.xlu0.c.b16.end [8/8] 0, 128
      %v1554 = vpop.trf.xlu0
      %v1555 = vpop.trf.xlu0
      %v1556 = vpop.trf.xlu0
      %v1557 = vpop.trf.xlu0
      %v1558 = vpop.trf.xlu0
      %v1559 = vpop.trf.xlu0
      %v1560 = vpop.trf.xlu0
      %v1561 = vpop.trf.xlu0
      %v1564 = vsel %vm567, %v1554, 0
      %1566 = vmatprep.subr.bf16.mxu0 0
      %1567 = vmatpush1.bf16.msra.mxu0 0
      %1568 = vmatprep.subr.bf16.mxu0 0
      %1569 = vmatpush1.bf16.msra.mxu0 0
      %1570 = vmatprep.subr.bf16.mxu0 0
      %1571 = vmatpush1.bf16.msra.mxu0 0
      %1572 = vmatprep.subr.bf16.mxu0 0
      %1573 = vmatpush1.bf16.msra.mxu0 0
      %1574 = vmatprep.subr.bf16.mxu0 0
      %1575 = vmatpush1.bf16.msra.mxu0 0
      %1576 = vmatprep.subr.bf16.mxu0 0
      %1577 = vmatpush1.bf16.msra.mxu0 0
      %1578 = vmatprep.subr.bf16.mxu0 0
      %1579 = vmatpush1.bf16.msra.mxu0 0
      %1580 = vmatprep.subr.bf16.mxu0 0
      %1581 = vmatpush1.bf16.msra.mxu0 %v1161
      %1582 = vmatprep.subr.bf16.mxu0 0
      %1583 = vmatpush2.bf16.msra.mxu0 0
      %1584 = vmatprep.subr.bf16.mxu0 0
      %1585 = vmatpush2.bf16.msra.mxu0 0
      %1586 = vmatprep.subr.bf16.mxu0 0
      %1587 = vmatpush2.bf16.msra.mxu0 0
      %1588 = vmatprep.subr.bf16.mxu0 0
      %1589 = vmatpush2.bf16.msra.mxu0 0
      %1590 = vmatprep.subr.bf16.mxu0 0
      %1591 = vmatpush2.bf16.msra.mxu0 0
      %1592 = vmatprep.subr.bf16.mxu0 0
      %1593 = vmatpush2.bf16.msra.mxu0 0
      %1594 = vmatprep.subr.bf16.mxu0 0
      %1595 = vmatpush2.bf16.msra.mxu0 0
      %1596 = vmatprep.subr.bf16.mxu0 0
      %1597 = vmatpush2.bf16.msra.mxu0 0
      %1598 = vmatprep.mubr.bf16.mxu0 0
      %1599 = vmatmul.mubr.bf16.gmra.mxu0 %v1564
      %v1600 = vpop.f32.mrf.mxu0
      %v1601 = vadd.f32 0.0, %v1600
      %v1602 = vpop.f32.mrf.mxu0
      %v1603 = vpop.f32.mrf.mxu0
      %v1604 = vpop.f32.mrf.mxu0
      %1605 = vdwg.mxu0
      %s1606 = scalar_lea.vmem %s460, 2
      %1607 = vst.msk [vmem:[%s1606] sm:$0x3] %vm1543, %v1601
      %v1608 = vpack.c.bf16 %v1481, %v1480
      %1609 = vxpose.xlu0.c.b16.start [1/8] %v1608, 128
      %1610 = vxpose.xlu0.c.b16.cont [2/8] 0, 128
      %1611 = vxpose.xlu0.c.b16.cont [3/8] 0, 128
      %1612 = vxpose.xlu0.c.b16.cont [4/8] 0, 128
      %1613 = vxpose.xlu0.c.b16.cont [5/8] 0, 128
      %1614 = vxpose.xlu0.c.b16.cont [6/8] 0, 128
      %1615 = vxpose.xlu0.c.b16.cont [7/8] 0, 128
      %1616 = vxpose.xlu0.c.b16.end [8/8] 0, 128
      %v1617 = vpop.trf.xlu0
      %v1618 = vpop.trf.xlu0
      %v1619 = vpop.trf.xlu0
      %v1620 = vpop.trf.xlu0
      %v1621 = vpop.trf.xlu0
      %v1622 = vpop.trf.xlu0
      %v1623 = vpop.trf.xlu0
      %v1624 = vpop.trf.xlu0
      %v1627 = vsel %vm567, %v1617, 0
      %1629 = vmatprep.subr.bf16.mxu0 0
      %1630 = vmatpush1.bf16.msra.mxu0 0
      %1631 = vmatprep.subr.bf16.mxu0 0
      %1632 = vmatpush1.bf16.msra.mxu0 0
      %1633 = vmatprep.subr.bf16.mxu0 0
      %1634 = vmatpush1.bf16.msra.mxu0 0
      %1635 = vmatprep.subr.bf16.mxu0 0
      %1636 = vmatpush1.bf16.msra.mxu0 0
      %1637 = vmatprep.subr.bf16.mxu0 0
      %1638 = vmatpush1.bf16.msra.mxu0 0
      %1639 = vmatprep.subr.bf16.mxu0 0
      %1640 = vmatpush1.bf16.msra.mxu0 0
      %1641 = vmatprep.subr.bf16.mxu0 0
      %1642 = vmatpush1.bf16.msra.mxu0 0
      %1643 = vmatprep.subr.bf16.mxu0 0
      %1644 = vmatpush1.bf16.msra.mxu0 %v1163
      %1645 = vmatprep.subr.bf16.mxu0 0
      %1646 = vmatpush2.bf16.msra.mxu0 0
      %1647 = vmatprep.subr.bf16.mxu0 0
      %1648 = vmatpush2.bf16.msra.mxu0 0
      %1649 = vmatprep.subr.bf16.mxu0 0
      %1650 = vmatpush2.bf16.msra.mxu0 0
      %1651 = vmatprep.subr.bf16.mxu0 0
      %1652 = vmatpush2.bf16.msra.mxu0 0
      %1653 = vmatprep.subr.bf16.mxu0 0
      %1654 = vmatpush2.bf16.msra.mxu0 0
      %1655 = vmatprep.subr.bf16.mxu0 0
      %1656 = vmatpush2.bf16.msra.mxu0 0
      %1657 = vmatprep.subr.bf16.mxu0 0
      %1658 = vmatpush2.bf16.msra.mxu0 0
      %1659 = vmatprep.subr.bf16.mxu0 0
      %1660 = vmatpush2.bf16.msra.mxu0 0
      %1661 = vmatprep.mubr.bf16.mxu0 0
      %1662 = vmatmul.mubr.bf16.gmra.mxu0 %v1627
      %v1663 = vpop.f32.mrf.mxu0
      %v1664 = vadd.f32 0.0, %v1663
      %v1665 = vpop.f32.mrf.mxu0
      %v1666 = vpop.f32.mrf.mxu0
      %v1667 = vpop.f32.mrf.mxu0
      %1668 = vdwg.mxu0
      %s1669 = scalar_lea.vmem %s460, 4
      %1670 = vst.msk [vmem:[%s1669] sm:$0x3] %vm1543, %v1664
      %s1671 = smul.u32 3, %s22
      %p1672 = scmp.lt.s32.totalorder %s1671, 5
      %s1673 = scalar_select %p1672, %s1671, 5
      %s1674 = smul.addr %s1673, 2
      %s1675 = scalar_lea.vmem %s11, %s1674
      // Predicated region
      $region65: #{_lambda_.7} parent=63 // pred_check
        %p1676 = pneg %p291
      $region66: #{_lambda_.7} parent=63 // pred_check_branch
        %1678 = sbr.rel (%p1676) target = $region68
      $region67: #{_lambda_.7} parent=63 // pred_region
        %s1679 = smul.u32 3, %s22
      $region68: #{_lambda_.7} parent=63 // pred_fallthru
        _
    $region64: #{_lambda_.7} parent=5 // pred_fallthru
      _
    %p1680 = scmp.le.s32.totalorder 2, %s17
    // Predicated region
    $region69: #{_lambda_.7} parent=5 // pred_check
      %p1681 = pneg %p1680
    $region70: #{_lambda_.7} parent=5 // pred_check_branch
      %1683 = sbr.rel (%p1681) target = $region72
    $region71: #{_lambda_.7} parent=5 // pred_region
      %s1684 = ssub.s32 %s17, 2
      // Predicated region
      $region73: #{_lambda_.7} parent=71 // pred_check
        %p1685 = pneg %p297
      $region74: #{_lambda_.7} parent=71 // pred_check_branch
        %1687 = sbr.rel (%p1685) target = $region76
      $region75: #{_lambda_.7} parent=71 // pred_region
        %s1688 = smul.u32 3, %s23
        %p1689 = scmp.lt.s32.totalorder %s1688, 5
        %s1690 = scalar_select %p1689, %s1688, 5
        %s1691 = smul.addr %s1690, 2
        %s1692 = scalar_lea.vmem %s11, %s1691
      $region76: #{_lambda_.7} parent=71 // pred_fallthru
        _
    $region72: #{_lambda_.7} parent=5 // pred_fallthru
      _
  $region6: #{_lambda_.7} parent=0 // loop_footer
    %s21 = sadd.s32 1, %s17
  $region7: #{_lambda_.7} parent=0 // loop_footer_branch
    %16 = sbr.rel target = $region3
  $region8: #{_lambda_.7} parent=0 // loop_exit
    _

// kernel: _lambda_.9
$region0: #{_lambda_.9}
  #allocation0 [shape = 'u32[]', space=smem, size = 0x4, offset = 0x4, fixed_abs, tag = 'smem constant byte address 0x4 - core index']
  #allocation1 [shape = 'u32[144,128]{1,0:T(1,128)}', space=vmem, size = 0x12000, scoped, tag = 'internal scratch']
  %s0 = inlined_call_operand.vmem [shape: f32[2,160], index: 0, kind: input, shape index: {}]
  %s1 = inlined_call_operand.vmem [shape: bf16[160,32], index: 1, kind: input, shape index: {}]
  %s2 = inlined_call_operand.vmem [shape: f32[1,32], index: 2, kind: input, shape index: {}]
  %s3 = inlined_call_operand.vmem [shape: bf16[32,2], index: 3, kind: input, shape index: {}]
  %s4 = inlined_call_operand.vmem [shape: f32[1,2], index: 4, kind: input, shape index: {}]
  %s5 = inlined_call_operand.hbm [shape: f32[2,32], index: 5, kind: output, shape index: {0}]
  %s6 = inlined_call_operand.hbm [shape: f32[2,2], index: 6, kind: output, shape index: {1}]
  %7 = xla_tuple %s5, %s6
  %s8 = sld [smem:[#allocation0]]
  $region38: #{_lambda_.9} parent=0
    _
  %s10 = ssub.s32 1, %s8
  %s11 = scalar_select 0, %s10, %s8
  $region1: #{_lambda_.9} parent=0
    #allocation2 [shape = 'u8[1024]{0}', space=vmem, size = 0x400, scoped, tag = 'output window, operand 0, single buffered']
    #allocation3 [shape = 's32[1]{0}', space=sflag, size = 0x4, scoped, tag = 'scoped memory for _lambda_.9']
    #allocation4 [shape = 'u8[1024]{0}', space=vmem, size = 0x400, scoped, tag = 'output window, operand 1, single buffered']
    #allocation5 [shape = 's32[1]{0}', space=sflag, size = 0x4, scoped, tag = 'scoped memory for _lambda_.9']
    %12 = vsyncpa [#allocation3], 0
    %13 = vsyncpa [#allocation5], 0
    // Predicated region
    $region2: #{_lambda_.9} parent=1 // pred_check
      _
    $region3: #{_lambda_.9} parent=1 // pred_check_branch
      %15 = sbr.rel (0) target = $region5
    $region4: #{_lambda_.9} parent=1 // pred_region
      _
    $region5: #{_lambda_.9} parent=1 // pred_fallthru
      _
    // Predicated region
    $region6: #{_lambda_.9} parent=1 // pred_check
      _
    $region7: #{_lambda_.9} parent=1 // pred_check_branch
      %17 = sbr.rel (0) target = $region9
    $region8: #{_lambda_.9} parent=1 // pred_region
      _
    $region9: #{_lambda_.9} parent=1 // pred_fallthru
      _
    // Predicated region
    $region10: #{_lambda_.9} parent=1 // pred_check
      _
    $region11: #{_lambda_.9} parent=1 // pred_check_branch
      %19 = sbr.rel (0) target = $region13
    $region12: #{_lambda_.9} parent=1 // pred_region
      _
    $region13: #{_lambda_.9} parent=1 // pred_fallthru
      _
    // Predicated region
    $region14: #{_lambda_.9} parent=1 // pred_check
      _
    $region15: #{_lambda_.9} parent=1 // pred_check_branch
      %21 = sbr.rel (0) target = $region17
    $region16: #{_lambda_.9} parent=1 // pred_region
      _
    $region17: #{_lambda_.9} parent=1 // pred_fallthru
      _
    // Predicated region
    $region18: #{_lambda_.9} parent=1 // pred_check
      _
    $region19: #{_lambda_.9} parent=1 // pred_check_branch
      %23 = sbr.rel (0) target = $region21
    $region20: #{_lambda_.9} parent=1 // pred_region
      _
    $region21: #{_lambda_.9} parent=1 // pred_fallthru
      _
    %v25 = vld [vmem:[%s0] sm:$0xf]
    %v28 = vunpack.c.l.s4 1983009808
    %v29 = vunpack.c.0.s8 %v28
    %v30 = vlaneseq
    %v31 = vshrl.u32 %v30, 7
    %v32 = vsub.s32 %v29, %v31
    %v33 = vrot.slane %v25, %v32
    %v34 = vcombine.high %v33, %v33
    %v37 = vpack.c.bf16 %v33, %v33
    %v38 = vpack.c.bf16 %v34, %v34
    %v39 = vld [vmem:[%s1] sm:$0xf]
    %v40 = vld [vmem:[%s1 + $0x4] sm:$0xf]
    %v41 = vld [vmem:[%s1 + $0x8] sm:$0xf]
    %v42 = vld [vmem:[%s1 + $0xc] sm:$0xf]
    %v43 = vld [vmem:[%s1 + $0x10] sm:$0xf]
    %v44 = vld [vmem:[%s1 + $0x14] sm:$0xf]
    %v45 = vld [vmem:[%s1 + $0x18] sm:$0xf]
    %v46 = vld [vmem:[%s1 + $0x1c] sm:$0xf]
    %v47 = vld [vmem:[%s1 + $0x20] sm:$0xf]
    %v48 = vld [vmem:[%s1 + $0x24] sm:$0xf]
    %v49 = vld [vmem:[%s1 + $0x28] sm:$0xf]
    %v50 = vld [vmem:[%s1 + $0x2c] sm:$0xf]
    %v51 = vld [vmem:[%s1 + $0x30] sm:$0xf]
    %v52 = vld [vmem:[%s1 + $0x34] sm:$0xf]
    %v53 = vld [vmem:[%s1 + $0x38] sm:$0xf]
    %v54 = vld [vmem:[%s1 + $0x3c] sm:$0xf]
    %v55 = vld [vmem:[%s1 + $0x40] sm:$0xf]
    %v56 = vld [vmem:[%s1 + $0x44] sm:$0xf]
    %v57 = vld [vmem:[%s1 + $0x48] sm:$0xf]
    %v58 = vld [vmem:[%s1 + $0x4c] sm:$0xf]
    %v59 = vld [vmem:[%s2] sm:$0x1]
    %v61 = vlaneseq
    %v62 = vshrl.u32 %v61, 7
    %v63 = vsub.s32 0, %v62
    %v64 = vrot.slane %v59, %v63
    %v86 = vunpack.c.l.b16 %v39
    %v87 = vunpack.c.l.b16 %v40
    %v88 = vunpack.c.l.b16 %v41
    %v89 = vunpack.c.l.b16 %v42
    %v90 = vunpack.c.l.b16 %v43
    %v91 = vunpack.c.l.b16 %v44
    %v92 = vunpack.c.l.b16 %v45
    %v93 = vunpack.c.l.b16 %v46
    %v94 = vunpack.c.l.b16 %v47
    %v95 = vunpack.c.l.b16 %v48
    %v96 = vunpack.c.l.b16 %v49
    %v97 = vunpack.c.l.b16 %v50
    %v98 = vunpack.c.l.b16 %v51
    %v99 = vunpack.c.l.b16 %v52
    %v100 = vunpack.c.l.b16 %v53
    %v101 = vunpack.c.l.b16 %v54
    %v102 = vunpack.c.l.b16 %v55
    %v103 = vunpack.c.l.b16 %v56
    %v104 = vunpack.c.l.b16 %v57
    %v105 = vunpack.c.l.b16 %v58
    %v106 = vpack.c.b16 %v87, %v86
    %v107 = vpack.c.b16 %v89, %v88
    %v108 = vpack.c.b16 %v91, %v90
    %v109 = vpack.c.b16 %v93, %v92
    %v110 = vpack.c.b16 %v95, %v94
    %v111 = vpack.c.b16 %v97, %v96
    %v112 = vpack.c.b16 %v99, %v98
    %v113 = vpack.c.b16 %v101, %v100
    %v114 = vpack.c.b16 %v103, %v102
    %v115 = vpack.c.b16 %v105, %v104
    %vm126 = vcmask 261120
    %v128 = vsel %vm126, %v38, 0
    %130 = vmatprep.subr.bf16.mxu0 0
    %131 = vmatpush1.bf16.msra.mxu0 %v113
    %132 = vmatprep.subr.bf16.mxu0 0
    %133 = vmatpush1.bf16.msra.mxu0 %v112
    %134 = vmatprep.subr.bf16.mxu0 0
    %135 = vmatpush1.bf16.msra.mxu0 %v111
    %136 = vmatprep.subr.bf16.mxu0 0
    %137 = vmatpush1.bf16.msra.mxu0 %v110
    %138 = vmatprep.subr.bf16.mxu0 0
    %139 = vmatpush1.bf16.msra.mxu0 %v109
    %140 = vmatprep.subr.bf16.mxu0 0
    %141 = vmatpush1.bf16.msra.mxu0 %v108
    %142 = vmatprep.subr.bf16.mxu0 0
    %143 = vmatpush1.bf16.msra.mxu0 %v107
    %144 = vmatprep.subr.bf16.mxu0 0
    %145 = vmatpush1.bf16.msra.mxu0 %v106
    %146 = vmatprep.subr.bf16.mxu0 0
    %147 = vmatpush2.bf16.msra.mxu0 0
    %148 = vmatprep.subr.bf16.mxu0 0
    %149 = vmatpush2.bf16.msra.mxu0 0
    %150 = vmatprep.subr.bf16.mxu0 0
    %151 = vmatpush2.bf16.msra.mxu0 0
    %152 = vmatprep.subr.bf16.mxu0 0
    %153 = vmatpush2.bf16.msra.mxu0 0
    %154 = vmatprep.subr.bf16.mxu0 0
    %155 = vmatpush2.bf16.msra.mxu0 0
    %156 = vmatprep.subr.bf16.mxu0 0
    %157 = vmatpush2.bf16.msra.mxu0 0
    %158 = vmatprep.subr.bf16.mxu0 0
    %159 = vmatpush2.bf16.msra.mxu0 %v115
    %160 = vmatprep.subr.bf16.mxu0 0
    %161 = vmatpush2.bf16.msra.mxu0 %v114
    %162 = vmatprep.mubr.bf16.mxu0 %v128
    %163 = vmatmul.mubr.bf16.gmra.mxu0 %v37
    %v164 = vpop.f32.mrf.mxu0
    %v165 = vadd.f32 %v64, %v164
    %v166 = vpop.f32.mrf.mxu0
    %v167 = vpop.f32.mrf.mxu0
    %v168 = vpop.f32.mrf.mxu0
    %169 = vdwg.mxu0
    %vm170 = vcmask 254976
    %171 = vst.msk [vmem:[#allocation2] sm:$0x3] %vm170, %v165
    %v172 = vmax.f32 %v165, 0.0
    %v173 = vpack.c.bf16 %v172, %v172
    %v174 = vld [vmem:[%s3] sm:$0xf]
    %v175 = vld [vmem:[%s3 + $0x4] sm:$0xf]
    %v176 = vld [vmem:[%s3 + $0x8] sm:$0xf]
    %v177 = vld [vmem:[%s3 + $0xc] sm:$0xf]
    %v178 = vld [vmem:[%s4] sm:$0x1]
    %v180 = vlaneseq
    %v181 = vshrl.u32 %v180, 7
    %v182 = vsub.s32 0, %v181
    %v183 = vrot.slane %v178, %v182
    %v189 = vunpack.c.l.b16 %v174
    %v190 = vunpack.c.l.b16 %v175
    %v191 = vunpack.c.l.b16 %v176
    %v192 = vunpack.c.l.b16 %v177
    %v193 = vpack.c.b16 %v190, %v189
    %v194 = vpack.c.b16 %v192, %v191
    %v198 = vsel %vm126, %v173, 0
    %200 = vmatprep.subr.bf16.mxu0 0
    %201 = vmatpush1.bf16.msra.mxu0 0
    %202 = vmatprep.subr.bf16.mxu0 0
    %203 = vmatpush1.bf16.msra.mxu0 0
    %204 = vmatprep.subr.bf16.mxu0 0
    %205 = vmatpush1.bf16.msra.mxu0 0
    %206 = vmatprep.subr.bf16.mxu0 0
    %207 = vmatpush1.bf16.msra.mxu0 0
    %208 = vmatprep.subr.bf16.mxu0 0
    %209 = vmatpush1.bf16.msra.mxu0 0
    %210 = vmatprep.subr.bf16.mxu0 0
    %211 = vmatpush1.bf16.msra.mxu0 0
    %212 = vmatprep.subr.bf16.mxu0 0
    %213 = vmatpush1.bf16.msra.mxu0 %v194
    %214 = vmatprep.subr.bf16.mxu0 0
    %215 = vmatpush1.bf16.msra.mxu0 %v193
    %216 = vmatprep.subr.bf16.mxu0 0
    %217 = vmatpush2.bf16.msra.mxu0 0
    %218 = vmatprep.subr.bf16.mxu0 0
    %219 = vmatpush2.bf16.msra.mxu0 0
    %220 = vmatprep.subr.bf16.mxu0 0
    %221 = vmatpush2.bf16.msra.mxu0 0
    %222 = vmatprep.subr.bf16.mxu0 0
    %223 = vmatpush2.bf16.msra.mxu0 0
    %224 = vmatprep.subr.bf16.mxu0 0
    %225 = vmatpush2.bf16.msra.mxu0 0
    %226 = vmatprep.subr.bf16.mxu0 0
    %227 = vmatpush2.bf16.msra.mxu0 0
    %228 = vmatprep.subr.bf16.mxu0 0
    %229 = vmatpush2.bf16.msra.mxu0 0
    %230 = vmatprep.subr.bf16.mxu0 0
    %231 = vmatpush2.bf16.msra.mxu0 0
    %232 = vmatprep.mubr.bf16.mxu0 0
    %233 = vmatmul.mubr.bf16.gmra.mxu0 %v198
    %v234 = vpop.f32.mrf.mxu0
    %v235 = vadd.f32 %v183, %v234
    %v236 = vpop.f32.mrf.mxu0
    %v237 = vpop.f32.mrf.mxu0
    %v238 = vpop.f32.mrf.mxu0
    %239 = vdwg.mxu0
    %vm240 = vcmask 9216
    %241 = vst.msk [vmem:[#allocation4] sm:$0x3] %vm240, %v235
    // Predicated region
    $region22: #{_lambda_.9} parent=1 // pred_check
      _
    $region23: #{_lambda_.9} parent=1 // pred_check_branch
      %243 = sbr.rel (0) target = $region25
    $region24: #{_lambda_.9} parent=1 // pred_region
      %s245 = ssub.s32 32, 32
      %246 = vsyncadd [#allocation3], %s245
      %s248 = sshll.u32 [#allocation2], 4
      %s249 = int_to_ptr.vmem [resolvable:$true] %s248
      %251 = dma.vmem_to_hbm [thread:$0]  %s249, 32, %s5, [#allocation3]
    $region25: #{_lambda_.9} parent=1 // pred_fallthru
      _
    // Predicated region
    $region26: #{_lambda_.9} parent=1 // pred_check
      _
    $region27: #{_lambda_.9} parent=1 // pred_check_branch
      %253 = sbr.rel (0) target = $region29
    $region28: #{_lambda_.9} parent=1 // pred_region
      %s255 = ssub.s32 32, 32
      %256 = vsyncadd [#allocation5], %s255
      %s258 = sshll.u32 [#allocation4], 4
      %s259 = int_to_ptr.vmem [resolvable:$true] %s258
      %261 = dma.vmem_to_hbm [thread:$0]  %s259, 32, %s6, [#allocation5]
    $region29: #{_lambda_.9} parent=1 // pred_fallthru
      _
    // Predicated region
    $region30: #{_lambda_.9} parent=1 // pred_check
      _
    $region31: #{_lambda_.9} parent=1 // pred_check_branch
      %263 = sbr.rel (0) target = $region33
    $region32: #{_lambda_.9} parent=1 // pred_region
      %264 = dma.done [#allocation3], 32
    $region33: #{_lambda_.9} parent=1 // pred_fallthru
      _
    // Predicated region
    $region34: #{_lambda_.9} parent=1 // pred_check
      _
    $region35: #{_lambda_.9} parent=1 // pred_check_branch
      %266 = sbr.rel (0) target = $region37
    $region36: #{_lambda_.9} parent=1 // pred_region
      %267 = dma.done [#allocation5], 32
    $region37: #{_lambda_.9} parent=1 // pred_fallthru
      _
    %268 = vsyncpa [#allocation3], 1
    %269 = vsyncpa [#allocation5], 1

</llo_original>
